<compile_context>
chip_gen: v6e
topology: v6e:2x2x1
jax: 0.10.0
libtpu: 0.0.40
codegen_flags: <defaults>
</compile_context>

<pallas_src>
import jax
import jax.numpy as jnp
from jax.experimental import pallas as pl
from jax.experimental.pallas import tpu as pltpu

# ---- module hyper-parameters (CvTBlock(dim=32, num_heads=4)) ----
DIM = 32
NUM_HEADS = 4
HEAD_DIM = DIM // NUM_HEADS
MLP_HIDDEN = int(DIM * 4.0)
KSIZE = 3
EPS = 1e-5

B, H, W = 2, 8, 8          # H, W powers of two (bitwise masks below rely on it)
N = H * W                  # tokens per image
TOT = B * N                # merged batch*token rows

# rows of the consolidated (20, DIM) f32 param slab
ROW_WC = 0        # 9 rows: summed depthwise-conv taps
ROW_BC = 9        # summed conv bias
ROW_G1, ROW_BE1 = 10, 11
ROW_G2, ROW_BE2 = 12, 13
ROW_BPR, ROW_BFC2 = 14, 15
ROW_HMASK = 16    # 4 rows: per-head channel masks


def _layernorm(x, gamma, beta):
    mean = jnp.mean(x, axis=-1, keepdims=True)
    var = jnp.mean((x - mean) ** 2, axis=-1, keepdims=True)
    return (x - mean) * jax.lax.rsqrt(var + EPS) * gamma + beta


# --------------------------------------------------------------------------- #
# Fused kernel: single invocation, whole (B*N, C) slab resident in VMEM        #
# --------------------------------------------------------------------------- #
def cvt_block_kernel(x_ref, vecs_ref, b1_ref, wqkv_ref, wpr_ref, w1_ref, w2_ref,
                     out_ref):
    f32, bf16 = jnp.float32, jnp.bfloat16
    x = x_ref[...]                                   # (TOT, C) f32
    vecs = vecs_ref[...]                             # (20, C)  f32

    wc = vecs[ROW_WC:ROW_WC + 9]                     # (9, C) summed conv taps
    bc = vecs[ROW_BC:ROW_BC + 1]
    g1, be1 = vecs[ROW_G1:ROW_G1 + 1], vecs[ROW_BE1:ROW_BE1 + 1]
    g2, be2 = vecs[ROW_G2:ROW_G2 + 1], vecs[ROW_BE2:ROW_BE2 + 1]
    bpr, b2 = vecs[ROW_BPR:ROW_BPR + 1], vecs[ROW_BFC2:ROW_BFC2 + 1]

    # ---- LayerNorm1 (full slab) --------------------------------------------
    xn = _layernorm(x, g1, be1)                      # (TOT, C)

    # ---- depthwise 3x3 conv (q+k+v folded) via shifted adds + masks --------
    gidx = jax.lax.broadcasted_iota(jnp.int32, (TOT, 1), 0)
    col = jnp.bitwise_and(gidx, W - 1)               # column within image row
    rowpos = jnp.bitwise_and(gidx, N - 1)            # token index within image
    left_ok = col >= 1
    right_ok = col <= W - 2
    up_ok = rowpos >= W
    down_ok = rowpos < N - W

    conv = xn * wc[4:5]                              # center tap (ky=kx=1)
    for t in range(KSIZE * KSIZE):
        if t == 4:
            continue
        ky, kx = t // KSIZE, t % KSIZE
        dy, dx = ky - 1, kx - 1
        sh = dy * W + dx                             # token-index shift
        shifted = jnp.roll(xn, -sh, axis=0)          # out[g] = xn[g + sh] (wrap masked)
        mask = None
        if dy == -1:
            mask = up_ok
        elif dy == 1:
            mask = down_ok
        if dx == -1:
            mask = left_ok if mask is None else jnp.logical_and(mask, left_ok)
        elif dx == 1:
            mask = right_ok if mask is None else jnp.logical_and(mask, right_ok)
        shifted = jnp.where(mask, shifted, 0.0)      # zero padding + batch fence
        conv = conv + shifted * wc[t:t + 1]
    conv = conv + bc

    s_tok = xn + conv                                # x_norm + q_conv + k_conv + v_conv

    # ---- qkv linear (softmax scale pre-folded into q columns) --------------
    qkv = jnp.dot(s_tok.astype(bf16), wqkv_ref[...],
                  preferred_element_type=f32)        # (TOT, 3C) f32

    # ---- multi-head attention; heads selected with channel masks -----------
    o_parts = []
    for b in range(B):
        r0 = b * N
        q_b = qkv[r0:r0 + N, 0:DIM]                  # (N, C) f32 (already scaled)
        k_b = qkv[r0:r0 + N, DIM:2 * DIM].astype(bf16)
        v_b = qkv[r0:r0 + N, 2 * DIM:3 * DIM].astype(bf16)
        o_b = jnp.zeros((N, DIM), f32)
        for h in range(NUM_HEADS):
            mh = vecs[ROW_HMASK + h:ROW_HMASK + h + 1]          # (1, C) 0/1 mask
            qm = (q_b * mh).astype(bf16)                        # only head-h channels
            logits = jax.lax.dot_general(qm, k_b, (((1,), (1,)), ((), ())),
                                         preferred_element_type=f32)   # (N, N)
            logits = logits - jnp.max(logits, axis=-1, keepdims=True)
            p = jnp.exp(logits)
            p = p * pl.reciprocal(jnp.sum(p, axis=-1, keepdims=True), approx=True)
            o_full = jnp.dot(p.astype(bf16), v_b,
                             preferred_element_type=f32)        # (N, C)
            o_b = o_b + o_full * mh                             # keep head-h columns
        o_parts.append(o_b)
    o_all = jnp.concatenate(o_parts, axis=0)         # (TOT, C) == concat of heads

    proj = jnp.dot(o_all.astype(bf16), wpr_ref[...],
                   preferred_element_type=f32) + bpr
    x1 = x + proj                                    # residual 1

    # ---- LN2 + MLP (tanh GELU) + residual 2 ---------------------------------
    x2n = _layernorm(x1, g2, be2)
    hid = jnp.dot(x2n.astype(bf16), w1_ref[...],
                  preferred_element_type=f32) + b1_ref[...]
    act = jax.nn.gelu(hid, approximate=True)
    mlp = jnp.dot(act.astype(bf16), w2_ref[...],
                  preferred_element_type=f32) + b2
    out_ref[...] = x1 + mlp


# --------------------------------------------------------------------------- #
# One-time weight preprocessing (hoisted out of the forward)                   #
# --------------------------------------------------------------------------- #
def prepare_params(p):
    C = DIM
    scale = HEAD_DIM ** (-0.5)
    f32, bf16 = jnp.float32, jnp.bfloat16
    # depthwise conv weights (C,1,3,3) -> (9 taps, C); fold q+k+v (only their
    # sum is ever consumed by the forward)
    wc = sum(p[f"conv_{n}_w"].reshape(C, KSIZE * KSIZE).T for n in ("q", "k", "v"))
    bc = (p["conv_q_b"] + p["conv_k_b"] + p["conv_v_b"]).reshape(1, C)
    head_mask = jnp.repeat(jnp.eye(NUM_HEADS, dtype=f32), HEAD_DIM, axis=1)  # (NH, C)
    vecs = jnp.concatenate(
        [wc, bc,
         p["ln1_g"].reshape(1, C), p["ln1_b"].reshape(1, C),
         p["ln2_g"].reshape(1, C), p["ln2_b"].reshape(1, C),
         p["proj_b"].reshape(1, C), p["fc2_b"].reshape(1, C),
         head_mask], axis=0).astype(f32)                                      # (20, C)
    wqkv = p["qkv_w"].T                              # (C, 3C); qkv_bias=False
    wqkv = wqkv.at[:, :C].multiply(scale)            # fold softmax scale into q cols
    return dict(
        vecs=vecs,
        b1=p["fc1_b"].reshape(1, MLP_HIDDEN).astype(f32),
        wqkv=wqkv.astype(bf16),
        wpr=p["proj_w"].T.astype(bf16),
        w1=p["fc1_w"].T.astype(bf16),
        w2=p["fc2_w"].T.astype(bf16),
    )


# --------------------------------------------------------------------------- #
# Wrapper: one pallas_call, no grid, whole problem in VMEM                      #
# --------------------------------------------------------------------------- #
@jax.jit
def cvt_block_forward(x, pp):
    B_, N_, C_ = x.shape
    x2d = x.reshape(B_ * N_, C_)                     # lane-dense token slab
    vmem = pl.BlockSpec(memory_space=pltpu.MemorySpace.VMEM)
    out2d = pl.pallas_call(
        cvt_block_kernel,
        out_shape=jax.ShapeDtypeStruct((B_ * N_, C_), jnp.float32),
        in_specs=[vmem] * 7,
        out_specs=vmem,
    )(x2d, pp["vecs"], pp["b1"], pp["wqkv"], pp["wpr"], pp["w1"], pp["w2"])
    return out2d.reshape(B_, N_, C_)


# --------------------------------------------------------------------------- #
# Deterministic parameter init (shapes from CvTBlock.__init__)                 #
# --------------------------------------------------------------------------- #
def init_params(key):
    ks = jax.random.split(key, 17)

    def rn(k, shape, scale=0.05):
        return (scale * jax.random.normal(k, shape)).astype(jnp.float32)

    p = {}
    p["ln1_g"] = jnp.ones((DIM,), jnp.float32) + rn(ks[0], (DIM,), 0.01)
    p["ln1_b"] = rn(ks[1], (DIM,), 0.01)
    p["conv_q_w"] = rn(ks[2], (DIM, 1, KSIZE, KSIZE))
    p["conv_q_b"] = rn(ks[3], (DIM,))
    p["conv_k_w"] = rn(ks[4], (DIM, 1, KSIZE, KSIZE))
    p["conv_k_b"] = rn(ks[5], (DIM,))
    p["conv_v_w"] = rn(ks[6], (DIM, 1, KSIZE, KSIZE))
    p["conv_v_b"] = rn(ks[7], (DIM,))
    p["qkv_w"] = rn(ks[8], (3 * DIM, DIM))
    p["proj_w"] = rn(ks[9], (DIM, DIM))
    p["proj_b"] = rn(ks[10], (DIM,))
    p["ln2_g"] = jnp.ones((DIM,), jnp.float32) + rn(ks[11], (DIM,), 0.01)
    p["ln2_b"] = rn(ks[12], (DIM,), 0.01)
    p["fc1_w"] = rn(ks[13], (MLP_HIDDEN, DIM))
    p["fc1_b"] = rn(ks[14], (MLP_HIDDEN,))
    p["fc2_w"] = rn(ks[15], (DIM, MLP_HIDDEN))
    p["fc2_b"] = rn(ks[16], (DIM,))
    return p


# --------------------------------------------------------------------------- #
# Pure-JAX reference (mirrors the PyTorch forward) for correctness check       #
# --------------------------------------------------------------------------- #
def _depthwise_conv_ref(x_nhwc, w, b):
    C_ = x_nhwc.shape[-1]
    k = jnp.transpose(w, (2, 3, 1, 0))               # (3, 3, 1, C)
    out = jax.lax.conv_general_dilated(
        x_nhwc, k, window_strides=(1, 1), padding="SAME",
        dimension_numbers=("NHWC", "HWIO", "NHWC"), feature_group_count=C_)
    return out + b.reshape(1, 1, 1, C_)


def ref_forward(x, p, H_, W_):
    B_, N_, C_ = x.shape

    def ln(v, g, b):
        m = jnp.mean(v, -1, keepdims=True)
        var = jnp.mean((v - m) ** 2, -1, keepdims=True)
        return (v - m) / jnp.sqrt(var + EPS) * g + b

    xn = ln(x, p["ln1_g"], p["ln1_b"])
    xh = xn.reshape(B_, H_, W_, C_)
    qc = _depthwise_conv_ref(xh, p["conv_q_w"], p["conv_q_b"]).reshape(B_, N_, C_)
    kc = _depthwise_conv_ref(xh, p["conv_k_w"], p["conv_k_b"]).reshape(B_, N_, C_)
    vc = _depthwise_conv_ref(xh, p["conv_v_w"], p["conv_v_b"]).reshape(B_, N_, C_)
    s = xn + qc + kc + vc
    qkv = (s @ p["qkv_w"].T).reshape(B_, N_, 3, NUM_HEADS, HEAD_DIM).transpose(2, 0, 3, 1, 4)
    q, k, v = qkv[0], qkv[1], qkv[2]
    attn = jnp.einsum("bhqd,bhkd->bhqk", q, k) * (HEAD_DIM ** -0.5)
    attn = jax.nn.softmax(attn, axis=-1)
    o = jnp.einsum("bhqk,bhkd->bhqd", attn, v).transpose(0, 2, 1, 3).reshape(B_, N_, C_)
    o = o @ p["proj_w"].T + p["proj_b"]
    x1 = x + o
    x2 = ln(x1, p["ln2_g"], p["ln2_b"])
    hh = jax.nn.gelu(x2 @ p["fc1_w"].T + p["fc1_b"], approximate=False)
    mlp = hh @ p["fc2_w"].T + p["fc2_b"]
    return x1 + mlp


if __name__ == "__main__":
    key = jax.random.PRNGKey(0)
    kx, kp = jax.random.split(key)
    x = jax.random.normal(kx, (B, N, DIM), jnp.float32)
    params = init_params(kp)
    prepped = prepare_params(params)                 # one-time weight preprocessing

    out = cvt_block_forward(x, prepped)
    out = jax.block_until_ready(out)

    ref = ref_forward(x, params, H, W)
    assert out.shape == (B, N, DIM)
    if not bool(jnp.all(jnp.isfinite(out))):
        raise RuntimeError("non-finite output")
    err = float(jnp.max(jnp.abs(out - ref)))
    if err > 5e-3:
        raise RuntimeError(f"mismatch vs reference: max abs err {err}")
    print("KERNEL_OK")
</pallas_src>

<mosaic_0001>
module attributes {stable_mosaic.version = 11 : i64} {
  func.func @cvt_block_kernel(%arg0: memref<128x32xf32, #tpu.memory_space<vmem>>, %arg1: memref<20x32xf32, #tpu.memory_space<vmem>>, %arg2: memref<1x128xf32, #tpu.memory_space<vmem>>, %arg3: memref<32x96xbf16, #tpu.memory_space<vmem>>, %arg4: memref<32x32xbf16, #tpu.memory_space<vmem>>, %arg5: memref<32x128xbf16, #tpu.memory_space<vmem>>, %arg6: memref<128x32xbf16, #tpu.memory_space<vmem>>, %arg7: memref<128x32xf32, #tpu.memory_space<vmem>>) attributes {dimension_semantics = [], scalar_prefetch = 0 : i64, scratch_operands = 0 : i64, tpu.core_type = #tpu.core_type<tc>} {
    %c0 = arith.constant 0 : index
    %c0_0 = arith.constant 0 : index
    %0 = vector.load %arg0[%c0, %c0_0] : memref<128x32xf32, #tpu.memory_space<vmem>>, vector<128x32xf32>
    %c0_1 = arith.constant 0 : index
    %c0_2 = arith.constant 0 : index
    %1 = vector.load %arg1[%c0_1, %c0_2] : memref<20x32xf32, #tpu.memory_space<vmem>>, vector<20x32xf32>
    %2 = vector.extract_strided_slice %1 {offsets = [0, 0], sizes = [9, 32], strides = [1, 1]} : vector<20x32xf32> to vector<9x32xf32>
    %3 = vector.extract_strided_slice %1 {offsets = [9, 0], sizes = [1, 32], strides = [1, 1]} : vector<20x32xf32> to vector<1x32xf32>
    %4 = vector.extract_strided_slice %1 {offsets = [10, 0], sizes = [1, 32], strides = [1, 1]} : vector<20x32xf32> to vector<1x32xf32>
    %5 = vector.extract_strided_slice %1 {offsets = [11, 0], sizes = [1, 32], strides = [1, 1]} : vector<20x32xf32> to vector<1x32xf32>
    %6 = vector.extract_strided_slice %1 {offsets = [12, 0], sizes = [1, 32], strides = [1, 1]} : vector<20x32xf32> to vector<1x32xf32>
    %7 = vector.extract_strided_slice %1 {offsets = [13, 0], sizes = [1, 32], strides = [1, 1]} : vector<20x32xf32> to vector<1x32xf32>
    %8 = vector.extract_strided_slice %1 {offsets = [14, 0], sizes = [1, 32], strides = [1, 1]} : vector<20x32xf32> to vector<1x32xf32>
    %9 = vector.extract_strided_slice %1 {offsets = [15, 0], sizes = [1, 32], strides = [1, 1]} : vector<20x32xf32> to vector<1x32xf32>
    %cst = arith.constant dense<0.000000e+00> : vector<128xf32>
    %10 = vector.multi_reduction <add>, %0, %cst [1] : vector<128x32xf32> to vector<128xf32>
    %11 = vector.shape_cast %10 : vector<128xf32> to vector<128x1xf32>
    %cst_3 = arith.constant 3.200000e+01 : f32
    %12 = vector.broadcast %cst_3 : f32 to vector<128x1xf32>
    %13 = arith.divf %11, %12 : vector<128x1xf32>
    %14 = vector.broadcast %13 : vector<128x1xf32> to vector<128x32xf32>
    %15 = arith.subf %0, %14 : vector<128x32xf32>
    %16 = arith.mulf %15, %15 : vector<128x32xf32>
    %cst_4 = arith.constant dense<0.000000e+00> : vector<128xf32>
    %17 = vector.multi_reduction <add>, %16, %cst_4 [1] : vector<128x32xf32> to vector<128xf32>
    %18 = vector.shape_cast %17 : vector<128xf32> to vector<128x1xf32>
    %cst_5 = arith.constant 3.200000e+01 : f32
    %19 = vector.broadcast %cst_5 : f32 to vector<128x1xf32>
    %20 = arith.divf %18, %19 : vector<128x1xf32>
    %21 = vector.broadcast %13 : vector<128x1xf32> to vector<128x32xf32>
    %22 = arith.subf %0, %21 : vector<128x32xf32>
    %cst_6 = arith.constant 9.99999974E-6 : f32
    %23 = vector.broadcast %cst_6 : f32 to vector<128x1xf32>
    %24 = arith.addf %20, %23 : vector<128x1xf32>
    %25 = math.rsqrt %24 : vector<128x1xf32>
    %26 = vector.broadcast %25 : vector<128x1xf32> to vector<128x32xf32>
    %27 = arith.mulf %22, %26 : vector<128x32xf32>
    %28 = vector.broadcast %4 : vector<1x32xf32> to vector<128x32xf32>
    %29 = arith.mulf %27, %28 : vector<128x32xf32>
    %30 = vector.broadcast %5 : vector<1x32xf32> to vector<128x32xf32>
    %31 = arith.addf %29, %30 : vector<128x32xf32>
    %32 = tpu.iota {dimensions = array<i32: 0>} : vector<128x1xi32>
    %c7_i32 = arith.constant 7 : i32
    %33 = vector.broadcast %c7_i32 : i32 to vector<128x1xi32>
    %34 = arith.andi %32, %33 : vector<128x1xi32>
    %c63_i32 = arith.constant 63 : i32
    %35 = vector.broadcast %c63_i32 : i32 to vector<128x1xi32>
    %36 = arith.andi %32, %35 : vector<128x1xi32>
    %c1_i32 = arith.constant 1 : i32
    %37 = vector.broadcast %c1_i32 : i32 to vector<128x1xi32>
    %38 = arith.cmpi sge, %34, %37 : vector<128x1xi32>
    %c6_i32 = arith.constant 6 : i32
    %39 = vector.broadcast %c6_i32 : i32 to vector<128x1xi32>
    %40 = arith.cmpi sle, %34, %39 : vector<128x1xi32>
    %c8_i32 = arith.constant 8 : i32
    %41 = vector.broadcast %c8_i32 : i32 to vector<128x1xi32>
    %42 = arith.cmpi sge, %36, %41 : vector<128x1xi32>
    %c56_i32 = arith.constant 56 : i32
    %43 = vector.broadcast %c56_i32 : i32 to vector<128x1xi32>
    %44 = arith.cmpi slt, %36, %43 : vector<128x1xi32>
    %45 = vector.extract_strided_slice %2 {offsets = [4, 0], sizes = [1, 32], strides = [1, 1]} : vector<9x32xf32> to vector<1x32xf32>
    %46 = vector.broadcast %45 : vector<1x32xf32> to vector<128x32xf32>
    %47 = arith.mulf %31, %46 : vector<128x32xf32>
    %48 = vector.extract_strided_slice %31 {offsets = [119, 0], sizes = [9, 32], strides = [1, 1]} : vector<128x32xf32> to vector<9x32xf32>
    %49 = vector.extract_strided_slice %31 {offsets = [0, 0], sizes = [119, 32], strides = [1, 1]} : vector<128x32xf32> to vector<119x32xf32>
    %50 = tpu.concatenate %48, %49 in 0 : vector<9x32xf32>, vector<119x32xf32> -> vector<128x32xf32>
    %51 = arith.andi %42, %38 : vector<128x1xi1>
    %cst_7 = arith.constant 0.000000e+00 : f32
    %52 = vector.shape_cast %51 : vector<128x1xi1> to vector<128x1xi1>
    %53 = vector.broadcast %52 : vector<128x1xi1> to vector<128x32xi1>
    %54 = vector.broadcast %cst_7 : f32 to vector<128x32xf32>
    %55 = arith.select %53, %50, %54 : vector<128x32xi1>, vector<128x32xf32>
    %56 = vector.extract_strided_slice %2 {offsets = [0, 0], sizes = [1, 32], strides = [1, 1]} : vector<9x32xf32> to vector<1x32xf32>
    %57 = vector.broadcast %56 : vector<1x32xf32> to vector<128x32xf32>
    %58 = arith.mulf %55, %57 : vector<128x32xf32>
    %59 = arith.addf %47, %58 : vector<128x32xf32>
    %60 = vector.extract_strided_slice %31 {offsets = [120, 0], sizes = [8, 32], strides = [1, 1]} : vector<128x32xf32> to vector<8x32xf32>
    %61 = vector.extract_strided_slice %31 {offsets = [0, 0], sizes = [120, 32], strides = [1, 1]} : vector<128x32xf32> to vector<120x32xf32>
    %62 = tpu.concatenate %60, %61 in 0 : vector<8x32xf32>, vector<120x32xf32> -> vector<128x32xf32>
    %cst_8 = arith.constant 0.000000e+00 : f32
    %63 = vector.shape_cast %42 : vector<128x1xi1> to vector<128x1xi1>
    %64 = vector.broadcast %63 : vector<128x1xi1> to vector<128x32xi1>
    %65 = vector.broadcast %cst_8 : f32 to vector<128x32xf32>
    %66 = arith.select %64, %62, %65 : vector<128x32xi1>, vector<128x32xf32>
    %67 = vector.extract_strided_slice %2 {offsets = [1, 0], sizes = [1, 32], strides = [1, 1]} : vector<9x32xf32> to vector<1x32xf32>
    %68 = vector.broadcast %67 : vector<1x32xf32> to vector<128x32xf32>
    %69 = arith.mulf %66, %68 : vector<128x32xf32>
    %70 = arith.addf %59, %69 : vector<128x32xf32>
    %71 = vector.extract_strided_slice %31 {offsets = [121, 0], sizes = [7, 32], strides = [1, 1]} : vector<128x32xf32> to vector<7x32xf32>
    %72 = vector.extract_strided_slice %31 {offsets = [0, 0], sizes = [121, 32], strides = [1, 1]} : vector<128x32xf32> to vector<121x32xf32>
    %73 = tpu.concatenate %71, %72 in 0 : vector<7x32xf32>, vector<121x32xf32> -> vector<128x32xf32>
    %74 = arith.andi %42, %40 : vector<128x1xi1>
    %cst_9 = arith.constant 0.000000e+00 : f32
    %75 = vector.shape_cast %74 : vector<128x1xi1> to vector<128x1xi1>
    %76 = vector.broadcast %75 : vector<128x1xi1> to vector<128x32xi1>
    %77 = vector.broadcast %cst_9 : f32 to vector<128x32xf32>
    %78 = arith.select %76, %73, %77 : vector<128x32xi1>, vector<128x32xf32>
    %79 = vector.extract_strided_slice %2 {offsets = [2, 0], sizes = [1, 32], strides = [1, 1]} : vector<9x32xf32> to vector<1x32xf32>
    %80 = vector.broadcast %79 : vector<1x32xf32> to vector<128x32xf32>
    %81 = arith.mulf %78, %80 : vector<128x32xf32>
    %82 = arith.addf %70, %81 : vector<128x32xf32>
    %83 = vector.extract_strided_slice %31 {offsets = [127, 0], sizes = [1, 32], strides = [1, 1]} : vector<128x32xf32> to vector<1x32xf32>
    %84 = vector.extract_strided_slice %31 {offsets = [0, 0], sizes = [127, 32], strides = [1, 1]} : vector<128x32xf32> to vector<127x32xf32>
    %85 = tpu.concatenate %83, %84 in 0 : vector<1x32xf32>, vector<127x32xf32> -> vector<128x32xf32>
    %cst_10 = arith.constant 0.000000e+00 : f32
    %86 = vector.shape_cast %38 : vector<128x1xi1> to vector<128x1xi1>
    %87 = vector.broadcast %86 : vector<128x1xi1> to vector<128x32xi1>
    %88 = vector.broadcast %cst_10 : f32 to vector<128x32xf32>
    %89 = arith.select %87, %85, %88 : vector<128x32xi1>, vector<128x32xf32>
    %90 = vector.extract_strided_slice %2 {offsets = [3, 0], sizes = [1, 32], strides = [1, 1]} : vector<9x32xf32> to vector<1x32xf32>
    %91 = vector.broadcast %90 : vector<1x32xf32> to vector<128x32xf32>
    %92 = arith.mulf %89, %91 : vector<128x32xf32>
    %93 = arith.addf %82, %92 : vector<128x32xf32>
    %94 = vector.extract_strided_slice %31 {offsets = [1, 0], sizes = [127, 32], strides = [1, 1]} : vector<128x32xf32> to vector<127x32xf32>
    %95 = vector.extract_strided_slice %31 {offsets = [0, 0], sizes = [1, 32], strides = [1, 1]} : vector<128x32xf32> to vector<1x32xf32>
    %96 = tpu.concatenate %94, %95 in 0 : vector<127x32xf32>, vector<1x32xf32> -> vector<128x32xf32>
    %cst_11 = arith.constant 0.000000e+00 : f32
    %97 = vector.shape_cast %40 : vector<128x1xi1> to vector<128x1xi1>
    %98 = vector.broadcast %97 : vector<128x1xi1> to vector<128x32xi1>
    %99 = vector.broadcast %cst_11 : f32 to vector<128x32xf32>
    %100 = arith.select %98, %96, %99 : vector<128x32xi1>, vector<128x32xf32>
    %101 = vector.extract_strided_slice %2 {offsets = [5, 0], sizes = [1, 32], strides = [1, 1]} : vector<9x32xf32> to vector<1x32xf32>
    %102 = vector.broadcast %101 : vector<1x32xf32> to vector<128x32xf32>
    %103 = arith.mulf %100, %102 : vector<128x32xf32>
    %104 = arith.addf %93, %103 : vector<128x32xf32>
    %105 = vector.extract_strided_slice %31 {offsets = [7, 0], sizes = [121, 32], strides = [1, 1]} : vector<128x32xf32> to vector<121x32xf32>
    %106 = vector.extract_strided_slice %31 {offsets = [0, 0], sizes = [7, 32], strides = [1, 1]} : vector<128x32xf32> to vector<7x32xf32>
    %107 = tpu.concatenate %105, %106 in 0 : vector<121x32xf32>, vector<7x32xf32> -> vector<128x32xf32>
    %108 = arith.andi %44, %38 : vector<128x1xi1>
    %cst_12 = arith.constant 0.000000e+00 : f32
    %109 = vector.shape_cast %108 : vector<128x1xi1> to vector<128x1xi1>
    %110 = vector.broadcast %109 : vector<128x1xi1> to vector<128x32xi1>
    %111 = vector.broadcast %cst_12 : f32 to vector<128x32xf32>
    %112 = arith.select %110, %107, %111 : vector<128x32xi1>, vector<128x32xf32>
    %113 = vector.extract_strided_slice %2 {offsets = [6, 0], sizes = [1, 32], strides = [1, 1]} : vector<9x32xf32> to vector<1x32xf32>
    %114 = vector.broadcast %113 : vector<1x32xf32> to vector<128x32xf32>
    %115 = arith.mulf %112, %114 : vector<128x32xf32>
    %116 = arith.addf %104, %115 : vector<128x32xf32>
    %117 = vector.extract_strided_slice %31 {offsets = [8, 0], sizes = [120, 32], strides = [1, 1]} : vector<128x32xf32> to vector<120x32xf32>
    %118 = vector.extract_strided_slice %31 {offsets = [0, 0], sizes = [8, 32], strides = [1, 1]} : vector<128x32xf32> to vector<8x32xf32>
    %119 = tpu.concatenate %117, %118 in 0 : vector<120x32xf32>, vector<8x32xf32> -> vector<128x32xf32>
    %cst_13 = arith.constant 0.000000e+00 : f32
    %120 = vector.shape_cast %44 : vector<128x1xi1> to vector<128x1xi1>
    %121 = vector.broadcast %120 : vector<128x1xi1> to vector<128x32xi1>
    %122 = vector.broadcast %cst_13 : f32 to vector<128x32xf32>
    %123 = arith.select %121, %119, %122 : vector<128x32xi1>, vector<128x32xf32>
    %124 = vector.extract_strided_slice %2 {offsets = [7, 0], sizes = [1, 32], strides = [1, 1]} : vector<9x32xf32> to vector<1x32xf32>
    %125 = vector.broadcast %124 : vector<1x32xf32> to vector<128x32xf32>
    %126 = arith.mulf %123, %125 : vector<128x32xf32>
    %127 = arith.addf %116, %126 : vector<128x32xf32>
    %128 = vector.extract_strided_slice %31 {offsets = [9, 0], sizes = [119, 32], strides = [1, 1]} : vector<128x32xf32> to vector<119x32xf32>
    %129 = vector.extract_strided_slice %31 {offsets = [0, 0], sizes = [9, 32], strides = [1, 1]} : vector<128x32xf32> to vector<9x32xf32>
    %130 = tpu.concatenate %128, %129 in 0 : vector<119x32xf32>, vector<9x32xf32> -> vector<128x32xf32>
    %131 = arith.andi %44, %40 : vector<128x1xi1>
    %cst_14 = arith.constant 0.000000e+00 : f32
    %132 = vector.shape_cast %131 : vector<128x1xi1> to vector<128x1xi1>
    %133 = vector.broadcast %132 : vector<128x1xi1> to vector<128x32xi1>
    %134 = vector.broadcast %cst_14 : f32 to vector<128x32xf32>
    %135 = arith.select %133, %130, %134 : vector<128x32xi1>, vector<128x32xf32>
    %136 = vector.extract_strided_slice %2 {offsets = [8, 0], sizes = [1, 32], strides = [1, 1]} : vector<9x32xf32> to vector<1x32xf32>
    %137 = vector.broadcast %136 : vector<1x32xf32> to vector<128x32xf32>
    %138 = arith.mulf %135, %137 : vector<128x32xf32>
    %139 = arith.addf %127, %138 : vector<128x32xf32>
    %140 = vector.broadcast %3 : vector<1x32xf32> to vector<128x32xf32>
    %141 = arith.addf %139, %140 : vector<128x32xf32>
    %142 = arith.addf %31, %141 : vector<128x32xf32>
    %143 = arith.truncf %142 : vector<128x32xf32> to vector<128x32xbf16>
    %c0_15 = arith.constant 0 : index
    %c0_16 = arith.constant 0 : index
    %144 = vector.load %arg3[%c0_15, %c0_16] : memref<32x96xbf16, #tpu.memory_space<vmem>>, vector<32x96xbf16>
    %cst_17 = arith.constant dense<0.000000e+00> : vector<128x96xf32>
    %145 = tpu.matmul %143, %144, %cst_17 {dimension_numbers = #tpu.dot_dimension_numbers<[1], [0], [0], [1], [0, 0, 1, 1], [], []>} : vector<128x32xbf16>, vector<32x96xbf16>, vector<128x96xf32> -> vector<128x96xf32>
    %146 = vector.extract_strided_slice %145 {offsets = [0, 0], sizes = [64, 32], strides = [1, 1]} : vector<128x96xf32> to vector<64x32xf32>
    %147 = vector.extract_strided_slice %145 {offsets = [0, 32], sizes = [64, 32], strides = [1, 1]} : vector<128x96xf32> to vector<64x32xf32>
    %148 = arith.truncf %147 : vector<64x32xf32> to vector<64x32xbf16>
    %149 = vector.extract_strided_slice %145 {offsets = [0, 64], sizes = [64, 32], strides = [1, 1]} : vector<128x96xf32> to vector<64x32xf32>
    %150 = arith.truncf %149 : vector<64x32xf32> to vector<64x32xbf16>
    %cst_18 = arith.constant 0.000000e+00 : f32
    %151 = vector.broadcast %cst_18 : f32 to vector<64x32xf32>
    %152 = vector.extract_strided_slice %1 {offsets = [16, 0], sizes = [1, 32], strides = [1, 1]} : vector<20x32xf32> to vector<1x32xf32>
    %153 = vector.broadcast %152 : vector<1x32xf32> to vector<64x32xf32>
    %154 = arith.mulf %146, %153 : vector<64x32xf32>
    %155 = arith.truncf %154 : vector<64x32xf32> to vector<64x32xbf16>
    %cst_19 = arith.constant dense<0.000000e+00> : vector<64x64xf32>
    %156 = tpu.matmul %155, %148, %cst_19 {dimension_numbers = #tpu.dot_dimension_numbers<[1], [1], [0], [0], [0, 0, 1, 0], [], []>} : vector<64x32xbf16>, vector<64x32xbf16>, vector<64x64xf32> -> vector<64x64xf32>
    %cst_20 = arith.constant dense<0xFF800000> : vector<64xf32>
    %157 = vector.multi_reduction <maximumf>, %156, %cst_20 [1] : vector<64x64xf32> to vector<64xf32>
    %158 = vector.shape_cast %157 : vector<64xf32> to vector<64x1xf32>
    %159 = vector.broadcast %158 : vector<64x1xf32> to vector<64x64xf32>
    %160 = arith.subf %156, %159 : vector<64x64xf32>
    %161 = math.exp %160 : vector<64x64xf32>
    %cst_21 = arith.constant dense<0.000000e+00> : vector<64xf32>
    %162 = vector.multi_reduction <add>, %161, %cst_21 [1] : vector<64x64xf32> to vector<64xf32>
    %163 = vector.shape_cast %162 : vector<64xf32> to vector<64x1xf32>
    %164 = tpu.reciprocal %163 {approx = true} : vector<64x1xf32> -> vector<64x1xf32>
    %165 = vector.broadcast %164 : vector<64x1xf32> to vector<64x64xf32>
    %166 = arith.mulf %161, %165 : vector<64x64xf32>
    %167 = arith.truncf %166 : vector<64x64xf32> to vector<64x64xbf16>
    %cst_22 = arith.constant dense<0.000000e+00> : vector<64x32xf32>
    %168 = tpu.matmul %167, %150, %cst_22 {dimension_numbers = #tpu.dot_dimension_numbers<[1], [0], [0], [1], [0, 0, 1, 1], [], []>} : vector<64x64xbf16>, vector<64x32xbf16>, vector<64x32xf32> -> vector<64x32xf32>
    %169 = vector.broadcast %152 : vector<1x32xf32> to vector<64x32xf32>
    %170 = arith.mulf %168, %169 : vector<64x32xf32>
    %171 = arith.addf %151, %170 : vector<64x32xf32>
    %172 = vector.extract_strided_slice %1 {offsets = [17, 0], sizes = [1, 32], strides = [1, 1]} : vector<20x32xf32> to vector<1x32xf32>
    %173 = vector.broadcast %172 : vector<1x32xf32> to vector<64x32xf32>
    %174 = arith.mulf %146, %173 : vector<64x32xf32>
    %175 = arith.truncf %174 : vector<64x32xf32> to vector<64x32xbf16>
    %cst_23 = arith.constant dense<0.000000e+00> : vector<64x64xf32>
    %176 = tpu.matmul %175, %148, %cst_23 {dimension_numbers = #tpu.dot_dimension_numbers<[1], [1], [0], [0], [0, 0, 1, 0], [], []>} : vector<64x32xbf16>, vector<64x32xbf16>, vector<64x64xf32> -> vector<64x64xf32>
    %cst_24 = arith.constant dense<0xFF800000> : vector<64xf32>
    %177 = vector.multi_reduction <maximumf>, %176, %cst_24 [1] : vector<64x64xf32> to vector<64xf32>
    %178 = vector.shape_cast %177 : vector<64xf32> to vector<64x1xf32>
    %179 = vector.broadcast %178 : vector<64x1xf32> to vector<64x64xf32>
    %180 = arith.subf %176, %179 : vector<64x64xf32>
    %181 = math.exp %180 : vector<64x64xf32>
    %cst_25 = arith.constant dense<0.000000e+00> : vector<64xf32>
    %182 = vector.multi_reduction <add>, %181, %cst_25 [1] : vector<64x64xf32> to vector<64xf32>
    %183 = vector.shape_cast %182 : vector<64xf32> to vector<64x1xf32>
    %184 = tpu.reciprocal %183 {approx = true} : vector<64x1xf32> -> vector<64x1xf32>
    %185 = vector.broadcast %184 : vector<64x1xf32> to vector<64x64xf32>
    %186 = arith.mulf %181, %185 : vector<64x64xf32>
    %187 = arith.truncf %186 : vector<64x64xf32> to vector<64x64xbf16>
    %cst_26 = arith.constant dense<0.000000e+00> : vector<64x32xf32>
    %188 = tpu.matmul %187, %150, %cst_26 {dimension_numbers = #tpu.dot_dimension_numbers<[1], [0], [0], [1], [0, 0, 1, 1], [], []>} : vector<64x64xbf16>, vector<64x32xbf16>, vector<64x32xf32> -> vector<64x32xf32>
    %189 = vector.broadcast %172 : vector<1x32xf32> to vector<64x32xf32>
    %190 = arith.mulf %188, %189 : vector<64x32xf32>
    %191 = arith.addf %171, %190 : vector<64x32xf32>
    %192 = vector.extract_strided_slice %1 {offsets = [18, 0], sizes = [1, 32], strides = [1, 1]} : vector<20x32xf32> to vector<1x32xf32>
    %193 = vector.broadcast %192 : vector<1x32xf32> to vector<64x32xf32>
    %194 = arith.mulf %146, %193 : vector<64x32xf32>
    %195 = arith.truncf %194 : vector<64x32xf32> to vector<64x32xbf16>
    %cst_27 = arith.constant dense<0.000000e+00> : vector<64x64xf32>
    %196 = tpu.matmul %195, %148, %cst_27 {dimension_numbers = #tpu.dot_dimension_numbers<[1], [1], [0], [0], [0, 0, 1, 0], [], []>} : vector<64x32xbf16>, vector<64x32xbf16>, vector<64x64xf32> -> vector<64x64xf32>
    %cst_28 = arith.constant dense<0xFF800000> : vector<64xf32>
    %197 = vector.multi_reduction <maximumf>, %196, %cst_28 [1] : vector<64x64xf32> to vector<64xf32>
    %198 = vector.shape_cast %197 : vector<64xf32> to vector<64x1xf32>
    %199 = vector.broadcast %198 : vector<64x1xf32> to vector<64x64xf32>
    %200 = arith.subf %196, %199 : vector<64x64xf32>
    %201 = math.exp %200 : vector<64x64xf32>
    %cst_29 = arith.constant dense<0.000000e+00> : vector<64xf32>
    %202 = vector.multi_reduction <add>, %201, %cst_29 [1] : vector<64x64xf32> to vector<64xf32>
    %203 = vector.shape_cast %202 : vector<64xf32> to vector<64x1xf32>
    %204 = tpu.reciprocal %203 {approx = true} : vector<64x1xf32> -> vector<64x1xf32>
    %205 = vector.broadcast %204 : vector<64x1xf32> to vector<64x64xf32>
    %206 = arith.mulf %201, %205 : vector<64x64xf32>
    %207 = arith.truncf %206 : vector<64x64xf32> to vector<64x64xbf16>
    %cst_30 = arith.constant dense<0.000000e+00> : vector<64x32xf32>
    %208 = tpu.matmul %207, %150, %cst_30 {dimension_numbers = #tpu.dot_dimension_numbers<[1], [0], [0], [1], [0, 0, 1, 1], [], []>} : vector<64x64xbf16>, vector<64x32xbf16>, vector<64x32xf32> -> vector<64x32xf32>
    %209 = vector.broadcast %192 : vector<1x32xf32> to vector<64x32xf32>
    %210 = arith.mulf %208, %209 : vector<64x32xf32>
    %211 = arith.addf %191, %210 : vector<64x32xf32>
    %212 = vector.extract_strided_slice %1 {offsets = [19, 0], sizes = [1, 32], strides = [1, 1]} : vector<20x32xf32> to vector<1x32xf32>
    %213 = vector.broadcast %212 : vector<1x32xf32> to vector<64x32xf32>
    %214 = arith.mulf %146, %213 : vector<64x32xf32>
    %215 = arith.truncf %214 : vector<64x32xf32> to vector<64x32xbf16>
    %cst_31 = arith.constant dense<0.000000e+00> : vector<64x64xf32>
    %216 = tpu.matmul %215, %148, %cst_31 {dimension_numbers = #tpu.dot_dimension_numbers<[1], [1], [0], [0], [0, 0, 1, 0], [], []>} : vector<64x32xbf16>, vector<64x32xbf16>, vector<64x64xf32> -> vector<64x64xf32>
    %cst_32 = arith.constant dense<0xFF800000> : vector<64xf32>
    %217 = vector.multi_reduction <maximumf>, %216, %cst_32 [1] : vector<64x64xf32> to vector<64xf32>
    %218 = vector.shape_cast %217 : vector<64xf32> to vector<64x1xf32>
    %219 = vector.broadcast %218 : vector<64x1xf32> to vector<64x64xf32>
    %220 = arith.subf %216, %219 : vector<64x64xf32>
    %221 = math.exp %220 : vector<64x64xf32>
    %cst_33 = arith.constant dense<0.000000e+00> : vector<64xf32>
    %222 = vector.multi_reduction <add>, %221, %cst_33 [1] : vector<64x64xf32> to vector<64xf32>
    %223 = vector.shape_cast %222 : vector<64xf32> to vector<64x1xf32>
    %224 = tpu.reciprocal %223 {approx = true} : vector<64x1xf32> -> vector<64x1xf32>
    %225 = vector.broadcast %224 : vector<64x1xf32> to vector<64x64xf32>
    %226 = arith.mulf %221, %225 : vector<64x64xf32>
    %227 = arith.truncf %226 : vector<64x64xf32> to vector<64x64xbf16>
    %cst_34 = arith.constant dense<0.000000e+00> : vector<64x32xf32>
    %228 = tpu.matmul %227, %150, %cst_34 {dimension_numbers = #tpu.dot_dimension_numbers<[1], [0], [0], [1], [0, 0, 1, 1], [], []>} : vector<64x64xbf16>, vector<64x32xbf16>, vector<64x32xf32> -> vector<64x32xf32>
    %229 = vector.broadcast %212 : vector<1x32xf32> to vector<64x32xf32>
    %230 = arith.mulf %228, %229 : vector<64x32xf32>
    %231 = arith.addf %211, %230 : vector<64x32xf32>
    %232 = vector.extract_strided_slice %145 {offsets = [64, 0], sizes = [64, 32], strides = [1, 1]} : vector<128x96xf32> to vector<64x32xf32>
    %233 = vector.extract_strided_slice %145 {offsets = [64, 32], sizes = [64, 32], strides = [1, 1]} : vector<128x96xf32> to vector<64x32xf32>
    %234 = arith.truncf %233 : vector<64x32xf32> to vector<64x32xbf16>
    %235 = vector.extract_strided_slice %145 {offsets = [64, 64], sizes = [64, 32], strides = [1, 1]} : vector<128x96xf32> to vector<64x32xf32>
    %236 = arith.truncf %235 : vector<64x32xf32> to vector<64x32xbf16>
    %cst_35 = arith.constant 0.000000e+00 : f32
    %237 = vector.broadcast %cst_35 : f32 to vector<64x32xf32>
    %238 = vector.extract_strided_slice %1 {offsets = [16, 0], sizes = [1, 32], strides = [1, 1]} : vector<20x32xf32> to vector<1x32xf32>
    %239 = vector.broadcast %238 : vector<1x32xf32> to vector<64x32xf32>
    %240 = arith.mulf %232, %239 : vector<64x32xf32>
    %241 = arith.truncf %240 : vector<64x32xf32> to vector<64x32xbf16>
    %cst_36 = arith.constant dense<0.000000e+00> : vector<64x64xf32>
    %242 = tpu.matmul %241, %234, %cst_36 {dimension_numbers = #tpu.dot_dimension_numbers<[1], [1], [0], [0], [0, 0, 1, 0], [], []>} : vector<64x32xbf16>, vector<64x32xbf16>, vector<64x64xf32> -> vector<64x64xf32>
    %cst_37 = arith.constant dense<0xFF800000> : vector<64xf32>
    %243 = vector.multi_reduction <maximumf>, %242, %cst_37 [1] : vector<64x64xf32> to vector<64xf32>
    %244 = vector.shape_cast %243 : vector<64xf32> to vector<64x1xf32>
    %245 = vector.broadcast %244 : vector<64x1xf32> to vector<64x64xf32>
    %246 = arith.subf %242, %245 : vector<64x64xf32>
    %247 = math.exp %246 : vector<64x64xf32>
    %cst_38 = arith.constant dense<0.000000e+00> : vector<64xf32>
    %248 = vector.multi_reduction <add>, %247, %cst_38 [1] : vector<64x64xf32> to vector<64xf32>
    %249 = vector.shape_cast %248 : vector<64xf32> to vector<64x1xf32>
    %250 = tpu.reciprocal %249 {approx = true} : vector<64x1xf32> -> vector<64x1xf32>
    %251 = vector.broadcast %250 : vector<64x1xf32> to vector<64x64xf32>
    %252 = arith.mulf %247, %251 : vector<64x64xf32>
    %253 = arith.truncf %252 : vector<64x64xf32> to vector<64x64xbf16>
    %cst_39 = arith.constant dense<0.000000e+00> : vector<64x32xf32>
    %254 = tpu.matmul %253, %236, %cst_39 {dimension_numbers = #tpu.dot_dimension_numbers<[1], [0], [0], [1], [0, 0, 1, 1], [], []>} : vector<64x64xbf16>, vector<64x32xbf16>, vector<64x32xf32> -> vector<64x32xf32>
    %255 = vector.broadcast %238 : vector<1x32xf32> to vector<64x32xf32>
    %256 = arith.mulf %254, %255 : vector<64x32xf32>
    %257 = arith.addf %237, %256 : vector<64x32xf32>
    %258 = vector.extract_strided_slice %1 {offsets = [17, 0], sizes = [1, 32], strides = [1, 1]} : vector<20x32xf32> to vector<1x32xf32>
    %259 = vector.broadcast %258 : vector<1x32xf32> to vector<64x32xf32>
    %260 = arith.mulf %232, %259 : vector<64x32xf32>
    %261 = arith.truncf %260 : vector<64x32xf32> to vector<64x32xbf16>
    %cst_40 = arith.constant dense<0.000000e+00> : vector<64x64xf32>
    %262 = tpu.matmul %261, %234, %cst_40 {dimension_numbers = #tpu.dot_dimension_numbers<[1], [1], [0], [0], [0, 0, 1, 0], [], []>} : vector<64x32xbf16>, vector<64x32xbf16>, vector<64x64xf32> -> vector<64x64xf32>
    %cst_41 = arith.constant dense<0xFF800000> : vector<64xf32>
    %263 = vector.multi_reduction <maximumf>, %262, %cst_41 [1] : vector<64x64xf32> to vector<64xf32>
    %264 = vector.shape_cast %263 : vector<64xf32> to vector<64x1xf32>
    %265 = vector.broadcast %264 : vector<64x1xf32> to vector<64x64xf32>
    %266 = arith.subf %262, %265 : vector<64x64xf32>
    %267 = math.exp %266 : vector<64x64xf32>
    %cst_42 = arith.constant dense<0.000000e+00> : vector<64xf32>
    %268 = vector.multi_reduction <add>, %267, %cst_42 [1] : vector<64x64xf32> to vector<64xf32>
    %269 = vector.shape_cast %268 : vector<64xf32> to vector<64x1xf32>
    %270 = tpu.reciprocal %269 {approx = true} : vector<64x1xf32> -> vector<64x1xf32>
    %271 = vector.broadcast %270 : vector<64x1xf32> to vector<64x64xf32>
    %272 = arith.mulf %267, %271 : vector<64x64xf32>
    %273 = arith.truncf %272 : vector<64x64xf32> to vector<64x64xbf16>
    %cst_43 = arith.constant dense<0.000000e+00> : vector<64x32xf32>
    %274 = tpu.matmul %273, %236, %cst_43 {dimension_numbers = #tpu.dot_dimension_numbers<[1], [0], [0], [1], [0, 0, 1, 1], [], []>} : vector<64x64xbf16>, vector<64x32xbf16>, vector<64x32xf32> -> vector<64x32xf32>
    %275 = vector.broadcast %258 : vector<1x32xf32> to vector<64x32xf32>
    %276 = arith.mulf %274, %275 : vector<64x32xf32>
    %277 = arith.addf %257, %276 : vector<64x32xf32>
    %278 = vector.extract_strided_slice %1 {offsets = [18, 0], sizes = [1, 32], strides = [1, 1]} : vector<20x32xf32> to vector<1x32xf32>
    %279 = vector.broadcast %278 : vector<1x32xf32> to vector<64x32xf32>
    %280 = arith.mulf %232, %279 : vector<64x32xf32>
    %281 = arith.truncf %280 : vector<64x32xf32> to vector<64x32xbf16>
    %cst_44 = arith.constant dense<0.000000e+00> : vector<64x64xf32>
    %282 = tpu.matmul %281, %234, %cst_44 {dimension_numbers = #tpu.dot_dimension_numbers<[1], [1], [0], [0], [0, 0, 1, 0], [], []>} : vector<64x32xbf16>, vector<64x32xbf16>, vector<64x64xf32> -> vector<64x64xf32>
    %cst_45 = arith.constant dense<0xFF800000> : vector<64xf32>
    %283 = vector.multi_reduction <maximumf>, %282, %cst_45 [1] : vector<64x64xf32> to vector<64xf32>
    %284 = vector.shape_cast %283 : vector<64xf32> to vector<64x1xf32>
    %285 = vector.broadcast %284 : vector<64x1xf32> to vector<64x64xf32>
    %286 = arith.subf %282, %285 : vector<64x64xf32>
    %287 = math.exp %286 : vector<64x64xf32>
    %cst_46 = arith.constant dense<0.000000e+00> : vector<64xf32>
    %288 = vector.multi_reduction <add>, %287, %cst_46 [1] : vector<64x64xf32> to vector<64xf32>
    %289 = vector.shape_cast %288 : vector<64xf32> to vector<64x1xf32>
    %290 = tpu.reciprocal %289 {approx = true} : vector<64x1xf32> -> vector<64x1xf32>
    %291 = vector.broadcast %290 : vector<64x1xf32> to vector<64x64xf32>
    %292 = arith.mulf %287, %291 : vector<64x64xf32>
    %293 = arith.truncf %292 : vector<64x64xf32> to vector<64x64xbf16>
    %cst_47 = arith.constant dense<0.000000e+00> : vector<64x32xf32>
    %294 = tpu.matmul %293, %236, %cst_47 {dimension_numbers = #tpu.dot_dimension_numbers<[1], [0], [0], [1], [0, 0, 1, 1], [], []>} : vector<64x64xbf16>, vector<64x32xbf16>, vector<64x32xf32> -> vector<64x32xf32>
    %295 = vector.broadcast %278 : vector<1x32xf32> to vector<64x32xf32>
    %296 = arith.mulf %294, %295 : vector<64x32xf32>
    %297 = arith.addf %277, %296 : vector<64x32xf32>
    %298 = vector.extract_strided_slice %1 {offsets = [19, 0], sizes = [1, 32], strides = [1, 1]} : vector<20x32xf32> to vector<1x32xf32>
    %299 = vector.broadcast %298 : vector<1x32xf32> to vector<64x32xf32>
    %300 = arith.mulf %232, %299 : vector<64x32xf32>
    %301 = arith.truncf %300 : vector<64x32xf32> to vector<64x32xbf16>
    %cst_48 = arith.constant dense<0.000000e+00> : vector<64x64xf32>
    %302 = tpu.matmul %301, %234, %cst_48 {dimension_numbers = #tpu.dot_dimension_numbers<[1], [1], [0], [0], [0, 0, 1, 0], [], []>} : vector<64x32xbf16>, vector<64x32xbf16>, vector<64x64xf32> -> vector<64x64xf32>
    %cst_49 = arith.constant dense<0xFF800000> : vector<64xf32>
    %303 = vector.multi_reduction <maximumf>, %302, %cst_49 [1] : vector<64x64xf32> to vector<64xf32>
    %304 = vector.shape_cast %303 : vector<64xf32> to vector<64x1xf32>
    %305 = vector.broadcast %304 : vector<64x1xf32> to vector<64x64xf32>
    %306 = arith.subf %302, %305 : vector<64x64xf32>
    %307 = math.exp %306 : vector<64x64xf32>
    %cst_50 = arith.constant dense<0.000000e+00> : vector<64xf32>
    %308 = vector.multi_reduction <add>, %307, %cst_50 [1] : vector<64x64xf32> to vector<64xf32>
    %309 = vector.shape_cast %308 : vector<64xf32> to vector<64x1xf32>
    %310 = tpu.reciprocal %309 {approx = true} : vector<64x1xf32> -> vector<64x1xf32>
    %311 = vector.broadcast %310 : vector<64x1xf32> to vector<64x64xf32>
    %312 = arith.mulf %307, %311 : vector<64x64xf32>
    %313 = arith.truncf %312 : vector<64x64xf32> to vector<64x64xbf16>
    %cst_51 = arith.constant dense<0.000000e+00> : vector<64x32xf32>
    %314 = tpu.matmul %313, %236, %cst_51 {dimension_numbers = #tpu.dot_dimension_numbers<[1], [0], [0], [1], [0, 0, 1, 1], [], []>} : vector<64x64xbf16>, vector<64x32xbf16>, vector<64x32xf32> -> vector<64x32xf32>
    %315 = vector.broadcast %298 : vector<1x32xf32> to vector<64x32xf32>
    %316 = arith.mulf %314, %315 : vector<64x32xf32>
    %317 = arith.addf %297, %316 : vector<64x32xf32>
    %318 = tpu.concatenate %231, %317 in 0 : vector<64x32xf32>, vector<64x32xf32> -> vector<128x32xf32>
    %319 = arith.truncf %318 : vector<128x32xf32> to vector<128x32xbf16>
    %c0_52 = arith.constant 0 : index
    %c0_53 = arith.constant 0 : index
    %320 = vector.load %arg4[%c0_52, %c0_53] : memref<32x32xbf16, #tpu.memory_space<vmem>>, vector<32x32xbf16>
    %cst_54 = arith.constant dense<0.000000e+00> : vector<128x32xf32>
    %321 = tpu.matmul %319, %320, %cst_54 {dimension_numbers = #tpu.dot_dimension_numbers<[1], [0], [0], [1], [0, 0, 1, 1], [], []>} : vector<128x32xbf16>, vector<32x32xbf16>, vector<128x32xf32> -> vector<128x32xf32>
    %322 = vector.broadcast %8 : vector<1x32xf32> to vector<128x32xf32>
    %323 = arith.addf %321, %322 : vector<128x32xf32>
    %324 = arith.addf %0, %323 : vector<128x32xf32>
    %cst_55 = arith.constant dense<0.000000e+00> : vector<128xf32>
    %325 = vector.multi_reduction <add>, %324, %cst_55 [1] : vector<128x32xf32> to vector<128xf32>
    %326 = vector.shape_cast %325 : vector<128xf32> to vector<128x1xf32>
    %cst_56 = arith.constant 3.200000e+01 : f32
    %327 = vector.broadcast %cst_56 : f32 to vector<128x1xf32>
    %328 = arith.divf %326, %327 : vector<128x1xf32>
    %329 = vector.broadcast %328 : vector<128x1xf32> to vector<128x32xf32>
    %330 = arith.subf %324, %329 : vector<128x32xf32>
    %331 = arith.mulf %330, %330 : vector<128x32xf32>
    %cst_57 = arith.constant dense<0.000000e+00> : vector<128xf32>
    %332 = vector.multi_reduction <add>, %331, %cst_57 [1] : vector<128x32xf32> to vector<128xf32>
    %333 = vector.shape_cast %332 : vector<128xf32> to vector<128x1xf32>
    %cst_58 = arith.constant 3.200000e+01 : f32
    %334 = vector.broadcast %cst_58 : f32 to vector<128x1xf32>
    %335 = arith.divf %333, %334 : vector<128x1xf32>
    %336 = vector.broadcast %328 : vector<128x1xf32> to vector<128x32xf32>
    %337 = arith.subf %324, %336 : vector<128x32xf32>
    %cst_59 = arith.constant 9.99999974E-6 : f32
    %338 = vector.broadcast %cst_59 : f32 to vector<128x1xf32>
    %339 = arith.addf %335, %338 : vector<128x1xf32>
    %340 = math.rsqrt %339 : vector<128x1xf32>
    %341 = vector.broadcast %340 : vector<128x1xf32> to vector<128x32xf32>
    %342 = arith.mulf %337, %341 : vector<128x32xf32>
    %343 = vector.broadcast %6 : vector<1x32xf32> to vector<128x32xf32>
    %344 = arith.mulf %342, %343 : vector<128x32xf32>
    %345 = vector.broadcast %7 : vector<1x32xf32> to vector<128x32xf32>
    %346 = arith.addf %344, %345 : vector<128x32xf32>
    %347 = arith.truncf %346 : vector<128x32xf32> to vector<128x32xbf16>
    %c0_60 = arith.constant 0 : index
    %c0_61 = arith.constant 0 : index
    %348 = vector.load %arg5[%c0_60, %c0_61] : memref<32x128xbf16, #tpu.memory_space<vmem>>, vector<32x128xbf16>
    %cst_62 = arith.constant dense<0.000000e+00> : vector<128x128xf32>
    %349 = tpu.matmul %347, %348, %cst_62 {dimension_numbers = #tpu.dot_dimension_numbers<[1], [0], [0], [1], [0, 0, 1, 1], [], []>} : vector<128x32xbf16>, vector<32x128xbf16>, vector<128x128xf32> -> vector<128x128xf32>
    %c0_63 = arith.constant 0 : index
    %c0_64 = arith.constant 0 : index
    %350 = vector.load %arg2[%c0_63, %c0_64] : memref<1x128xf32, #tpu.memory_space<vmem>>, vector<1x128xf32>
    %351 = vector.broadcast %350 : vector<1x128xf32> to vector<128x128xf32>
    %352 = arith.addf %349, %351 : vector<128x128xf32>
    %353 = arith.mulf %352, %352 : vector<128x128xf32>
    %354 = arith.mulf %352, %353 : vector<128x128xf32>
    %cst_65 = arith.constant 4.471500e-02 : f32
    %355 = vector.broadcast %cst_65 : f32 to vector<128x128xf32>
    %356 = arith.mulf %355, %354 : vector<128x128xf32>
    %357 = arith.addf %352, %356 : vector<128x128xf32>
    %cst_66 = arith.constant 0.797884583 : f32
    %358 = vector.broadcast %cst_66 : f32 to vector<128x128xf32>
    %359 = arith.mulf %358, %357 : vector<128x128xf32>
    %360 = math.tanh %359 : vector<128x128xf32>
    %cst_67 = arith.constant 1.000000e+00 : f32
    %361 = vector.broadcast %cst_67 : f32 to vector<128x128xf32>
    %362 = arith.addf %361, %360 : vector<128x128xf32>
    %cst_68 = arith.constant 5.000000e-01 : f32
    %363 = vector.broadcast %cst_68 : f32 to vector<128x128xf32>
    %364 = arith.mulf %363, %362 : vector<128x128xf32>
    %365 = arith.mulf %352, %364 : vector<128x128xf32>
    %366 = arith.truncf %365 : vector<128x128xf32> to vector<128x128xbf16>
    %c0_69 = arith.constant 0 : index
    %c0_70 = arith.constant 0 : index
    %367 = vector.load %arg6[%c0_69, %c0_70] : memref<128x32xbf16, #tpu.memory_space<vmem>>, vector<128x32xbf16>
    %cst_71 = arith.constant dense<0.000000e+00> : vector<128x32xf32>
    %368 = tpu.matmul %366, %367, %cst_71 {dimension_numbers = #tpu.dot_dimension_numbers<[1], [0], [0], [1], [0, 0, 1, 1], [], []>} : vector<128x128xbf16>, vector<128x32xbf16>, vector<128x32xf32> -> vector<128x32xf32>
    %369 = vector.broadcast %9 : vector<1x32xf32> to vector<128x32xf32>
    %370 = arith.addf %368, %369 : vector<128x32xf32>
    %371 = arith.addf %324, %370 : vector<128x32xf32>
    %c0_72 = arith.constant 0 : index
    %c0_73 = arith.constant 0 : index
    %372 = vector.load %arg7[%c0_72, %c0_73] : memref<128x32xf32, #tpu.memory_space<vmem>>, vector<128x32xf32>
    tpu.vector_store %arg7[%c0_72, %c0_73], %371 {strides = array<i32>} : memref<128x32xf32, #tpu.memory_space<vmem>>, vector<128x32xf32>,
    return
  }
}

</mosaic_0001>

<llo_original>
// kernel: cvt_block_forward.1
$region0: #{cvt_block_forward.1}
  #allocation0 [shape = 'u32[]', space=smem, size = 0x4, offset = 0x4, fixed_abs, tag = 'smem constant byte address 0x4 - core index']
  #allocation1 [shape = 'u32[144,128]{1,0:T(1,128)}', space=vmem, size = 0x12000, scoped, tag = 'internal scratch']
  %s0 = inlined_call_operand.vmem [shape: f32[128,32], index: 0, kind: input, shape index: {}]
  %s1 = inlined_call_operand.vmem [shape: f32[20,32], index: 1, kind: input, shape index: {}]
  %s2 = inlined_call_operand.vmem [shape: f32[1,128], index: 2, kind: input, shape index: {}]
  %s3 = inlined_call_operand.vmem [shape: bf16[32,96], index: 3, kind: input, shape index: {}]
  %s4 = inlined_call_operand.vmem [shape: bf16[32,32], index: 4, kind: input, shape index: {}]
  %s5 = inlined_call_operand.vmem [shape: bf16[32,128], index: 5, kind: input, shape index: {}]
  %s6 = inlined_call_operand.vmem [shape: bf16[128,32], index: 6, kind: input, shape index: {}]
  %s7 = inlined_call_operand.vmem [shape: f32[128,32], index: 7, kind: output, shape index: {}]
  %s8 = sld [smem:[#allocation0]]
  $region38: #{cvt_block_forward.1} parent=0
    _
  %s10 = ssub.s32 1, %s8
  %s11 = scalar_select 0, %s10, %s8
  // Predicated region
  $region2: #{cvt_block_forward.1} parent=0 // pred_check
    _
  $region3: #{cvt_block_forward.1} parent=0 // pred_check_branch
    %13 = sbr.rel (0) target = $region5
  $region4: #{cvt_block_forward.1} parent=0 // pred_region
    _
  $region5: #{cvt_block_forward.1} parent=0 // pred_fallthru
    _
  // Predicated region
  $region6: #{cvt_block_forward.1} parent=0 // pred_check
    _
  $region7: #{cvt_block_forward.1} parent=0 // pred_check_branch
    %15 = sbr.rel (0) target = $region9
  $region8: #{cvt_block_forward.1} parent=0 // pred_region
    _
  $region9: #{cvt_block_forward.1} parent=0 // pred_fallthru
    _
  // Predicated region
  $region10: #{cvt_block_forward.1} parent=0 // pred_check
    _
  $region11: #{cvt_block_forward.1} parent=0 // pred_check_branch
    %17 = sbr.rel (0) target = $region13
  $region12: #{cvt_block_forward.1} parent=0 // pred_region
    _
  $region13: #{cvt_block_forward.1} parent=0 // pred_fallthru
    _
  // Predicated region
  $region14: #{cvt_block_forward.1} parent=0 // pred_check
    _
  $region15: #{cvt_block_forward.1} parent=0 // pred_check_branch
    %19 = sbr.rel (0) target = $region17
  $region16: #{cvt_block_forward.1} parent=0 // pred_region
    _
  $region17: #{cvt_block_forward.1} parent=0 // pred_fallthru
    _
  // Predicated region
  $region18: #{cvt_block_forward.1} parent=0 // pred_check
    _
  $region19: #{cvt_block_forward.1} parent=0 // pred_check_branch
    %21 = sbr.rel (0) target = $region21
  $region20: #{cvt_block_forward.1} parent=0 // pred_region
    _
  $region21: #{cvt_block_forward.1} parent=0 // pred_fallthru
    _
  // Predicated region
  $region22: #{cvt_block_forward.1} parent=0 // pred_check
    _
  $region23: #{cvt_block_forward.1} parent=0 // pred_check_branch
    %23 = sbr.rel (0) target = $region25
  $region24: #{cvt_block_forward.1} parent=0 // pred_region
    _
  $region25: #{cvt_block_forward.1} parent=0 // pred_fallthru
    _
  // Predicated region
  $region26: #{cvt_block_forward.1} parent=0 // pred_check
    _
  $region27: #{cvt_block_forward.1} parent=0 // pred_check_branch
    %25 = sbr.rel (0) target = $region29
  $region28: #{cvt_block_forward.1} parent=0 // pred_region
    _
  $region29: #{cvt_block_forward.1} parent=0 // pred_fallthru
    _
  %v27 = vld [vmem:[%s0] sm:$0xff]
  %v28 = vld [vmem:[%s0 + $0x8] sm:$0xff]
  %v29 = vld [vmem:[%s0 + $0x10] sm:$0xff]
  %v30 = vld [vmem:[%s0 + $0x18] sm:$0xff]
  %v31 = vld [vmem:[%s0 + $0x20] sm:$0xff]
  %v32 = vld [vmem:[%s0 + $0x28] sm:$0xff]
  %v33 = vld [vmem:[%s0 + $0x30] sm:$0xff]
  %v34 = vld [vmem:[%s0 + $0x38] sm:$0xff]
  %v35 = vld [vmem:[%s0 + $0x40] sm:$0xff]
  %v36 = vld [vmem:[%s0 + $0x48] sm:$0xff]
  %v37 = vld [vmem:[%s0 + $0x50] sm:$0xff]
  %v38 = vld [vmem:[%s0 + $0x58] sm:$0xff]
  %v39 = vld [vmem:[%s0 + $0x60] sm:$0xff]
  %v40 = vld [vmem:[%s0 + $0x68] sm:$0xff]
  %v41 = vld [vmem:[%s0 + $0x70] sm:$0xff]
  %v42 = vld [vmem:[%s0 + $0x78] sm:$0xff]
  %v43 = vld [vmem:[%s1] sm:$0xff]
  %v44 = vld [vmem:[%s1 + $0x8] sm:$0xff]
  %v45 = vld [vmem:[%s1 + $0x10] sm:$0xf]
  %vm46 = vcmask 261120
  %v47 = vsel %vm46, %v27, 0.0
  %48 = vadd.xlane.f32.xlu0 %v47
  %v49 = vpop.xlane.xlu0 %48
  %v50 = vsel %vm46, %v28, 0.0
  %51 = vadd.xlane.f32.xlu0 %v50
  %v52 = vpop.xlane.xlu0 %51
  %v53 = vsel %vm46, %v29, 0.0
  %54 = vadd.xlane.f32.xlu0 %v53
  %v55 = vpop.xlane.xlu0 %54
  %v56 = vsel %vm46, %v30, 0.0
  %57 = vadd.xlane.f32.xlu0 %v56
  %v58 = vpop.xlane.xlu0 %57
  %v59 = vsel %vm46, %v31, 0.0
  %60 = vadd.xlane.f32.xlu0 %v59
  %v61 = vpop.xlane.xlu0 %60
  %v62 = vsel %vm46, %v32, 0.0
  %63 = vadd.xlane.f32.xlu0 %v62
  %v64 = vpop.xlane.xlu0 %63
  %v65 = vsel %vm46, %v33, 0.0
  %66 = vadd.xlane.f32.xlu0 %v65
  %v67 = vpop.xlane.xlu0 %66
  %v68 = vsel %vm46, %v34, 0.0
  %69 = vadd.xlane.f32.xlu0 %v68
  %v70 = vpop.xlane.xlu0 %69
  %v71 = vsel %vm46, %v35, 0.0
  %72 = vadd.xlane.f32.xlu0 %v71
  %v73 = vpop.xlane.xlu0 %72
  %v74 = vsel %vm46, %v36, 0.0
  %75 = vadd.xlane.f32.xlu0 %v74
  %v76 = vpop.xlane.xlu0 %75
  %v77 = vsel %vm46, %v37, 0.0
  %78 = vadd.xlane.f32.xlu0 %v77
  %v79 = vpop.xlane.xlu0 %78
  %v80 = vsel %vm46, %v38, 0.0
  %81 = vadd.xlane.f32.xlu0 %v80
  %v82 = vpop.xlane.xlu0 %81
  %v83 = vsel %vm46, %v39, 0.0
  %84 = vadd.xlane.f32.xlu0 %v83
  %v85 = vpop.xlane.xlu0 %84
  %v86 = vsel %vm46, %v40, 0.0
  %87 = vadd.xlane.f32.xlu0 %v86
  %v88 = vpop.xlane.xlu0 %87
  %v89 = vsel %vm46, %v41, 0.0
  %90 = vadd.xlane.f32.xlu0 %v89
  %v91 = vpop.xlane.xlu0 %90
  %v92 = vsel %vm46, %v42, 0.0
  %93 = vadd.xlane.f32.xlu0 %v92
  %v94 = vpop.xlane.xlu0 %93
  %v95 = vrcp.pop 32.0
  %v96 = vmul.f32 %v49, %v95
  %v97 = vmul.f32 %v52, %v95
  %v98 = vmul.f32 %v55, %v95
  %v99 = vmul.f32 %v58, %v95
  %v100 = vmul.f32 %v61, %v95
  %v101 = vmul.f32 %v64, %v95
  %v102 = vmul.f32 %v67, %v95
  %v103 = vmul.f32 %v70, %v95
  %v104 = vmul.f32 %v73, %v95
  %v105 = vmul.f32 %v76, %v95
  %v106 = vmul.f32 %v79, %v95
  %v107 = vmul.f32 %v82, %v95
  %v108 = vmul.f32 %v85, %v95
  %v109 = vmul.f32 %v88, %v95
  %v110 = vmul.f32 %v91, %v95
  %v111 = vmul.f32 %v94, %v95
  %v112 = vsub.f32 %v27, %v96
  %v113 = vsub.f32 %v28, %v97
  %v114 = vsub.f32 %v29, %v98
  %v115 = vsub.f32 %v30, %v99
  %v116 = vsub.f32 %v31, %v100
  %v117 = vsub.f32 %v32, %v101
  %v118 = vsub.f32 %v33, %v102
  %v119 = vsub.f32 %v34, %v103
  %v120 = vsub.f32 %v35, %v104
  %v121 = vsub.f32 %v36, %v105
  %v122 = vsub.f32 %v37, %v106
  %v123 = vsub.f32 %v38, %v107
  %v124 = vsub.f32 %v39, %v108
  %v125 = vsub.f32 %v40, %v109
  %v126 = vsub.f32 %v41, %v110
  %v127 = vsub.f32 %v42, %v111
  %v128 = vmul.f32 %v112, %v112
  %v129 = vmul.f32 %v113, %v113
  %v130 = vmul.f32 %v114, %v114
  %v131 = vmul.f32 %v115, %v115
  %v132 = vmul.f32 %v116, %v116
  %v133 = vmul.f32 %v117, %v117
  %v134 = vmul.f32 %v118, %v118
  %v135 = vmul.f32 %v119, %v119
  %v136 = vmul.f32 %v120, %v120
  %v137 = vmul.f32 %v121, %v121
  %v138 = vmul.f32 %v122, %v122
  %v139 = vmul.f32 %v123, %v123
  %v140 = vmul.f32 %v124, %v124
  %v141 = vmul.f32 %v125, %v125
  %v142 = vmul.f32 %v126, %v126
  %v143 = vmul.f32 %v127, %v127
  %v144 = vsel %vm46, %v128, 0.0
  %145 = vadd.xlane.f32.xlu0 %v144
  %v146 = vpop.xlane.xlu0 %145
  %v147 = vsel %vm46, %v129, 0.0
  %148 = vadd.xlane.f32.xlu0 %v147
  %v149 = vpop.xlane.xlu0 %148
  %v150 = vsel %vm46, %v130, 0.0
  %151 = vadd.xlane.f32.xlu0 %v150
  %v152 = vpop.xlane.xlu0 %151
  %v153 = vsel %vm46, %v131, 0.0
  %154 = vadd.xlane.f32.xlu0 %v153
  %v155 = vpop.xlane.xlu0 %154
  %v156 = vsel %vm46, %v132, 0.0
  %157 = vadd.xlane.f32.xlu0 %v156
  %v158 = vpop.xlane.xlu0 %157
  %v159 = vsel %vm46, %v133, 0.0
  %160 = vadd.xlane.f32.xlu0 %v159
  %v161 = vpop.xlane.xlu0 %160
  %v162 = vsel %vm46, %v134, 0.0
  %163 = vadd.xlane.f32.xlu0 %v162
  %v164 = vpop.xlane.xlu0 %163
  %v165 = vsel %vm46, %v135, 0.0
  %166 = vadd.xlane.f32.xlu0 %v165
  %v167 = vpop.xlane.xlu0 %166
  %v168 = vsel %vm46, %v136, 0.0
  %169 = vadd.xlane.f32.xlu0 %v168
  %v170 = vpop.xlane.xlu0 %169
  %v171 = vsel %vm46, %v137, 0.0
  %172 = vadd.xlane.f32.xlu0 %v171
  %v173 = vpop.xlane.xlu0 %172
  %v174 = vsel %vm46, %v138, 0.0
  %175 = vadd.xlane.f32.xlu0 %v174
  %v176 = vpop.xlane.xlu0 %175
  %v177 = vsel %vm46, %v139, 0.0
  %178 = vadd.xlane.f32.xlu0 %v177
  %v179 = vpop.xlane.xlu0 %178
  %v180 = vsel %vm46, %v140, 0.0
  %181 = vadd.xlane.f32.xlu0 %v180
  %v182 = vpop.xlane.xlu0 %181
  %v183 = vsel %vm46, %v141, 0.0
  %184 = vadd.xlane.f32.xlu0 %v183
  %v185 = vpop.xlane.xlu0 %184
  %v186 = vsel %vm46, %v142, 0.0
  %187 = vadd.xlane.f32.xlu0 %v186
  %v188 = vpop.xlane.xlu0 %187
  %v189 = vsel %vm46, %v143, 0.0
  %190 = vadd.xlane.f32.xlu0 %v189
  %v191 = vpop.xlane.xlu0 %190
  %v192 = vmul.f32 %v146, %v95
  %v193 = vmul.f32 %v149, %v95
  %v194 = vmul.f32 %v152, %v95
  %v195 = vmul.f32 %v155, %v95
  %v196 = vmul.f32 %v158, %v95
  %v197 = vmul.f32 %v161, %v95
  %v198 = vmul.f32 %v164, %v95
  %v199 = vmul.f32 %v167, %v95
  %v200 = vmul.f32 %v170, %v95
  %v201 = vmul.f32 %v173, %v95
  %v202 = vmul.f32 %v176, %v95
  %v203 = vmul.f32 %v179, %v95
  %v204 = vmul.f32 %v182, %v95
  %v205 = vmul.f32 %v185, %v95
  %v206 = vmul.f32 %v188, %v95
  %v207 = vmul.f32 %v191, %v95
  %v208 = vadd.f32 %v192, 1e-05
  %v209 = vadd.f32 %v193, 1e-05
  %v210 = vadd.f32 %v194, 1e-05
  %v211 = vadd.f32 %v195, 1e-05
  %v212 = vadd.f32 %v196, 1e-05
  %v213 = vadd.f32 %v197, 1e-05
  %v214 = vadd.f32 %v198, 1e-05
  %v215 = vadd.f32 %v199, 1e-05
  %v216 = vadd.f32 %v200, 1e-05
  %v217 = vadd.f32 %v201, 1e-05
  %v218 = vadd.f32 %v202, 1e-05
  %v219 = vadd.f32 %v203, 1e-05
  %v220 = vadd.f32 %v204, 1e-05
  %v221 = vadd.f32 %v205, 1e-05
  %v222 = vadd.f32 %v206, 1e-05
  %v223 = vadd.f32 %v207, 1e-05
  %v224 = vrsqrt.pop %v208
  %v225 = vrsqrt.pop %v209
  %v226 = vrsqrt.pop %v210
  %v227 = vrsqrt.pop %v211
  %v228 = vrsqrt.pop %v212
  %v229 = vrsqrt.pop %v213
  %v230 = vrsqrt.pop %v214
  %v231 = vrsqrt.pop %v215
  %v232 = vrsqrt.pop %v216
  %v233 = vrsqrt.pop %v217
  %v234 = vrsqrt.pop %v218
  %v235 = vrsqrt.pop %v219
  %v236 = vrsqrt.pop %v220
  %v237 = vrsqrt.pop %v221
  %v238 = vrsqrt.pop %v222
  %v239 = vrsqrt.pop %v223
  %v240 = vmul.f32 %v112, %v224
  %v241 = vmul.f32 %v113, %v225
  %v242 = vmul.f32 %v114, %v226
  %v243 = vmul.f32 %v115, %v227
  %v244 = vmul.f32 %v116, %v228
  %v245 = vmul.f32 %v117, %v229
  %v246 = vmul.f32 %v118, %v230
  %v247 = vmul.f32 %v119, %v231
  %v248 = vmul.f32 %v120, %v232
  %v249 = vmul.f32 %v121, %v233
  %v250 = vmul.f32 %v122, %v234
  %v251 = vmul.f32 %v123, %v235
  %v252 = vmul.f32 %v124, %v236
  %v253 = vmul.f32 %v125, %v237
  %v254 = vmul.f32 %v126, %v238
  %v255 = vmul.f32 %v127, %v239
  %v256 = vlaneseq
  %v257 = vshrl.u32 %v256, 7
  %v258 = vsub.s32 2, %v257
  %v259 = vrot.slane %v44, %v258
  %v260 = vmul.f32 %v240, %v259
  %v261 = vmul.f32 %v241, %v259
  %v262 = vmul.f32 %v242, %v259
  %v263 = vmul.f32 %v243, %v259
  %v264 = vmul.f32 %v244, %v259
  %v265 = vmul.f32 %v245, %v259
  %v266 = vmul.f32 %v246, %v259
  %v267 = vmul.f32 %v247, %v259
  %v268 = vmul.f32 %v248, %v259
  %v269 = vmul.f32 %v249, %v259
  %v270 = vmul.f32 %v250, %v259
  %v271 = vmul.f32 %v251, %v259
  %v272 = vmul.f32 %v252, %v259
  %v273 = vmul.f32 %v253, %v259
  %v274 = vmul.f32 %v254, %v259
  %v275 = vmul.f32 %v255, %v259
  %v276 = vlaneseq
  %v277 = vshrl.u32 %v276, 7
  %v278 = vsub.s32 3, %v277
  %v279 = vrot.slane %v44, %v278
  %v280 = vadd.f32 %v260, %v279
  %v281 = vadd.f32 %v261, %v279
  %v282 = vadd.f32 %v262, %v279
  %v283 = vadd.f32 %v263, %v279
  %v284 = vadd.f32 %v264, %v279
  %v285 = vadd.f32 %v265, %v279
  %v286 = vadd.f32 %v266, %v279
  %v287 = vadd.f32 %v267, %v279
  %v288 = vadd.f32 %v268, %v279
  %v289 = vadd.f32 %v269, %v279
  %v290 = vadd.f32 %v270, %v279
  %v291 = vadd.f32 %v271, %v279
  %v292 = vadd.f32 %v272, %v279
  %v293 = vadd.f32 %v273, %v279
  %v294 = vadd.f32 %v274, %v279
  %v295 = vadd.f32 %v275, %v279
  %v296 = vlaneseq
  %v297 = vshrl.u32 %v296, 7
  %v298 = vadd.s32 %v297, 8
  %v299 = vadd.s32 %v297, 16
  %v300 = vadd.s32 %v297, 24
  %v301 = vadd.s32 %v297, 32
  %v302 = vadd.s32 %v297, 40
  %v303 = vadd.s32 %v297, 48
  %v304 = vadd.s32 %v297, 56
  %v305 = vadd.s32 %v297, 64
  %v306 = vadd.s32 %v297, 72
  %v307 = vadd.s32 %v297, 80
  %v308 = vadd.s32 %v297, 88
  %v309 = vadd.s32 %v297, 96
  %v310 = vadd.s32 %v297, 104
  %v311 = vadd.s32 %v297, 112
  %v312 = vadd.s32 %v297, 120
  %v313 = vand.u32 %v297, 7
  %v314 = vand.u32 %v298, 7
  %v315 = vand.u32 %v299, 7
  %v316 = vand.u32 %v300, 7
  %v317 = vand.u32 %v301, 7
  %v318 = vand.u32 %v302, 7
  %v319 = vand.u32 %v303, 7
  %v320 = vand.u32 %v304, 7
  %v321 = vand.u32 %v305, 7
  %v322 = vand.u32 %v306, 7
  %v323 = vand.u32 %v307, 7
  %v324 = vand.u32 %v308, 7
  %v325 = vand.u32 %v309, 7
  %v326 = vand.u32 %v310, 7
  %v327 = vand.u32 %v311, 7
  %v328 = vand.u32 %v312, 7
  %v329 = vand.u32 %v297, 63
  %v330 = vand.u32 %v298, 63
  %v331 = vand.u32 %v299, 63
  %v332 = vand.u32 %v300, 63
  %v333 = vand.u32 %v301, 63
  %v334 = vand.u32 %v302, 63
  %v335 = vand.u32 %v303, 63
  %v336 = vand.u32 %v304, 63
  %v337 = vand.u32 %v305, 63
  %v338 = vand.u32 %v306, 63
  %v339 = vand.u32 %v307, 63
  %v340 = vand.u32 %v308, 63
  %v341 = vand.u32 %v309, 63
  %v342 = vand.u32 %v310, 63
  %v343 = vand.u32 %v311, 63
  %v344 = vand.u32 %v312, 63
  %vm345 = vcmp.ge.s32.totalorder %v313, 1
  %vm346 = vcmp.ge.s32.totalorder %v314, 1
  %vm347 = vcmp.ge.s32.totalorder %v315, 1
  %vm348 = vcmp.ge.s32.totalorder %v316, 1
  %vm349 = vcmp.ge.s32.totalorder %v317, 1
  %vm350 = vcmp.ge.s32.totalorder %v318, 1
  %vm351 = vcmp.ge.s32.totalorder %v319, 1
  %vm352 = vcmp.ge.s32.totalorder %v320, 1
  %vm353 = vcmp.ge.s32.totalorder %v321, 1
  %vm354 = vcmp.ge.s32.totalorder %v322, 1
  %vm355 = vcmp.ge.s32.totalorder %v323, 1
  %vm356 = vcmp.ge.s32.totalorder %v324, 1
  %vm357 = vcmp.ge.s32.totalorder %v325, 1
  %vm358 = vcmp.ge.s32.totalorder %v326, 1
  %vm359 = vcmp.ge.s32.totalorder %v327, 1
  %vm360 = vcmp.ge.s32.totalorder %v328, 1
  %vm361 = vcmp.le.s32.totalorder %v313, 6
  %vm362 = vcmp.le.s32.totalorder %v314, 6
  %vm363 = vcmp.le.s32.totalorder %v315, 6
  %vm364 = vcmp.le.s32.totalorder %v316, 6
  %vm365 = vcmp.le.s32.totalorder %v317, 6
  %vm366 = vcmp.le.s32.totalorder %v318, 6
  %vm367 = vcmp.le.s32.totalorder %v319, 6
  %vm368 = vcmp.le.s32.totalorder %v320, 6
  %vm369 = vcmp.le.s32.totalorder %v321, 6
  %vm370 = vcmp.le.s32.totalorder %v322, 6
  %vm371 = vcmp.le.s32.totalorder %v323, 6
  %vm372 = vcmp.le.s32.totalorder %v324, 6
  %vm373 = vcmp.le.s32.totalorder %v325, 6
  %vm374 = vcmp.le.s32.totalorder %v326, 6
  %vm375 = vcmp.le.s32.totalorder %v327, 6
  %vm376 = vcmp.le.s32.totalorder %v328, 6
  %vm377 = vcmp.ge.s32.totalorder %v329, 8
  %vm378 = vcmp.ge.s32.totalorder %v330, 8
  %vm379 = vcmp.ge.s32.totalorder %v331, 8
  %vm380 = vcmp.ge.s32.totalorder %v332, 8
  %vm381 = vcmp.ge.s32.totalorder %v333, 8
  %vm382 = vcmp.ge.s32.totalorder %v334, 8
  %vm383 = vcmp.ge.s32.totalorder %v335, 8
  %vm384 = vcmp.ge.s32.totalorder %v336, 8
  %vm385 = vcmp.ge.s32.totalorder %v337, 8
  %vm386 = vcmp.ge.s32.totalorder %v338, 8
  %vm387 = vcmp.ge.s32.totalorder %v339, 8
  %vm388 = vcmp.ge.s32.totalorder %v340, 8
  %vm389 = vcmp.ge.s32.totalorder %v341, 8
  %vm390 = vcmp.ge.s32.totalorder %v342, 8
  %vm391 = vcmp.ge.s32.totalorder %v343, 8
  %vm392 = vcmp.ge.s32.totalorder %v344, 8
  %vm393 = vcmp.lt.s32.totalorder %v329, 56
  %vm394 = vcmp.lt.s32.totalorder %v330, 56
  %vm395 = vcmp.lt.s32.totalorder %v331, 56
  %vm396 = vcmp.lt.s32.totalorder %v332, 56
  %vm397 = vcmp.lt.s32.totalorder %v333, 56
  %vm398 = vcmp.lt.s32.totalorder %v334, 56
  %vm399 = vcmp.lt.s32.totalorder %v335, 56
  %vm400 = vcmp.lt.s32.totalorder %v336, 56
  %vm401 = vcmp.lt.s32.totalorder %v337, 56
  %vm402 = vcmp.lt.s32.totalorder %v338, 56
  %vm403 = vcmp.lt.s32.totalorder %v339, 56
  %vm404 = vcmp.lt.s32.totalorder %v340, 56
  %vm405 = vcmp.lt.s32.totalorder %v341, 56
  %vm406 = vcmp.lt.s32.totalorder %v342, 56
  %vm407 = vcmp.lt.s32.totalorder %v343, 56
  %vm408 = vcmp.lt.s32.totalorder %v344, 56
  %v409 = vlaneseq
  %v410 = vshrl.u32 %v409, 7
  %v411 = vsub.s32 4, %v410
  %v412 = vrot.slane %v43, %v411
  %v413 = vmul.f32 %v280, %v412
  %v414 = vmul.f32 %v281, %v412
  %v415 = vmul.f32 %v282, %v412
  %v416 = vmul.f32 %v283, %v412
  %v417 = vmul.f32 %v284, %v412
  %v418 = vmul.f32 %v285, %v412
  %v419 = vmul.f32 %v286, %v412
  %v420 = vmul.f32 %v287, %v412
  %v421 = vmul.f32 %v288, %v412
  %v422 = vmul.f32 %v289, %v412
  %v423 = vmul.f32 %v290, %v412
  %v424 = vmul.f32 %v291, %v412
  %v425 = vmul.f32 %v292, %v412
  %v426 = vmul.f32 %v293, %v412
  %v427 = vmul.f32 %v294, %v412
  %v428 = vmul.f32 %v295, %v412
  %vm431 = vcmask 1040384
  %v432 = vrot.slane %v294, 7
  %v433 = vrot.slane %v295, 7
  %v434 = vsel %vm431, %v432, %v433
  %v451 = vrot.slane %v280, 7
  %v452 = vrot.slane %v281, 7
  %v453 = vsel %vm431, %v451, %v452
  %v454 = vrot.slane %v282, 7
  %v455 = vsel %vm431, %v452, %v454
  %v456 = vrot.slane %v283, 7
  %v457 = vsel %vm431, %v454, %v456
  %v458 = vrot.slane %v284, 7
  %v459 = vsel %vm431, %v456, %v458
  %v460 = vrot.slane %v285, 7
  %v461 = vsel %vm431, %v458, %v460
  %v462 = vrot.slane %v286, 7
  %v463 = vsel %vm431, %v460, %v462
  %v464 = vrot.slane %v287, 7
  %v465 = vsel %vm431, %v462, %v464
  %v466 = vrot.slane %v288, 7
  %v467 = vsel %vm431, %v464, %v466
  %v468 = vrot.slane %v289, 7
  %v469 = vsel %vm431, %v466, %v468
  %v470 = vrot.slane %v290, 7
  %v471 = vsel %vm431, %v468, %v470
  %v472 = vrot.slane %v291, 7
  %v473 = vsel %vm431, %v470, %v472
  %v474 = vrot.slane %v292, 7
  %v475 = vsel %vm431, %v472, %v474
  %v476 = vrot.slane %v293, 7
  %v477 = vsel %vm431, %v474, %v476
  %v478 = vsel %vm431, %v476, %v432
  %v494 = vsel %vm431, %v433, %v451
  %vm495 = vmand %vm377, %vm345
  %vm496 = vmand %vm378, %vm346
  %vm497 = vmand %vm379, %vm347
  %vm498 = vmand %vm380, %vm348
  %vm499 = vmand %vm381, %vm349
  %vm500 = vmand %vm382, %vm350
  %vm501 = vmand %vm383, %vm351
  %vm502 = vmand %vm384, %vm352
  %vm503 = vmand %vm385, %vm353
  %vm504 = vmand %vm386, %vm354
  %vm505 = vmand %vm387, %vm355
  %vm506 = vmand %vm388, %vm356
  %vm507 = vmand %vm389, %vm357
  %vm508 = vmand %vm390, %vm358
  %vm509 = vmand %vm391, %vm359
  %vm510 = vmand %vm392, %vm360
  %v511 = vsel %vm495, 1, 0
  %v512 = vsel %vm496, 1, 0
  %v513 = vsel %vm497, 1, 0
  %v514 = vsel %vm498, 1, 0
  %v515 = vsel %vm499, 1, 0
  %v516 = vsel %vm500, 1, 0
  %v517 = vsel %vm501, 1, 0
  %v518 = vsel %vm502, 1, 0
  %v519 = vsel %vm503, 1, 0
  %v520 = vsel %vm504, 1, 0
  %v521 = vsel %vm505, 1, 0
  %v522 = vsel %vm506, 1, 0
  %v523 = vsel %vm507, 1, 0
  %v524 = vsel %vm508, 1, 0
  %v525 = vsel %vm509, 1, 0
  %v526 = vsel %vm510, 1, 0
  %vm527 = vcmp.eq.s32.totalorder %v511, 1
  %vm528 = vcmp.eq.s32.totalorder %v512, 1
  %vm529 = vcmp.eq.s32.totalorder %v513, 1
  %vm530 = vcmp.eq.s32.totalorder %v514, 1
  %vm531 = vcmp.eq.s32.totalorder %v515, 1
  %vm532 = vcmp.eq.s32.totalorder %v516, 1
  %vm533 = vcmp.eq.s32.totalorder %v517, 1
  %vm534 = vcmp.eq.s32.totalorder %v518, 1
  %vm535 = vcmp.eq.s32.totalorder %v519, 1
  %vm536 = vcmp.eq.s32.totalorder %v520, 1
  %vm537 = vcmp.eq.s32.totalorder %v521, 1
  %vm538 = vcmp.eq.s32.totalorder %v522, 1
  %vm539 = vcmp.eq.s32.totalorder %v523, 1
  %vm540 = vcmp.eq.s32.totalorder %v524, 1
  %vm541 = vcmp.eq.s32.totalorder %v525, 1
  %vm542 = vcmp.eq.s32.totalorder %v526, 1
  %v543 = vsel %vm527, %v434, 0.0
  %v544 = vsel %vm528, %v494, 0.0
  %v545 = vsel %vm529, %v453, 0.0
  %v546 = vsel %vm530, %v455, 0.0
  %v547 = vsel %vm531, %v457, 0.0
  %v548 = vsel %vm532, %v459, 0.0
  %v549 = vsel %vm533, %v461, 0.0
  %v550 = vsel %vm534, %v463, 0.0
  %v551 = vsel %vm535, %v465, 0.0
  %v552 = vsel %vm536, %v467, 0.0
  %v553 = vsel %vm537, %v469, 0.0
  %v554 = vsel %vm538, %v471, 0.0
  %v555 = vsel %vm539, %v473, 0.0
  %v556 = vsel %vm540, %v475, 0.0
  %v557 = vsel %vm541, %v477, 0.0
  %v558 = vsel %vm542, %v478, 0.0
  %v559 = vlaneseq
  %v560 = vshrl.u32 %v559, 7
  %v561 = vsub.s32 0, %v560
  %v562 = vrot.slane %v43, %v561
  %v563 = vmul.f32 %v543, %v562
  %v564 = vmul.f32 %v544, %v562
  %v565 = vmul.f32 %v545, %v562
  %v566 = vmul.f32 %v546, %v562
  %v567 = vmul.f32 %v547, %v562
  %v568 = vmul.f32 %v548, %v562
  %v569 = vmul.f32 %v549, %v562
  %v570 = vmul.f32 %v550, %v562
  %v571 = vmul.f32 %v551, %v562
  %v572 = vmul.f32 %v552, %v562
  %v573 = vmul.f32 %v553, %v562
  %v574 = vmul.f32 %v554, %v562
  %v575 = vmul.f32 %v555, %v562
  %v576 = vmul.f32 %v556, %v562
  %v577 = vmul.f32 %v557, %v562
  %v578 = vmul.f32 %v558, %v562
  %v579 = vadd.f32 %v413, %v563
  %v580 = vadd.f32 %v414, %v564
  %v581 = vadd.f32 %v415, %v565
  %v582 = vadd.f32 %v416, %v566
  %v583 = vadd.f32 %v417, %v567
  %v584 = vadd.f32 %v418, %v568
  %v585 = vadd.f32 %v419, %v569
  %v586 = vadd.f32 %v420, %v570
  %v587 = vadd.f32 %v421, %v571
  %v588 = vadd.f32 %v422, %v572
  %v589 = vadd.f32 %v423, %v573
  %v590 = vadd.f32 %v424, %v574
  %v591 = vadd.f32 %v425, %v575
  %v592 = vadd.f32 %v426, %v576
  %v593 = vadd.f32 %v427, %v577
  %v594 = vadd.f32 %v428, %v578
  %v595 = vsel %vm377, 1, 0
  %v596 = vsel %vm378, 1, 0
  %v597 = vsel %vm379, 1, 0
  %v598 = vsel %vm380, 1, 0
  %v599 = vsel %vm381, 1, 0
  %v600 = vsel %vm382, 1, 0
  %v601 = vsel %vm383, 1, 0
  %v602 = vsel %vm384, 1, 0
  %v603 = vsel %vm385, 1, 0
  %v604 = vsel %vm386, 1, 0
  %v605 = vsel %vm387, 1, 0
  %v606 = vsel %vm388, 1, 0
  %v607 = vsel %vm389, 1, 0
  %v608 = vsel %vm390, 1, 0
  %v609 = vsel %vm391, 1, 0
  %v610 = vsel %vm392, 1, 0
  %vm611 = vcmp.eq.s32.totalorder %v595, 1
  %vm612 = vcmp.eq.s32.totalorder %v596, 1
  %vm613 = vcmp.eq.s32.totalorder %v597, 1
  %vm614 = vcmp.eq.s32.totalorder %v598, 1
  %vm615 = vcmp.eq.s32.totalorder %v599, 1
  %vm616 = vcmp.eq.s32.totalorder %v600, 1
  %vm617 = vcmp.eq.s32.totalorder %v601, 1
  %vm618 = vcmp.eq.s32.totalorder %v602, 1
  %vm619 = vcmp.eq.s32.totalorder %v603, 1
  %vm620 = vcmp.eq.s32.totalorder %v604, 1
  %vm621 = vcmp.eq.s32.totalorder %v605, 1
  %vm622 = vcmp.eq.s32.totalorder %v606, 1
  %vm623 = vcmp.eq.s32.totalorder %v607, 1
  %vm624 = vcmp.eq.s32.totalorder %v608, 1
  %vm625 = vcmp.eq.s32.totalorder %v609, 1
  %vm626 = vcmp.eq.s32.totalorder %v610, 1
  %v627 = vsel %vm611, %v295, 0.0
  %v628 = vsel %vm612, %v280, 0.0
  %v629 = vsel %vm613, %v281, 0.0
  %v630 = vsel %vm614, %v282, 0.0
  %v631 = vsel %vm615, %v283, 0.0
  %v632 = vsel %vm616, %v284, 0.0
  %v633 = vsel %vm617, %v285, 0.0
  %v634 = vsel %vm618, %v286, 0.0
  %v635 = vsel %vm619, %v287, 0.0
  %v636 = vsel %vm620, %v288, 0.0
  %v637 = vsel %vm621, %v289, 0.0
  %v638 = vsel %vm622, %v290, 0.0
  %v639 = vsel %vm623, %v291, 0.0
  %v640 = vsel %vm624, %v292, 0.0
  %v641 = vsel %vm625, %v293, 0.0
  %v642 = vsel %vm626, %v294, 0.0
  %v643 = vlaneseq
  %v644 = vshrl.u32 %v643, 7
  %v645 = vsub.s32 1, %v644
  %v646 = vrot.slane %v43, %v645
  %v647 = vmul.f32 %v627, %v646
  %v648 = vmul.f32 %v628, %v646
  %v649 = vmul.f32 %v629, %v646
  %v650 = vmul.f32 %v630, %v646
  %v651 = vmul.f32 %v631, %v646
  %v652 = vmul.f32 %v632, %v646
  %v653 = vmul.f32 %v633, %v646
  %v654 = vmul.f32 %v634, %v646
  %v655 = vmul.f32 %v635, %v646
  %v656 = vmul.f32 %v636, %v646
  %v657 = vmul.f32 %v637, %v646
  %v658 = vmul.f32 %v638, %v646
  %v659 = vmul.f32 %v639, %v646
  %v660 = vmul.f32 %v640, %v646
  %v661 = vmul.f32 %v641, %v646
  %v662 = vmul.f32 %v642, %v646
  %v663 = vadd.f32 %v579, %v647
  %v664 = vadd.f32 %v580, %v648
  %v665 = vadd.f32 %v581, %v649
  %v666 = vadd.f32 %v582, %v650
  %v667 = vadd.f32 %v583, %v651
  %v668 = vadd.f32 %v584, %v652
  %v669 = vadd.f32 %v585, %v653
  %v670 = vadd.f32 %v586, %v654
  %v671 = vadd.f32 %v587, %v655
  %v672 = vadd.f32 %v588, %v656
  %v673 = vadd.f32 %v589, %v657
  %v674 = vadd.f32 %v590, %v658
  %v675 = vadd.f32 %v591, %v659
  %v676 = vadd.f32 %v592, %v660
  %v677 = vadd.f32 %v593, %v661
  %v678 = vadd.f32 %v594, %v662
  %v679 = vrot.slane %v295, 1
  %vm681 = vcmask 1046528
  %v682 = vrot.slane %v280, 1
  %v683 = vrot.slane %v281, 1
  %v684 = vsel %vm681, %v682, %v683
  %v685 = vrot.slane %v282, 1
  %v686 = vsel %vm681, %v683, %v685
  %v687 = vrot.slane %v283, 1
  %v688 = vsel %vm681, %v685, %v687
  %v689 = vrot.slane %v284, 1
  %v690 = vsel %vm681, %v687, %v689
  %v691 = vrot.slane %v285, 1
  %v692 = vsel %vm681, %v689, %v691
  %v693 = vrot.slane %v286, 1
  %v694 = vsel %vm681, %v691, %v693
  %v695 = vrot.slane %v287, 1
  %v696 = vsel %vm681, %v693, %v695
  %v697 = vrot.slane %v288, 1
  %v698 = vsel %vm681, %v695, %v697
  %v699 = vrot.slane %v289, 1
  %v700 = vsel %vm681, %v697, %v699
  %v701 = vrot.slane %v290, 1
  %v702 = vsel %vm681, %v699, %v701
  %v703 = vrot.slane %v291, 1
  %v704 = vsel %vm681, %v701, %v703
  %v705 = vrot.slane %v292, 1
  %v706 = vsel %vm681, %v703, %v705
  %v707 = vrot.slane %v293, 1
  %v708 = vsel %vm681, %v705, %v707
  %v709 = vrot.slane %v294, 1
  %v710 = vsel %vm681, %v707, %v709
  %v711 = vsel %vm681, %v709, %v679
  %v728 = vsel %vm681, %v679, %v682
  %vm729 = vmand %vm377, %vm361
  %vm730 = vmand %vm378, %vm362
  %vm731 = vmand %vm379, %vm363
  %vm732 = vmand %vm380, %vm364
  %vm733 = vmand %vm381, %vm365
  %vm734 = vmand %vm382, %vm366
  %vm735 = vmand %vm383, %vm367
  %vm736 = vmand %vm384, %vm368
  %vm737 = vmand %vm385, %vm369
  %vm738 = vmand %vm386, %vm370
  %vm739 = vmand %vm387, %vm371
  %vm740 = vmand %vm388, %vm372
  %vm741 = vmand %vm389, %vm373
  %vm742 = vmand %vm390, %vm374
  %vm743 = vmand %vm391, %vm375
  %vm744 = vmand %vm392, %vm376
  %v745 = vsel %vm729, 1, 0
  %v746 = vsel %vm730, 1, 0
  %v747 = vsel %vm731, 1, 0
  %v748 = vsel %vm732, 1, 0
  %v749 = vsel %vm733, 1, 0
  %v750 = vsel %vm734, 1, 0
  %v751 = vsel %vm735, 1, 0
  %v752 = vsel %vm736, 1, 0
  %v753 = vsel %vm737, 1, 0
  %v754 = vsel %vm738, 1, 0
  %v755 = vsel %vm739, 1, 0
  %v756 = vsel %vm740, 1, 0
  %v757 = vsel %vm741, 1, 0
  %v758 = vsel %vm742, 1, 0
  %v759 = vsel %vm743, 1, 0
  %v760 = vsel %vm744, 1, 0
  %vm761 = vcmp.eq.s32.totalorder %v745, 1
  %vm762 = vcmp.eq.s32.totalorder %v746, 1
  %vm763 = vcmp.eq.s32.totalorder %v747, 1
  %vm764 = vcmp.eq.s32.totalorder %v748, 1
  %vm765 = vcmp.eq.s32.totalorder %v749, 1
  %vm766 = vcmp.eq.s32.totalorder %v750, 1
  %vm767 = vcmp.eq.s32.totalorder %v751, 1
  %vm768 = vcmp.eq.s32.totalorder %v752, 1
  %vm769 = vcmp.eq.s32.totalorder %v753, 1
  %vm770 = vcmp.eq.s32.totalorder %v754, 1
  %vm771 = vcmp.eq.s32.totalorder %v755, 1
  %vm772 = vcmp.eq.s32.totalorder %v756, 1
  %vm773 = vcmp.eq.s32.totalorder %v757, 1
  %vm774 = vcmp.eq.s32.totalorder %v758, 1
  %vm775 = vcmp.eq.s32.totalorder %v759, 1
  %vm776 = vcmp.eq.s32.totalorder %v760, 1
  %v777 = vsel %vm761, %v728, 0.0
  %v778 = vsel %vm762, %v684, 0.0
  %v779 = vsel %vm763, %v686, 0.0
  %v780 = vsel %vm764, %v688, 0.0
  %v781 = vsel %vm765, %v690, 0.0
  %v782 = vsel %vm766, %v692, 0.0
  %v783 = vsel %vm767, %v694, 0.0
  %v784 = vsel %vm768, %v696, 0.0
  %v785 = vsel %vm769, %v698, 0.0
  %v786 = vsel %vm770, %v700, 0.0
  %v787 = vsel %vm771, %v702, 0.0
  %v788 = vsel %vm772, %v704, 0.0
  %v789 = vsel %vm773, %v706, 0.0
  %v790 = vsel %vm774, %v708, 0.0
  %v791 = vsel %vm775, %v710, 0.0
  %v792 = vsel %vm776, %v711, 0.0
  %v793 = vlaneseq
  %v794 = vshrl.u32 %v793, 7
  %v795 = vsub.s32 2, %v794
  %v796 = vrot.slane %v43, %v795
  %v797 = vmul.f32 %v777, %v796
  %v798 = vmul.f32 %v778, %v796
  %v799 = vmul.f32 %v779, %v796
  %v800 = vmul.f32 %v780, %v796
  %v801 = vmul.f32 %v781, %v796
  %v802 = vmul.f32 %v782, %v796
  %v803 = vmul.f32 %v783, %v796
  %v804 = vmul.f32 %v784, %v796
  %v805 = vmul.f32 %v785, %v796
  %v806 = vmul.f32 %v786, %v796
  %v807 = vmul.f32 %v787, %v796
  %v808 = vmul.f32 %v788, %v796
  %v809 = vmul.f32 %v789, %v796
  %v810 = vmul.f32 %v790, %v796
  %v811 = vmul.f32 %v791, %v796
  %v812 = vmul.f32 %v792, %v796
  %v813 = vadd.f32 %v663, %v797
  %v814 = vadd.f32 %v664, %v798
  %v815 = vadd.f32 %v665, %v799
  %v816 = vadd.f32 %v666, %v800
  %v817 = vadd.f32 %v667, %v801
  %v818 = vadd.f32 %v668, %v802
  %v819 = vadd.f32 %v669, %v803
  %v820 = vadd.f32 %v670, %v804
  %v821 = vadd.f32 %v671, %v805
  %v822 = vadd.f32 %v672, %v806
  %v823 = vadd.f32 %v673, %v807
  %v824 = vadd.f32 %v674, %v808
  %v825 = vadd.f32 %v675, %v809
  %v826 = vadd.f32 %v676, %v810
  %v827 = vadd.f32 %v677, %v811
  %v828 = vadd.f32 %v678, %v812
  %v829 = vsel %vm345, 1, 0
  %v830 = vsel %vm346, 1, 0
  %v831 = vsel %vm347, 1, 0
  %v832 = vsel %vm348, 1, 0
  %v833 = vsel %vm349, 1, 0
  %v834 = vsel %vm350, 1, 0
  %v835 = vsel %vm351, 1, 0
  %v836 = vsel %vm352, 1, 0
  %v837 = vsel %vm353, 1, 0
  %v838 = vsel %vm354, 1, 0
  %v839 = vsel %vm355, 1, 0
  %v840 = vsel %vm356, 1, 0
  %v841 = vsel %vm357, 1, 0
  %v842 = vsel %vm358, 1, 0
  %v843 = vsel %vm359, 1, 0
  %v844 = vsel %vm360, 1, 0
  %vm845 = vcmp.eq.s32.totalorder %v829, 1
  %vm846 = vcmp.eq.s32.totalorder %v830, 1
  %vm847 = vcmp.eq.s32.totalorder %v831, 1
  %vm848 = vcmp.eq.s32.totalorder %v832, 1
  %vm849 = vcmp.eq.s32.totalorder %v833, 1
  %vm850 = vcmp.eq.s32.totalorder %v834, 1
  %vm851 = vcmp.eq.s32.totalorder %v835, 1
  %vm852 = vcmp.eq.s32.totalorder %v836, 1
  %vm853 = vcmp.eq.s32.totalorder %v837, 1
  %vm854 = vcmp.eq.s32.totalorder %v838, 1
  %vm855 = vcmp.eq.s32.totalorder %v839, 1
  %vm856 = vcmp.eq.s32.totalorder %v840, 1
  %vm857 = vcmp.eq.s32.totalorder %v841, 1
  %vm858 = vcmp.eq.s32.totalorder %v842, 1
  %vm859 = vcmp.eq.s32.totalorder %v843, 1
  %vm860 = vcmp.eq.s32.totalorder %v844, 1
  %v861 = vsel %vm845, %v494, 0.0
  %v862 = vsel %vm846, %v453, 0.0
  %v863 = vsel %vm847, %v455, 0.0
  %v864 = vsel %vm848, %v457, 0.0
  %v865 = vsel %vm849, %v459, 0.0
  %v866 = vsel %vm850, %v461, 0.0
  %v867 = vsel %vm851, %v463, 0.0
  %v868 = vsel %vm852, %v465, 0.0
  %v869 = vsel %vm853, %v467, 0.0
  %v870 = vsel %vm854, %v469, 0.0
  %v871 = vsel %vm855, %v471, 0.0
  %v872 = vsel %vm856, %v473, 0.0
  %v873 = vsel %vm857, %v475, 0.0
  %v874 = vsel %vm858, %v477, 0.0
  %v875 = vsel %vm859, %v478, 0.0
  %v876 = vsel %vm860, %v434, 0.0
  %v877 = vlaneseq
  %v878 = vshrl.u32 %v877, 7
  %v879 = vsub.s32 3, %v878
  %v880 = vrot.slane %v43, %v879
  %v881 = vmul.f32 %v861, %v880
  %v882 = vmul.f32 %v862, %v880
  %v883 = vmul.f32 %v863, %v880
  %v884 = vmul.f32 %v864, %v880
  %v885 = vmul.f32 %v865, %v880
  %v886 = vmul.f32 %v866, %v880
  %v887 = vmul.f32 %v867, %v880
  %v888 = vmul.f32 %v868, %v880
  %v889 = vmul.f32 %v869, %v880
  %v890 = vmul.f32 %v870, %v880
  %v891 = vmul.f32 %v871, %v880
  %v892 = vmul.f32 %v872, %v880
  %v893 = vmul.f32 %v873, %v880
  %v894 = vmul.f32 %v874, %v880
  %v895 = vmul.f32 %v875, %v880
  %v896 = vmul.f32 %v876, %v880
  %v897 = vadd.f32 %v813, %v881
  %v898 = vadd.f32 %v814, %v882
  %v899 = vadd.f32 %v815, %v883
  %v900 = vadd.f32 %v816, %v884
  %v901 = vadd.f32 %v817, %v885
  %v902 = vadd.f32 %v818, %v886
  %v903 = vadd.f32 %v819, %v887
  %v904 = vadd.f32 %v820, %v888
  %v905 = vadd.f32 %v821, %v889
  %v906 = vadd.f32 %v822, %v890
  %v907 = vadd.f32 %v823, %v891
  %v908 = vadd.f32 %v824, %v892
  %v909 = vadd.f32 %v825, %v893
  %v910 = vadd.f32 %v826, %v894
  %v911 = vadd.f32 %v827, %v895
  %v912 = vadd.f32 %v828, %v896
  %v913 = vsel %vm361, 1, 0
  %v914 = vsel %vm362, 1, 0
  %v915 = vsel %vm363, 1, 0
  %v916 = vsel %vm364, 1, 0
  %v917 = vsel %vm365, 1, 0
  %v918 = vsel %vm366, 1, 0
  %v919 = vsel %vm367, 1, 0
  %v920 = vsel %vm368, 1, 0
  %v921 = vsel %vm369, 1, 0
  %v922 = vsel %vm370, 1, 0
  %v923 = vsel %vm371, 1, 0
  %v924 = vsel %vm372, 1, 0
  %v925 = vsel %vm373, 1, 0
  %v926 = vsel %vm374, 1, 0
  %v927 = vsel %vm375, 1, 0
  %v928 = vsel %vm376, 1, 0
  %vm929 = vcmp.eq.s32.totalorder %v913, 1
  %vm930 = vcmp.eq.s32.totalorder %v914, 1
  %vm931 = vcmp.eq.s32.totalorder %v915, 1
  %vm932 = vcmp.eq.s32.totalorder %v916, 1
  %vm933 = vcmp.eq.s32.totalorder %v917, 1
  %vm934 = vcmp.eq.s32.totalorder %v918, 1
  %vm935 = vcmp.eq.s32.totalorder %v919, 1
  %vm936 = vcmp.eq.s32.totalorder %v920, 1
  %vm937 = vcmp.eq.s32.totalorder %v921, 1
  %vm938 = vcmp.eq.s32.totalorder %v922, 1
  %vm939 = vcmp.eq.s32.totalorder %v923, 1
  %vm940 = vcmp.eq.s32.totalorder %v924, 1
  %vm941 = vcmp.eq.s32.totalorder %v925, 1
  %vm942 = vcmp.eq.s32.totalorder %v926, 1
  %vm943 = vcmp.eq.s32.totalorder %v927, 1
  %vm944 = vcmp.eq.s32.totalorder %v928, 1
  %v945 = vsel %vm929, %v684, 0.0
  %v946 = vsel %vm930, %v686, 0.0
  %v947 = vsel %vm931, %v688, 0.0
  %v948 = vsel %vm932, %v690, 0.0
  %v949 = vsel %vm933, %v692, 0.0
  %v950 = vsel %vm934, %v694, 0.0
  %v951 = vsel %vm935, %v696, 0.0
  %v952 = vsel %vm936, %v698, 0.0
  %v953 = vsel %vm937, %v700, 0.0
  %v954 = vsel %vm938, %v702, 0.0
  %v955 = vsel %vm939, %v704, 0.0
  %v956 = vsel %vm940, %v706, 0.0
  %v957 = vsel %vm941, %v708, 0.0
  %v958 = vsel %vm942, %v710, 0.0
  %v959 = vsel %vm943, %v711, 0.0
  %v960 = vsel %vm944, %v728, 0.0
  %v961 = vlaneseq
  %v962 = vshrl.u32 %v961, 7
  %v963 = vsub.s32 5, %v962
  %v964 = vrot.slane %v43, %v963
  %v965 = vmul.f32 %v945, %v964
  %v966 = vmul.f32 %v946, %v964
  %v967 = vmul.f32 %v947, %v964
  %v968 = vmul.f32 %v948, %v964
  %v969 = vmul.f32 %v949, %v964
  %v970 = vmul.f32 %v950, %v964
  %v971 = vmul.f32 %v951, %v964
  %v972 = vmul.f32 %v952, %v964
  %v973 = vmul.f32 %v953, %v964
  %v974 = vmul.f32 %v954, %v964
  %v975 = vmul.f32 %v955, %v964
  %v976 = vmul.f32 %v956, %v964
  %v977 = vmul.f32 %v957, %v964
  %v978 = vmul.f32 %v958, %v964
  %v979 = vmul.f32 %v959, %v964
  %v980 = vmul.f32 %v960, %v964
  %v981 = vadd.f32 %v897, %v965
  %v982 = vadd.f32 %v898, %v966
  %v983 = vadd.f32 %v899, %v967
  %v984 = vadd.f32 %v900, %v968
  %v985 = vadd.f32 %v901, %v969
  %v986 = vadd.f32 %v902, %v970
  %v987 = vadd.f32 %v903, %v971
  %v988 = vadd.f32 %v904, %v972
  %v989 = vadd.f32 %v905, %v973
  %v990 = vadd.f32 %v906, %v974
  %v991 = vadd.f32 %v907, %v975
  %v992 = vadd.f32 %v908, %v976
  %v993 = vadd.f32 %v909, %v977
  %v994 = vadd.f32 %v910, %v978
  %v995 = vadd.f32 %v911, %v979
  %v996 = vadd.f32 %v912, %v980
  %vm997 = vmand %vm393, %vm345
  %vm998 = vmand %vm394, %vm346
  %vm999 = vmand %vm395, %vm347
  %vm1000 = vmand %vm396, %vm348
  %vm1001 = vmand %vm397, %vm349
  %vm1002 = vmand %vm398, %vm350
  %vm1003 = vmand %vm399, %vm351
  %vm1004 = vmand %vm400, %vm352
  %vm1005 = vmand %vm401, %vm353
  %vm1006 = vmand %vm402, %vm354
  %vm1007 = vmand %vm403, %vm355
  %vm1008 = vmand %vm404, %vm356
  %vm1009 = vmand %vm405, %vm357
  %vm1010 = vmand %vm406, %vm358
  %vm1011 = vmand %vm407, %vm359
  %vm1012 = vmand %vm408, %vm360
  %v1013 = vsel %vm997, 1, 0
  %v1014 = vsel %vm998, 1, 0
  %v1015 = vsel %vm999, 1, 0
  %v1016 = vsel %vm1000, 1, 0
  %v1017 = vsel %vm1001, 1, 0
  %v1018 = vsel %vm1002, 1, 0
  %v1019 = vsel %vm1003, 1, 0
  %v1020 = vsel %vm1004, 1, 0
  %v1021 = vsel %vm1005, 1, 0
  %v1022 = vsel %vm1006, 1, 0
  %v1023 = vsel %vm1007, 1, 0
  %v1024 = vsel %vm1008, 1, 0
  %v1025 = vsel %vm1009, 1, 0
  %v1026 = vsel %vm1010, 1, 0
  %v1027 = vsel %vm1011, 1, 0
  %v1028 = vsel %vm1012, 1, 0
  %vm1029 = vcmp.eq.s32.totalorder %v1013, 1
  %vm1030 = vcmp.eq.s32.totalorder %v1014, 1
  %vm1031 = vcmp.eq.s32.totalorder %v1015, 1
  %vm1032 = vcmp.eq.s32.totalorder %v1016, 1
  %vm1033 = vcmp.eq.s32.totalorder %v1017, 1
  %vm1034 = vcmp.eq.s32.totalorder %v1018, 1
  %vm1035 = vcmp.eq.s32.totalorder %v1019, 1
  %vm1036 = vcmp.eq.s32.totalorder %v1020, 1
  %vm1037 = vcmp.eq.s32.totalorder %v1021, 1
  %vm1038 = vcmp.eq.s32.totalorder %v1022, 1
  %vm1039 = vcmp.eq.s32.totalorder %v1023, 1
  %vm1040 = vcmp.eq.s32.totalorder %v1024, 1
  %vm1041 = vcmp.eq.s32.totalorder %v1025, 1
  %vm1042 = vcmp.eq.s32.totalorder %v1026, 1
  %vm1043 = vcmp.eq.s32.totalorder %v1027, 1
  %vm1044 = vcmp.eq.s32.totalorder %v1028, 1
  %v1045 = vsel %vm1029, %v453, 0.0
  %v1046 = vsel %vm1030, %v455, 0.0
  %v1047 = vsel %vm1031, %v457, 0.0
  %v1048 = vsel %vm1032, %v459, 0.0
  %v1049 = vsel %vm1033, %v461, 0.0
  %v1050 = vsel %vm1034, %v463, 0.0
  %v1051 = vsel %vm1035, %v465, 0.0
  %v1052 = vsel %vm1036, %v467, 0.0
  %v1053 = vsel %vm1037, %v469, 0.0
  %v1054 = vsel %vm1038, %v471, 0.0
  %v1055 = vsel %vm1039, %v473, 0.0
  %v1056 = vsel %vm1040, %v475, 0.0
  %v1057 = vsel %vm1041, %v477, 0.0
  %v1058 = vsel %vm1042, %v478, 0.0
  %v1059 = vsel %vm1043, %v434, 0.0
  %v1060 = vsel %vm1044, %v494, 0.0
  %v1061 = vlaneseq
  %v1062 = vshrl.u32 %v1061, 7
  %v1063 = vsub.s32 6, %v1062
  %v1064 = vrot.slane %v43, %v1063
  %v1065 = vmul.f32 %v1045, %v1064
  %v1066 = vmul.f32 %v1046, %v1064
  %v1067 = vmul.f32 %v1047, %v1064
  %v1068 = vmul.f32 %v1048, %v1064
  %v1069 = vmul.f32 %v1049, %v1064
  %v1070 = vmul.f32 %v1050, %v1064
  %v1071 = vmul.f32 %v1051, %v1064
  %v1072 = vmul.f32 %v1052, %v1064
  %v1073 = vmul.f32 %v1053, %v1064
  %v1074 = vmul.f32 %v1054, %v1064
  %v1075 = vmul.f32 %v1055, %v1064
  %v1076 = vmul.f32 %v1056, %v1064
  %v1077 = vmul.f32 %v1057, %v1064
  %v1078 = vmul.f32 %v1058, %v1064
  %v1079 = vmul.f32 %v1059, %v1064
  %v1080 = vmul.f32 %v1060, %v1064
  %v1081 = vadd.f32 %v981, %v1065
  %v1082 = vadd.f32 %v982, %v1066
  %v1083 = vadd.f32 %v983, %v1067
  %v1084 = vadd.f32 %v984, %v1068
  %v1085 = vadd.f32 %v985, %v1069
  %v1086 = vadd.f32 %v986, %v1070
  %v1087 = vadd.f32 %v987, %v1071
  %v1088 = vadd.f32 %v988, %v1072
  %v1089 = vadd.f32 %v989, %v1073
  %v1090 = vadd.f32 %v990, %v1074
  %v1091 = vadd.f32 %v991, %v1075
  %v1092 = vadd.f32 %v992, %v1076
  %v1093 = vadd.f32 %v993, %v1077
  %v1094 = vadd.f32 %v994, %v1078
  %v1095 = vadd.f32 %v995, %v1079
  %v1096 = vadd.f32 %v996, %v1080
  %v1097 = vsel %vm393, 1, 0
  %v1098 = vsel %vm394, 1, 0
  %v1099 = vsel %vm395, 1, 0
  %v1100 = vsel %vm396, 1, 0
  %v1101 = vsel %vm397, 1, 0
  %v1102 = vsel %vm398, 1, 0
  %v1103 = vsel %vm399, 1, 0
  %v1104 = vsel %vm400, 1, 0
  %v1105 = vsel %vm401, 1, 0
  %v1106 = vsel %vm402, 1, 0
  %v1107 = vsel %vm403, 1, 0
  %v1108 = vsel %vm404, 1, 0
  %v1109 = vsel %vm405, 1, 0
  %v1110 = vsel %vm406, 1, 0
  %v1111 = vsel %vm407, 1, 0
  %v1112 = vsel %vm408, 1, 0
  %vm1113 = vcmp.eq.s32.totalorder %v1097, 1
  %vm1114 = vcmp.eq.s32.totalorder %v1098, 1
  %vm1115 = vcmp.eq.s32.totalorder %v1099, 1
  %vm1116 = vcmp.eq.s32.totalorder %v1100, 1
  %vm1117 = vcmp.eq.s32.totalorder %v1101, 1
  %vm1118 = vcmp.eq.s32.totalorder %v1102, 1
  %vm1119 = vcmp.eq.s32.totalorder %v1103, 1
  %vm1120 = vcmp.eq.s32.totalorder %v1104, 1
  %vm1121 = vcmp.eq.s32.totalorder %v1105, 1
  %vm1122 = vcmp.eq.s32.totalorder %v1106, 1
  %vm1123 = vcmp.eq.s32.totalorder %v1107, 1
  %vm1124 = vcmp.eq.s32.totalorder %v1108, 1
  %vm1125 = vcmp.eq.s32.totalorder %v1109, 1
  %vm1126 = vcmp.eq.s32.totalorder %v1110, 1
  %vm1127 = vcmp.eq.s32.totalorder %v1111, 1
  %vm1128 = vcmp.eq.s32.totalorder %v1112, 1
  %v1129 = vsel %vm1113, %v281, 0.0
  %v1130 = vsel %vm1114, %v282, 0.0
  %v1131 = vsel %vm1115, %v283, 0.0
  %v1132 = vsel %vm1116, %v284, 0.0
  %v1133 = vsel %vm1117, %v285, 0.0
  %v1134 = vsel %vm1118, %v286, 0.0
  %v1135 = vsel %vm1119, %v287, 0.0
  %v1136 = vsel %vm1120, %v288, 0.0
  %v1137 = vsel %vm1121, %v289, 0.0
  %v1138 = vsel %vm1122, %v290, 0.0
  %v1139 = vsel %vm1123, %v291, 0.0
  %v1140 = vsel %vm1124, %v292, 0.0
  %v1141 = vsel %vm1125, %v293, 0.0
  %v1142 = vsel %vm1126, %v294, 0.0
  %v1143 = vsel %vm1127, %v295, 0.0
  %v1144 = vsel %vm1128, %v280, 0.0
  %v1145 = vlaneseq
  %v1146 = vshrl.u32 %v1145, 7
  %v1147 = vsub.s32 7, %v1146
  %v1148 = vrot.slane %v43, %v1147
  %v1149 = vmul.f32 %v1129, %v1148
  %v1150 = vmul.f32 %v1130, %v1148
  %v1151 = vmul.f32 %v1131, %v1148
  %v1152 = vmul.f32 %v1132, %v1148
  %v1153 = vmul.f32 %v1133, %v1148
  %v1154 = vmul.f32 %v1134, %v1148
  %v1155 = vmul.f32 %v1135, %v1148
  %v1156 = vmul.f32 %v1136, %v1148
  %v1157 = vmul.f32 %v1137, %v1148
  %v1158 = vmul.f32 %v1138, %v1148
  %v1159 = vmul.f32 %v1139, %v1148
  %v1160 = vmul.f32 %v1140, %v1148
  %v1161 = vmul.f32 %v1141, %v1148
  %v1162 = vmul.f32 %v1142, %v1148
  %v1163 = vmul.f32 %v1143, %v1148
  %v1164 = vmul.f32 %v1144, %v1148
  %v1165 = vadd.f32 %v1081, %v1149
  %v1166 = vadd.f32 %v1082, %v1150
  %v1167 = vadd.f32 %v1083, %v1151
  %v1168 = vadd.f32 %v1084, %v1152
  %v1169 = vadd.f32 %v1085, %v1153
  %v1170 = vadd.f32 %v1086, %v1154
  %v1171 = vadd.f32 %v1087, %v1155
  %v1172 = vadd.f32 %v1088, %v1156
  %v1173 = vadd.f32 %v1089, %v1157
  %v1174 = vadd.f32 %v1090, %v1158
  %v1175 = vadd.f32 %v1091, %v1159
  %v1176 = vadd.f32 %v1092, %v1160
  %v1177 = vadd.f32 %v1093, %v1161
  %v1178 = vadd.f32 %v1094, %v1162
  %v1179 = vadd.f32 %v1095, %v1163
  %v1180 = vadd.f32 %v1096, %v1164
  %vm1181 = vmand %vm393, %vm361
  %vm1182 = vmand %vm394, %vm362
  %vm1183 = vmand %vm395, %vm363
  %vm1184 = vmand %vm396, %vm364
  %vm1185 = vmand %vm397, %vm365
  %vm1186 = vmand %vm398, %vm366
  %vm1187 = vmand %vm399, %vm367
  %vm1188 = vmand %vm400, %vm368
  %vm1189 = vmand %vm401, %vm369
  %vm1190 = vmand %vm402, %vm370
  %vm1191 = vmand %vm403, %vm371
  %vm1192 = vmand %vm404, %vm372
  %vm1193 = vmand %vm405, %vm373
  %vm1194 = vmand %vm406, %vm374
  %vm1195 = vmand %vm407, %vm375
  %vm1196 = vmand %vm408, %vm376
  %v1197 = vsel %vm1181, 1, 0
  %v1198 = vsel %vm1182, 1, 0
  %v1199 = vsel %vm1183, 1, 0
  %v1200 = vsel %vm1184, 1, 0
  %v1201 = vsel %vm1185, 1, 0
  %v1202 = vsel %vm1186, 1, 0
  %v1203 = vsel %vm1187, 1, 0
  %v1204 = vsel %vm1188, 1, 0
  %v1205 = vsel %vm1189, 1, 0
  %v1206 = vsel %vm1190, 1, 0
  %v1207 = vsel %vm1191, 1, 0
  %v1208 = vsel %vm1192, 1, 0
  %v1209 = vsel %vm1193, 1, 0
  %v1210 = vsel %vm1194, 1, 0
  %v1211 = vsel %vm1195, 1, 0
  %v1212 = vsel %vm1196, 1, 0
  %vm1213 = vcmp.eq.s32.totalorder %v1197, 1
  %vm1214 = vcmp.eq.s32.totalorder %v1198, 1
  %vm1215 = vcmp.eq.s32.totalorder %v1199, 1
  %vm1216 = vcmp.eq.s32.totalorder %v1200, 1
  %vm1217 = vcmp.eq.s32.totalorder %v1201, 1
  %vm1218 = vcmp.eq.s32.totalorder %v1202, 1
  %vm1219 = vcmp.eq.s32.totalorder %v1203, 1
  %vm1220 = vcmp.eq.s32.totalorder %v1204, 1
  %vm1221 = vcmp.eq.s32.totalorder %v1205, 1
  %vm1222 = vcmp.eq.s32.totalorder %v1206, 1
  %vm1223 = vcmp.eq.s32.totalorder %v1207, 1
  %vm1224 = vcmp.eq.s32.totalorder %v1208, 1
  %vm1225 = vcmp.eq.s32.totalorder %v1209, 1
  %vm1226 = vcmp.eq.s32.totalorder %v1210, 1
  %vm1227 = vcmp.eq.s32.totalorder %v1211, 1
  %vm1228 = vcmp.eq.s32.totalorder %v1212, 1
  %v1229 = vsel %vm1213, %v686, 0.0
  %v1230 = vsel %vm1214, %v688, 0.0
  %v1231 = vsel %vm1215, %v690, 0.0
  %v1232 = vsel %vm1216, %v692, 0.0
  %v1233 = vsel %vm1217, %v694, 0.0
  %v1234 = vsel %vm1218, %v696, 0.0
  %v1235 = vsel %vm1219, %v698, 0.0
  %v1236 = vsel %vm1220, %v700, 0.0
  %v1237 = vsel %vm1221, %v702, 0.0
  %v1238 = vsel %vm1222, %v704, 0.0
  %v1239 = vsel %vm1223, %v706, 0.0
  %v1240 = vsel %vm1224, %v708, 0.0
  %v1241 = vsel %vm1225, %v710, 0.0
  %v1242 = vsel %vm1226, %v711, 0.0
  %v1243 = vsel %vm1227, %v728, 0.0
  %v1244 = vsel %vm1228, %v684, 0.0
  %v1245 = vlaneseq
  %v1246 = vshrl.u32 %v1245, 7
  %v1247 = vsub.s32 0, %v1246
  %v1248 = vrot.slane %v44, %v1247
  %v1249 = vmul.f32 %v1229, %v1248
  %v1250 = vmul.f32 %v1230, %v1248
  %v1251 = vmul.f32 %v1231, %v1248
  %v1252 = vmul.f32 %v1232, %v1248
  %v1253 = vmul.f32 %v1233, %v1248
  %v1254 = vmul.f32 %v1234, %v1248
  %v1255 = vmul.f32 %v1235, %v1248
  %v1256 = vmul.f32 %v1236, %v1248
  %v1257 = vmul.f32 %v1237, %v1248
  %v1258 = vmul.f32 %v1238, %v1248
  %v1259 = vmul.f32 %v1239, %v1248
  %v1260 = vmul.f32 %v1240, %v1248
  %v1261 = vmul.f32 %v1241, %v1248
  %v1262 = vmul.f32 %v1242, %v1248
  %v1263 = vmul.f32 %v1243, %v1248
  %v1264 = vmul.f32 %v1244, %v1248
  %v1265 = vadd.f32 %v1165, %v1249
  %v1266 = vadd.f32 %v1166, %v1250
  %v1267 = vadd.f32 %v1167, %v1251
  %v1268 = vadd.f32 %v1168, %v1252
  %v1269 = vadd.f32 %v1169, %v1253
  %v1270 = vadd.f32 %v1170, %v1254
  %v1271 = vadd.f32 %v1171, %v1255
  %v1272 = vadd.f32 %v1172, %v1256
  %v1273 = vadd.f32 %v1173, %v1257
  %v1274 = vadd.f32 %v1174, %v1258
  %v1275 = vadd.f32 %v1175, %v1259
  %v1276 = vadd.f32 %v1176, %v1260
  %v1277 = vadd.f32 %v1177, %v1261
  %v1278 = vadd.f32 %v1178, %v1262
  %v1279 = vadd.f32 %v1179, %v1263
  %v1280 = vadd.f32 %v1180, %v1264
  %v1281 = vlaneseq
  %v1282 = vshrl.u32 %v1281, 7
  %v1283 = vsub.s32 1, %v1282
  %v1284 = vrot.slane %v44, %v1283
  %v1285 = vadd.f32 %v1265, %v1284
  %v1286 = vadd.f32 %v1266, %v1284
  %v1287 = vadd.f32 %v1267, %v1284
  %v1288 = vadd.f32 %v1268, %v1284
  %v1289 = vadd.f32 %v1269, %v1284
  %v1290 = vadd.f32 %v1270, %v1284
  %v1291 = vadd.f32 %v1271, %v1284
  %v1292 = vadd.f32 %v1272, %v1284
  %v1293 = vadd.f32 %v1273, %v1284
  %v1294 = vadd.f32 %v1274, %v1284
  %v1295 = vadd.f32 %v1275, %v1284
  %v1296 = vadd.f32 %v1276, %v1284
  %v1297 = vadd.f32 %v1277, %v1284
  %v1298 = vadd.f32 %v1278, %v1284
  %v1299 = vadd.f32 %v1279, %v1284
  %v1300 = vadd.f32 %v1280, %v1284
  %v1301 = vadd.f32 %v280, %v1285
  %v1302 = vadd.f32 %v281, %v1286
  %v1303 = vadd.f32 %v282, %v1287
  %v1304 = vadd.f32 %v283, %v1288
  %v1305 = vadd.f32 %v284, %v1289
  %v1306 = vadd.f32 %v285, %v1290
  %v1307 = vadd.f32 %v286, %v1291
  %v1308 = vadd.f32 %v287, %v1292
  %v1309 = vadd.f32 %v288, %v1293
  %v1310 = vadd.f32 %v289, %v1294
  %v1311 = vadd.f32 %v290, %v1295
  %v1312 = vadd.f32 %v291, %v1296
  %v1313 = vadd.f32 %v292, %v1297
  %v1314 = vadd.f32 %v293, %v1298
  %v1315 = vadd.f32 %v294, %v1299
  %v1316 = vadd.f32 %v295, %v1300
  %v1317 = vpack.c.bf16 %v1302, %v1301
  %v1318 = vpack.c.bf16 %v1304, %v1303
  %v1319 = vpack.c.bf16 %v1306, %v1305
  %v1320 = vpack.c.bf16 %v1308, %v1307
  %v1321 = vpack.c.bf16 %v1310, %v1309
  %v1322 = vpack.c.bf16 %v1312, %v1311
  %v1323 = vpack.c.bf16 %v1314, %v1313
  %v1324 = vpack.c.bf16 %v1316, %v1315
  %v1325 = vld [vmem:[%s3] sm:$0xf]
  %v1326 = vld [vmem:[%s3 + $0x4] sm:$0xf]
  %v1327 = vld [vmem:[%s3 + $0x8] sm:$0xf]
  %v1328 = vld [vmem:[%s3 + $0xc] sm:$0xf]
  %v1333 = vunpack.c.l.b16 %v1325
  %v1334 = vunpack.c.l.b16 %v1326
  %v1335 = vunpack.c.l.b16 %v1327
  %v1336 = vunpack.c.l.b16 %v1328
  %v1337 = vpack.c.b16 %v1334, %v1333
  %v1338 = vpack.c.b16 %v1336, %v1335
  %v1342 = vsel %vm46, %v1317, 0
  %v1345 = vsel %vm46, %v1318, 0
  %v1348 = vsel %vm46, %v1319, 0
  %v1351 = vsel %vm46, %v1320, 0
  %v1354 = vsel %vm46, %v1321, 0
  %v1357 = vsel %vm46, %v1322, 0
  %v1360 = vsel %vm46, %v1323, 0
  %v1363 = vsel %vm46, %v1324, 0
  %1365 = vmatprep.subr.bf16.mxu0 0
  %1366 = vmatpush1.bf16.msra.mxu0 0
  %1367 = vmatprep.subr.bf16.mxu0 0
  %1368 = vmatpush1.bf16.msra.mxu0 0
  %1369 = vmatprep.subr.bf16.mxu0 0
  %1370 = vmatpush1.bf16.msra.mxu0 0
  %1371 = vmatprep.subr.bf16.mxu0 0
  %1372 = vmatpush1.bf16.msra.mxu0 0
  %1373 = vmatprep.subr.bf16.mxu0 0
  %1374 = vmatpush1.bf16.msra.mxu0 0
  %1375 = vmatprep.subr.bf16.mxu0 0
  %1376 = vmatpush1.bf16.msra.mxu0 0
  %1377 = vmatprep.subr.bf16.mxu0 0
  %1378 = vmatpush1.bf16.msra.mxu0 %v1338
  %1379 = vmatprep.subr.bf16.mxu0 0
  %1380 = vmatpush1.bf16.msra.mxu0 %v1337
  %1381 = vmatprep.subr.bf16.mxu0 0
  %1382 = vmatpush2.bf16.msra.mxu0 0
  %1383 = vmatprep.subr.bf16.mxu0 0
  %1384 = vmatpush2.bf16.msra.mxu0 0
  %1385 = vmatprep.subr.bf16.mxu0 0
  %1386 = vmatpush2.bf16.msra.mxu0 0
  %1387 = vmatprep.subr.bf16.mxu0 0
  %1388 = vmatpush2.bf16.msra.mxu0 0
  %1389 = vmatprep.subr.bf16.mxu0 0
  %1390 = vmatpush2.bf16.msra.mxu0 0
  %1391 = vmatprep.subr.bf16.mxu0 0
  %1392 = vmatpush2.bf16.msra.mxu0 0
  %1393 = vmatprep.subr.bf16.mxu0 0
  %1394 = vmatpush2.bf16.msra.mxu0 0
  %1395 = vmatprep.subr.bf16.mxu0 0
  %1396 = vmatpush2.bf16.msra.mxu0 0
  %1397 = vmatprep.mubr.bf16.mxu0 0
  %1398 = vmatmul.mubr.bf16.gmra.mxu0 %v1342
  %v1399 = vpop.f32.mrf.mxu0
  %v1400 = vadd.f32 0.0, %v1399
  %v1401 = vpop.f32.mrf.mxu0
  %v1402 = vpop.f32.mrf.mxu0
  %v1403 = vadd.f32 0.0, %v1402
  %v1404 = vpop.f32.mrf.mxu0
  %1405 = vmatprep.mubr.bf16.mxu0 0
  %1406 = vmatmul.mubr.bf16.gmra.mxu0 %v1345
  %v1407 = vpop.f32.mrf.mxu0
  %v1408 = vadd.f32 0.0, %v1407
  %v1409 = vpop.f32.mrf.mxu0
  %v1410 = vpop.f32.mrf.mxu0
  %v1411 = vadd.f32 0.0, %v1410
  %v1412 = vpop.f32.mrf.mxu0
  %1413 = vmatprep.mubr.bf16.mxu0 0
  %1414 = vmatmul.mubr.bf16.gmra.mxu0 %v1348
  %v1415 = vpop.f32.mrf.mxu0
  %v1416 = vadd.f32 0.0, %v1415
  %v1417 = vpop.f32.mrf.mxu0
  %v1418 = vpop.f32.mrf.mxu0
  %v1419 = vadd.f32 0.0, %v1418
  %v1420 = vpop.f32.mrf.mxu0
  %1421 = vmatprep.mubr.bf16.mxu0 0
  %1422 = vmatmul.mubr.bf16.gmra.mxu0 %v1351
  %v1423 = vpop.f32.mrf.mxu0
  %v1424 = vadd.f32 0.0, %v1423
  %v1425 = vpop.f32.mrf.mxu0
  %v1426 = vpop.f32.mrf.mxu0
  %v1427 = vadd.f32 0.0, %v1426
  %v1428 = vpop.f32.mrf.mxu0
  %1429 = vmatprep.mubr.bf16.mxu0 0
  %1430 = vmatmul.mubr.bf16.gmra.mxu0 %v1354
  %v1431 = vpop.f32.mrf.mxu0
  %v1432 = vadd.f32 0.0, %v1431
  %v1433 = vpop.f32.mrf.mxu0
  %v1434 = vpop.f32.mrf.mxu0
  %v1435 = vadd.f32 0.0, %v1434
  %v1436 = vpop.f32.mrf.mxu0
  %1437 = vmatprep.mubr.bf16.mxu0 0
  %1438 = vmatmul.mubr.bf16.gmra.mxu0 %v1357
  %v1439 = vpop.f32.mrf.mxu0
  %v1440 = vadd.f32 0.0, %v1439
  %v1441 = vpop.f32.mrf.mxu0
  %v1442 = vpop.f32.mrf.mxu0
  %v1443 = vadd.f32 0.0, %v1442
  %v1444 = vpop.f32.mrf.mxu0
  %1445 = vmatprep.mubr.bf16.mxu0 0
  %1446 = vmatmul.mubr.bf16.gmra.mxu0 %v1360
  %v1447 = vpop.f32.mrf.mxu0
  %v1448 = vadd.f32 0.0, %v1447
  %v1449 = vpop.f32.mrf.mxu0
  %v1450 = vpop.f32.mrf.mxu0
  %v1451 = vadd.f32 0.0, %v1450
  %v1452 = vpop.f32.mrf.mxu0
  %1453 = vmatprep.mubr.bf16.mxu0 0
  %1454 = vmatmul.mubr.bf16.gmra.mxu0 %v1363
  %v1455 = vpop.f32.mrf.mxu0
  %v1456 = vadd.f32 0.0, %v1455
  %v1457 = vpop.f32.mrf.mxu0
  %v1458 = vpop.f32.mrf.mxu0
  %v1459 = vadd.f32 0.0, %v1458
  %v1460 = vpop.f32.mrf.mxu0
  %1461 = vdwg.mxu0
  %v1462 = vpack.c.bf16 %v1403, %v1400
  %v1463 = vpack.c.bf16 %v1411, %v1408
  %v1464 = vpack.c.bf16 %v1419, %v1416
  %v1465 = vpack.c.bf16 %v1427, %v1424
  %v1466 = vlaneseq
  %v1467 = vshrl.u32 %v1466, 7
  %v1468 = vsub.s32 0, %v1467
  %v1469 = vrot.slane %v45, %v1468
  %v1470 = vmul.f32 %v1400, %v1469
  %v1471 = vmul.f32 %v1403, %v1469
  %v1472 = vmul.f32 %v1408, %v1469
  %v1473 = vmul.f32 %v1411, %v1469
  %v1474 = vmul.f32 %v1416, %v1469
  %v1475 = vmul.f32 %v1419, %v1469
  %v1476 = vmul.f32 %v1424, %v1469
  %v1477 = vmul.f32 %v1427, %v1469
  %v1478 = vpack.c.bf16 %v1471, %v1470
  %v1479 = vpack.c.bf16 %v1473, %v1472
  %v1480 = vpack.c.bf16 %v1475, %v1474
  %v1481 = vpack.c.bf16 %v1477, %v1476
  %1486 = vrot.lane.b32.xlu0 %v1462, 96
  %v1487 = vpop.permute.xlu0 %1486
  %1488 = vrot.lane.b32.xlu0 %v1463, 96
  %v1489 = vpop.permute.xlu0 %1488
  %1490 = vrot.lane.b32.xlu0 %v1464, 96
  %v1491 = vpop.permute.xlu0 %1490
  %1492 = vrot.lane.b32.xlu0 %v1465, 96
  %v1493 = vpop.permute.xlu0 %1492
  %v1495 = vsel %vm46, %v1478, 0
  %v1498 = vsel %vm46, %v1479, 0
  %v1501 = vsel %vm46, %v1480, 0
  %v1504 = vsel %vm46, %v1481, 0
  %v1507 = vsel %vm46, %v1487, 0
  %v1510 = vsel %vm46, %v1489, 0
  %v1513 = vsel %vm46, %v1491, 0
  %v1516 = vsel %vm46, %v1493, 0
  %1518 = vmatprep.subr.bf16.mxu0 0
  %1519 = vmatpush1.bf16.xpose.msra.mxu0 0
  %1520 = vmatprep.subr.bf16.mxu0 0
  %1521 = vmatpush1.bf16.xpose.msra.mxu0 0
  %1522 = vmatprep.subr.bf16.mxu0 0
  %1523 = vmatpush1.bf16.xpose.msra.mxu0 0
  %1524 = vmatprep.subr.bf16.mxu0 0
  %1525 = vmatpush1.bf16.xpose.msra.mxu0 0
  %1526 = vmatprep.subr.bf16.mxu0 0
  %1527 = vmatpush1.bf16.xpose.msra.mxu0 %v1516
  %1528 = vmatprep.subr.bf16.mxu0 0
  %1529 = vmatpush1.bf16.xpose.msra.mxu0 %v1513
  %1530 = vmatprep.subr.bf16.mxu0 0
  %1531 = vmatpush1.bf16.xpose.msra.mxu0 %v1510
  %1532 = vmatprep.subr.bf16.mxu0 0
  %1533 = vmatpush1.bf16.xpose.msra.mxu0 %v1507
  %1534 = vmatprep.subr.bf16.mxu0 0
  %1535 = vmatpush2.bf16.xpose.msra.mxu0 0
  %1536 = vmatprep.subr.bf16.mxu0 0
  %1537 = vmatpush2.bf16.xpose.msra.mxu0 0
  %1538 = vmatprep.subr.bf16.mxu0 0
  %1539 = vmatpush2.bf16.xpose.msra.mxu0 0
  %1540 = vmatprep.subr.bf16.mxu0 0
  %1541 = vmatpush2.bf16.xpose.msra.mxu0 0
  %1542 = vmatprep.subr.bf16.mxu0 0
  %1543 = vmatpush2.bf16.xpose.msra.mxu0 0
  %1544 = vmatprep.subr.bf16.mxu0 0
  %1545 = vmatpush2.bf16.xpose.msra.mxu0 0
  %1546 = vmatprep.subr.bf16.mxu0 0
  %1547 = vmatpush2.bf16.xpose.msra.mxu0 0
  %1548 = vmatprep.subr.bf16.mxu0 0
  %1549 = vmatpush2.bf16.xpose.msra.mxu0 0
  %1550 = vmatprep.mubr.bf16.mxu0 0
  %1551 = vmatmul.mubr.bf16.gmra.mxu0 %v1495
  %v1552 = vpop.f32.mrf.mxu0
  %v1553 = vadd.f32 0.0, %v1552
  %v1554 = vpop.f32.mrf.mxu0
  %v1555 = vpop.f32.mrf.mxu0
  %v1556 = vadd.f32 0.0, %v1555
  %v1557 = vpop.f32.mrf.mxu0
  %1558 = vmatprep.mubr.bf16.mxu0 0
  %1559 = vmatmul.mubr.bf16.gmra.mxu0 %v1498
  %v1560 = vpop.f32.mrf.mxu0
  %v1561 = vadd.f32 0.0, %v1560
  %v1562 = vpop.f32.mrf.mxu0
  %v1563 = vpop.f32.mrf.mxu0
  %v1564 = vadd.f32 0.0, %v1563
  %v1565 = vpop.f32.mrf.mxu0
  %1566 = vmatprep.mubr.bf16.mxu0 0
  %1567 = vmatmul.mubr.bf16.gmra.mxu0 %v1501
  %v1568 = vpop.f32.mrf.mxu0
  %v1569 = vadd.f32 0.0, %v1568
  %v1570 = vpop.f32.mrf.mxu0
  %v1571 = vpop.f32.mrf.mxu0
  %v1572 = vadd.f32 0.0, %v1571
  %v1573 = vpop.f32.mrf.mxu0
  %1574 = vmatprep.mubr.bf16.mxu0 0
  %1575 = vmatmul.mubr.bf16.gmra.mxu0 %v1504
  %v1576 = vpop.f32.mrf.mxu0
  %v1577 = vadd.f32 0.0, %v1576
  %v1578 = vpop.f32.mrf.mxu0
  %v1579 = vpop.f32.mrf.mxu0
  %v1580 = vadd.f32 0.0, %v1579
  %v1581 = vpop.f32.mrf.mxu0
  %1582 = vdwg.mxu0
  %vm1583 = vcmask 523264
  %v1584 = vsel %vm1583, %v1553, -inf
  %1585 = vmax.xlane.f32.xlu0 %v1584
  %v1586 = vpop.xlane.xlu0 %1585
  %v1587 = vsel %vm1583, %v1556, -inf
  %1588 = vmax.xlane.f32.xlu0 %v1587
  %v1589 = vpop.xlane.xlu0 %1588
  %v1590 = vsel %vm1583, %v1561, -inf
  %1591 = vmax.xlane.f32.xlu0 %v1590
  %v1592 = vpop.xlane.xlu0 %1591
  %v1593 = vsel %vm1583, %v1564, -inf
  %1594 = vmax.xlane.f32.xlu0 %v1593
  %v1595 = vpop.xlane.xlu0 %1594
  %v1596 = vsel %vm1583, %v1569, -inf
  %1597 = vmax.xlane.f32.xlu0 %v1596
  %v1598 = vpop.xlane.xlu0 %1597
  %v1599 = vsel %vm1583, %v1572, -inf
  %1600 = vmax.xlane.f32.xlu0 %v1599
  %v1601 = vpop.xlane.xlu0 %1600
  %v1602 = vsel %vm1583, %v1577, -inf
  %1603 = vmax.xlane.f32.xlu0 %v1602
  %v1604 = vpop.xlane.xlu0 %1603
  %v1605 = vsel %vm1583, %v1580, -inf
  %1606 = vmax.xlane.f32.xlu0 %v1605
  %v1607 = vpop.xlane.xlu0 %1606
  %v1608 = vsub.f32 %v1553, %v1586
  %v1609 = vsub.f32 %v1556, %v1589
  %v1610 = vsub.f32 %v1561, %v1592
  %v1611 = vsub.f32 %v1564, %v1595
  %v1612 = vsub.f32 %v1569, %v1598
  %v1613 = vsub.f32 %v1572, %v1601
  %v1614 = vsub.f32 %v1577, %v1604
  %v1615 = vsub.f32 %v1580, %v1607
  %v1616 = vmul.f32 %v1608, 1.442695
  %v1617 = vpow.pop %v1616
  %v1618 = vmul.f32 %v1609, 1.442695
  %v1619 = vpow.pop %v1618
  %v1620 = vmul.f32 %v1610, 1.442695
  %v1621 = vpow.pop %v1620
  %v1622 = vmul.f32 %v1611, 1.442695
  %v1623 = vpow.pop %v1622
  %v1624 = vmul.f32 %v1612, 1.442695
  %v1625 = vpow.pop %v1624
  %v1626 = vmul.f32 %v1613, 1.442695
  %v1627 = vpow.pop %v1626
  %v1628 = vmul.f32 %v1614, 1.442695
  %v1629 = vpow.pop %v1628
  %v1630 = vmul.f32 %v1615, 1.442695
  %v1631 = vpow.pop %v1630
  %v1632 = vsel %vm1583, %v1617, 0.0
  %1633 = vadd.xlane.f32.xlu0 %v1632
  %v1634 = vpop.xlane.xlu0 %1633
  %v1635 = vsel %vm1583, %v1619, 0.0
  %1636 = vadd.xlane.f32.xlu0 %v1635
  %v1637 = vpop.xlane.xlu0 %1636
  %v1638 = vsel %vm1583, %v1621, 0.0
  %1639 = vadd.xlane.f32.xlu0 %v1638
  %v1640 = vpop.xlane.xlu0 %1639
  %v1641 = vsel %vm1583, %v1623, 0.0
  %1642 = vadd.xlane.f32.xlu0 %v1641
  %v1643 = vpop.xlane.xlu0 %1642
  %v1644 = vsel %vm1583, %v1625, 0.0
  %1645 = vadd.xlane.f32.xlu0 %v1644
  %v1646 = vpop.xlane.xlu0 %1645
  %v1647 = vsel %vm1583, %v1627, 0.0
  %1648 = vadd.xlane.f32.xlu0 %v1647
  %v1649 = vpop.xlane.xlu0 %1648
  %v1650 = vsel %vm1583, %v1629, 0.0
  %1651 = vadd.xlane.f32.xlu0 %v1650
  %v1652 = vpop.xlane.xlu0 %1651
  %v1653 = vsel %vm1583, %v1631, 0.0
  %1654 = vadd.xlane.f32.xlu0 %v1653
  %v1655 = vpop.xlane.xlu0 %1654
  %v1656 = vrcp.pop %v1634
  %v1657 = vrcp.pop %v1637
  %v1658 = vrcp.pop %v1640
  %v1659 = vrcp.pop %v1643
  %v1660 = vrcp.pop %v1646
  %v1661 = vrcp.pop %v1649
  %v1662 = vrcp.pop %v1652
  %v1663 = vrcp.pop %v1655
  %v1664 = vmul.f32 %v1617, %v1656
  %v1665 = vmul.f32 %v1619, %v1657
  %v1666 = vmul.f32 %v1621, %v1658
  %v1667 = vmul.f32 %v1623, %v1659
  %v1668 = vmul.f32 %v1625, %v1660
  %v1669 = vmul.f32 %v1627, %v1661
  %v1670 = vmul.f32 %v1629, %v1662
  %v1671 = vmul.f32 %v1631, %v1663
  %v1672 = vpack.c.bf16 %v1665, %v1664
  %v1673 = vpack.c.bf16 %v1667, %v1666
  %v1674 = vpack.c.bf16 %v1669, %v1668
  %v1675 = vpack.c.bf16 %v1671, %v1670
  %1676 = vrot.lane.b32.xlu0 %v1462, 64
  %v1677 = vpop.permute.xlu0 %1676
  %1678 = vrot.lane.b32.xlu0 %v1463, 64
  %v1679 = vpop.permute.xlu0 %1678
  %1680 = vrot.lane.b32.xlu0 %v1464, 64
  %v1681 = vpop.permute.xlu0 %1680
  %1682 = vrot.lane.b32.xlu0 %v1465, 64
  %v1683 = vpop.permute.xlu0 %1682
  %v1689 = vsel %vm1583, %v1672, 0
  %v1692 = vsel %vm1583, %v1673, 0
  %v1695 = vsel %vm1583, %v1674, 0
  %v1698 = vsel %vm1583, %v1675, 0
  %1700 = vmatprep.subr.bf16.mxu0 0
  %1701 = vmatpush1.bf16.msra.mxu0 0
  %1702 = vmatprep.subr.bf16.mxu0 0
  %1703 = vmatpush1.bf16.msra.mxu0 0
  %1704 = vmatprep.subr.bf16.mxu0 0
  %1705 = vmatpush1.bf16.msra.mxu0 0
  %1706 = vmatprep.subr.bf16.mxu0 0
  %1707 = vmatpush1.bf16.msra.mxu0 0
  %1708 = vmatprep.subr.bf16.mxu0 0
  %1709 = vmatpush1.bf16.msra.mxu0 %v1683
  %1710 = vmatprep.subr.bf16.mxu0 0
  %1711 = vmatpush1.bf16.msra.mxu0 %v1681
  %1712 = vmatprep.subr.bf16.mxu0 0
  %1713 = vmatpush1.bf16.msra.mxu0 %v1679
  %1714 = vmatprep.subr.bf16.mxu0 0
  %1715 = vmatpush1.bf16.msra.mxu0 %v1677
  %1716 = vmatprep.subr.bf16.mxu0 0
  %1717 = vmatpush2.bf16.msra.mxu0 0
  %1718 = vmatprep.subr.bf16.mxu0 0
  %1719 = vmatpush2.bf16.msra.mxu0 0
  %1720 = vmatprep.subr.bf16.mxu0 0
  %1721 = vmatpush2.bf16.msra.mxu0 0
  %1722 = vmatprep.subr.bf16.mxu0 0
  %1723 = vmatpush2.bf16.msra.mxu0 0
  %1724 = vmatprep.subr.bf16.mxu0 0
  %1725 = vmatpush2.bf16.msra.mxu0 0
  %1726 = vmatprep.subr.bf16.mxu0 0
  %1727 = vmatpush2.bf16.msra.mxu0 0
  %1728 = vmatprep.subr.bf16.mxu0 0
  %1729 = vmatpush2.bf16.msra.mxu0 0
  %1730 = vmatprep.subr.bf16.mxu0 0
  %1731 = vmatpush2.bf16.msra.mxu0 0
  %1732 = vmatprep.mubr.bf16.mxu0 0
  %1733 = vmatmul.mubr.bf16.gmra.mxu0 %v1689
  %v1734 = vpop.f32.mrf.mxu0
  %v1735 = vadd.f32 0.0, %v1734
  %v1736 = vpop.f32.mrf.mxu0
  %v1737 = vpop.f32.mrf.mxu0
  %v1738 = vadd.f32 0.0, %v1737
  %v1739 = vpop.f32.mrf.mxu0
  %1740 = vmatprep.mubr.bf16.mxu0 0
  %1741 = vmatmul.mubr.bf16.gmra.mxu0 %v1692
  %v1742 = vpop.f32.mrf.mxu0
  %v1743 = vadd.f32 0.0, %v1742
  %v1744 = vpop.f32.mrf.mxu0
  %v1745 = vpop.f32.mrf.mxu0
  %v1746 = vadd.f32 0.0, %v1745
  %v1747 = vpop.f32.mrf.mxu0
  %1748 = vmatprep.mubr.bf16.mxu0 0
  %1749 = vmatmul.mubr.bf16.gmra.mxu0 %v1695
  %v1750 = vpop.f32.mrf.mxu0
  %v1751 = vadd.f32 0.0, %v1750
  %v1752 = vpop.f32.mrf.mxu0
  %v1753 = vpop.f32.mrf.mxu0
  %v1754 = vadd.f32 0.0, %v1753
  %v1755 = vpop.f32.mrf.mxu0
  %1756 = vmatprep.mubr.bf16.mxu0 0
  %1757 = vmatmul.mubr.bf16.gmra.mxu0 %v1698
  %v1758 = vpop.f32.mrf.mxu0
  %v1759 = vadd.f32 0.0, %v1758
  %v1760 = vpop.f32.mrf.mxu0
  %v1761 = vpop.f32.mrf.mxu0
  %v1762 = vadd.f32 0.0, %v1761
  %v1763 = vpop.f32.mrf.mxu0
  %1764 = vdwg.mxu0
  %v1765 = vmul.f32 %v1735, %v1469
  %v1766 = vmul.f32 %v1738, %v1469
  %v1767 = vmul.f32 %v1743, %v1469
  %v1768 = vmul.f32 %v1746, %v1469
  %v1769 = vmul.f32 %v1751, %v1469
  %v1770 = vmul.f32 %v1754, %v1469
  %v1771 = vmul.f32 %v1759, %v1469
  %v1772 = vmul.f32 %v1762, %v1469
  %v1773 = vadd.f32 %v1765, 0.0
  %v1774 = vadd.f32 %v1766, 0.0
  %v1775 = vadd.f32 %v1767, 0.0
  %v1776 = vadd.f32 %v1768, 0.0
  %v1777 = vadd.f32 %v1769, 0.0
  %v1778 = vadd.f32 %v1770, 0.0
  %v1779 = vadd.f32 %v1771, 0.0
  %v1780 = vadd.f32 %v1772, 0.0
  %v1781 = vlaneseq
  %v1782 = vshrl.u32 %v1781, 7
  %v1783 = vsub.s32 1, %v1782
  %v1784 = vrot.slane %v45, %v1783
  %v1785 = vmul.f32 %v1400, %v1784
  %v1786 = vmul.f32 %v1403, %v1784
  %v1787 = vmul.f32 %v1408, %v1784
  %v1788 = vmul.f32 %v1411, %v1784
  %v1789 = vmul.f32 %v1416, %v1784
  %v1790 = vmul.f32 %v1419, %v1784
  %v1791 = vmul.f32 %v1424, %v1784
  %v1792 = vmul.f32 %v1427, %v1784
  %v1793 = vpack.c.bf16 %v1786, %v1785
  %v1794 = vpack.c.bf16 %v1788, %v1787
  %v1795 = vpack.c.bf16 %v1790, %v1789
  %v1796 = vpack.c.bf16 %v1792, %v1791
  %v1798 = vsel %vm46, %v1793, 0
  %v1801 = vsel %vm46, %v1794, 0
  %v1804 = vsel %vm46, %v1795, 0
  %v1807 = vsel %vm46, %v1796, 0
  %1809 = vmatprep.subr.bf16.mxu0 0
  %1810 = vmatpush1.bf16.xpose.msra.mxu0 0
  %1811 = vmatprep.subr.bf16.mxu0 0
  %1812 = vmatpush1.bf16.xpose.msra.mxu0 0
  %1813 = vmatprep.subr.bf16.mxu0 0
  %1814 = vmatpush1.bf16.xpose.msra.mxu0 0
  %1815 = vmatprep.subr.bf16.mxu0 0
  %1816 = vmatpush1.bf16.xpose.msra.mxu0 0
  %1817 = vmatprep.subr.bf16.mxu0 0
  %1818 = vmatpush1.bf16.xpose.msra.mxu0 %v1516
  %1819 = vmatprep.subr.bf16.mxu0 0
  %1820 = vmatpush1.bf16.xpose.msra.mxu0 %v1513
  %1821 = vmatprep.subr.bf16.mxu0 0
  %1822 = vmatpush1.bf16.xpose.msra.mxu0 %v1510
  %1823 = vmatprep.subr.bf16.mxu0 0
  %1824 = vmatpush1.bf16.xpose.msra.mxu0 %v1507
  %1825 = vmatprep.subr.bf16.mxu0 0
  %1826 = vmatpush2.bf16.xpose.msra.mxu0 0
  %1827 = vmatprep.subr.bf16.mxu0 0
  %1828 = vmatpush2.bf16.xpose.msra.mxu0 0
  %1829 = vmatprep.subr.bf16.mxu0 0
  %1830 = vmatpush2.bf16.xpose.msra.mxu0 0
  %1831 = vmatprep.subr.bf16.mxu0 0
  %1832 = vmatpush2.bf16.xpose.msra.mxu0 0
  %1833 = vmatprep.subr.bf16.mxu0 0
  %1834 = vmatpush2.bf16.xpose.msra.mxu0 0
  %1835 = vmatprep.subr.bf16.mxu0 0
  %1836 = vmatpush2.bf16.xpose.msra.mxu0 0
  %1837 = vmatprep.subr.bf16.mxu0 0
  %1838 = vmatpush2.bf16.xpose.msra.mxu0 0
  %1839 = vmatprep.subr.bf16.mxu0 0
  %1840 = vmatpush2.bf16.xpose.msra.mxu0 0
  %1841 = vmatprep.mubr.bf16.mxu0 0
  %1842 = vmatmul.mubr.bf16.gmra.mxu0 %v1798
  %v1843 = vpop.f32.mrf.mxu0
  %v1844 = vadd.f32 0.0, %v1843
  %v1845 = vpop.f32.mrf.mxu0
  %v1846 = vpop.f32.mrf.mxu0
  %v1847 = vadd.f32 0.0, %v1846
  %v1848 = vpop.f32.mrf.mxu0
  %1849 = vmatprep.mubr.bf16.mxu0 0
  %1850 = vmatmul.mubr.bf16.gmra.mxu0 %v1801
  %v1851 = vpop.f32.mrf.mxu0
  %v1852 = vadd.f32 0.0, %v1851
  %v1853 = vpop.f32.mrf.mxu0
  %v1854 = vpop.f32.mrf.mxu0
  %v1855 = vadd.f32 0.0, %v1854
  %v1856 = vpop.f32.mrf.mxu0
  %1857 = vmatprep.mubr.bf16.mxu0 0
  %1858 = vmatmul.mubr.bf16.gmra.mxu0 %v1804
  %v1859 = vpop.f32.mrf.mxu0
  %v1860 = vadd.f32 0.0, %v1859
  %v1861 = vpop.f32.mrf.mxu0
  %v1862 = vpop.f32.mrf.mxu0
  %v1863 = vadd.f32 0.0, %v1862
  %v1864 = vpop.f32.mrf.mxu0
  %1865 = vmatprep.mubr.bf16.mxu0 0
  %1866 = vmatmul.mubr.bf16.gmra.mxu0 %v1807
  %v1867 = vpop.f32.mrf.mxu0
  %v1868 = vadd.f32 0.0, %v1867
  %v1869 = vpop.f32.mrf.mxu0
  %v1870 = vpop.f32.mrf.mxu0
  %v1871 = vadd.f32 0.0, %v1870
  %v1872 = vpop.f32.mrf.mxu0
  %1873 = vdwg.mxu0
  %v1874 = vsel %vm1583, %v1844, -inf
  %1875 = vmax.xlane.f32.xlu0 %v1874
  %v1876 = vpop.xlane.xlu0 %1875
  %v1877 = vsel %vm1583, %v1847, -inf
  %1878 = vmax.xlane.f32.xlu0 %v1877
  %v1879 = vpop.xlane.xlu0 %1878
  %v1880 = vsel %vm1583, %v1852, -inf
  %1881 = vmax.xlane.f32.xlu0 %v1880
  %v1882 = vpop.xlane.xlu0 %1881
  %v1883 = vsel %vm1583, %v1855, -inf
  %1884 = vmax.xlane.f32.xlu0 %v1883
  %v1885 = vpop.xlane.xlu0 %1884
  %v1886 = vsel %vm1583, %v1860, -inf
  %1887 = vmax.xlane.f32.xlu0 %v1886
  %v1888 = vpop.xlane.xlu0 %1887
  %v1889 = vsel %vm1583, %v1863, -inf
  %1890 = vmax.xlane.f32.xlu0 %v1889
  %v1891 = vpop.xlane.xlu0 %1890
  %v1892 = vsel %vm1583, %v1868, -inf
  %1893 = vmax.xlane.f32.xlu0 %v1892
  %v1894 = vpop.xlane.xlu0 %1893
  %v1895 = vsel %vm1583, %v1871, -inf
  %1896 = vmax.xlane.f32.xlu0 %v1895
  %v1897 = vpop.xlane.xlu0 %1896
  %v1898 = vsub.f32 %v1844, %v1876
  %v1899 = vsub.f32 %v1847, %v1879
  %v1900 = vsub.f32 %v1852, %v1882
  %v1901 = vsub.f32 %v1855, %v1885
  %v1902 = vsub.f32 %v1860, %v1888
  %v1903 = vsub.f32 %v1863, %v1891
  %v1904 = vsub.f32 %v1868, %v1894
  %v1905 = vsub.f32 %v1871, %v1897
  %v1906 = vmul.f32 %v1898, 1.442695
  %v1907 = vpow.pop %v1906
  %v1908 = vmul.f32 %v1899, 1.442695
  %v1909 = vpow.pop %v1908
  %v1910 = vmul.f32 %v1900, 1.442695
  %v1911 = vpow.pop %v1910
  %v1912 = vmul.f32 %v1901, 1.442695
  %v1913 = vpow.pop %v1912
  %v1914 = vmul.f32 %v1902, 1.442695
  %v1915 = vpow.pop %v1914
  %v1916 = vmul.f32 %v1903, 1.442695
  %v1917 = vpow.pop %v1916
  %v1918 = vmul.f32 %v1904, 1.442695
  %v1919 = vpow.pop %v1918
  %v1920 = vmul.f32 %v1905, 1.442695
  %v1921 = vpow.pop %v1920
  %v1922 = vsel %vm1583, %v1907, 0.0
  %1923 = vadd.xlane.f32.xlu0 %v1922
  %v1924 = vpop.xlane.xlu0 %1923
  %v1925 = vsel %vm1583, %v1909, 0.0
  %1926 = vadd.xlane.f32.xlu0 %v1925
  %v1927 = vpop.xlane.xlu0 %1926
  %v1928 = vsel %vm1583, %v1911, 0.0
  %1929 = vadd.xlane.f32.xlu0 %v1928
  %v1930 = vpop.xlane.xlu0 %1929
  %v1931 = vsel %vm1583, %v1913, 0.0
  %1932 = vadd.xlane.f32.xlu0 %v1931
  %v1933 = vpop.xlane.xlu0 %1932
  %v1934 = vsel %vm1583, %v1915, 0.0
  %1935 = vadd.xlane.f32.xlu0 %v1934
  %v1936 = vpop.xlane.xlu0 %1935
  %v1937 = vsel %vm1583, %v1917, 0.0
  %1938 = vadd.xlane.f32.xlu0 %v1937
  %v1939 = vpop.xlane.xlu0 %1938
  %v1940 = vsel %vm1583, %v1919, 0.0
  %1941 = vadd.xlane.f32.xlu0 %v1940
  %v1942 = vpop.xlane.xlu0 %1941
  %v1943 = vsel %vm1583, %v1921, 0.0
  %1944 = vadd.xlane.f32.xlu0 %v1943
  %v1945 = vpop.xlane.xlu0 %1944
  %v1946 = vrcp.pop %v1924
  %v1947 = vrcp.pop %v1927
  %v1948 = vrcp.pop %v1930
  %v1949 = vrcp.pop %v1933
  %v1950 = vrcp.pop %v1936
  %v1951 = vrcp.pop %v1939
  %v1952 = vrcp.pop %v1942
  %v1953 = vrcp.pop %v1945
  %v1954 = vmul.f32 %v1907, %v1946
  %v1955 = vmul.f32 %v1909, %v1947
  %v1956 = vmul.f32 %v1911, %v1948
  %v1957 = vmul.f32 %v1913, %v1949
  %v1958 = vmul.f32 %v1915, %v1950
  %v1959 = vmul.f32 %v1917, %v1951
  %v1960 = vmul.f32 %v1919, %v1952
  %v1961 = vmul.f32 %v1921, %v1953
  %v1962 = vpack.c.bf16 %v1955, %v1954
  %v1963 = vpack.c.bf16 %v1957, %v1956
  %v1964 = vpack.c.bf16 %v1959, %v1958
  %v1965 = vpack.c.bf16 %v1961, %v1960
  %v1967 = vsel %vm1583, %v1962, 0
  %v1970 = vsel %vm1583, %v1963, 0
  %v1973 = vsel %vm1583, %v1964, 0
  %v1976 = vsel %vm1583, %v1965, 0
  %1978 = vmatprep.subr.bf16.mxu0 0
  %1979 = vmatpush1.bf16.msra.mxu0 0
  %1980 = vmatprep.subr.bf16.mxu0 0
  %1981 = vmatpush1.bf16.msra.mxu0 0
  %1982 = vmatprep.subr.bf16.mxu0 0
  %1983 = vmatpush1.bf16.msra.mxu0 0
  %1984 = vmatprep.subr.bf16.mxu0 0
  %1985 = vmatpush1.bf16.msra.mxu0 0
  %1986 = vmatprep.subr.bf16.mxu0 0
  %1987 = vmatpush1.bf16.msra.mxu0 %v1683
  %1988 = vmatprep.subr.bf16.mxu0 0
  %1989 = vmatpush1.bf16.msra.mxu0 %v1681
  %1990 = vmatprep.subr.bf16.mxu0 0
  %1991 = vmatpush1.bf16.msra.mxu0 %v1679
  %1992 = vmatprep.subr.bf16.mxu0 0
  %1993 = vmatpush1.bf16.msra.mxu0 %v1677
  %1994 = vmatprep.subr.bf16.mxu0 0
  %1995 = vmatpush2.bf16.msra.mxu0 0
  %1996 = vmatprep.subr.bf16.mxu0 0
  %1997 = vmatpush2.bf16.msra.mxu0 0
  %1998 = vmatprep.subr.bf16.mxu0 0
  %1999 = vmatpush2.bf16.msra.mxu0 0
  %2000 = vmatprep.subr.bf16.mxu0 0
  %2001 = vmatpush2.bf16.msra.mxu0 0
  %2002 = vmatprep.subr.bf16.mxu0 0
  %2003 = vmatpush2.bf16.msra.mxu0 0
  %2004 = vmatprep.subr.bf16.mxu0 0
  %2005 = vmatpush2.bf16.msra.mxu0 0
  %2006 = vmatprep.subr.bf16.mxu0 0
  %2007 = vmatpush2.bf16.msra.mxu0 0
  %2008 = vmatprep.subr.bf16.mxu0 0
  %2009 = vmatpush2.bf16.msra.mxu0 0
  %2010 = vmatprep.mubr.bf16.mxu0 0
  %2011 = vmatmul.mubr.bf16.gmra.mxu0 %v1967
  %v2012 = vpop.f32.mrf.mxu0
  %v2013 = vadd.f32 0.0, %v2012
  %v2014 = vpop.f32.mrf.mxu0
  %v2015 = vpop.f32.mrf.mxu0
  %v2016 = vadd.f32 0.0, %v2015
  %v2017 = vpop.f32.mrf.mxu0
  %2018 = vmatprep.mubr.bf16.mxu0 0
  %2019 = vmatmul.mubr.bf16.gmra.mxu0 %v1970
  %v2020 = vpop.f32.mrf.mxu0
  %v2021 = vadd.f32 0.0, %v2020
  %v2022 = vpop.f32.mrf.mxu0
  %v2023 = vpop.f32.mrf.mxu0
  %v2024 = vadd.f32 0.0, %v2023
  %v2025 = vpop.f32.mrf.mxu0
  %2026 = vmatprep.mubr.bf16.mxu0 0
  %2027 = vmatmul.mubr.bf16.gmra.mxu0 %v1973
  %v2028 = vpop.f32.mrf.mxu0
  %v2029 = vadd.f32 0.0, %v2028
  %v2030 = vpop.f32.mrf.mxu0
  %v2031 = vpop.f32.mrf.mxu0
  %v2032 = vadd.f32 0.0, %v2031
  %v2033 = vpop.f32.mrf.mxu0
  %2034 = vmatprep.mubr.bf16.mxu0 0
  %2035 = vmatmul.mubr.bf16.gmra.mxu0 %v1976
  %v2036 = vpop.f32.mrf.mxu0
  %v2037 = vadd.f32 0.0, %v2036
  %v2038 = vpop.f32.mrf.mxu0
  %v2039 = vpop.f32.mrf.mxu0
  %v2040 = vadd.f32 0.0, %v2039
  %v2041 = vpop.f32.mrf.mxu0
  %2042 = vdwg.mxu0
  %v2043 = vmul.f32 %v2013, %v1784
  %v2044 = vmul.f32 %v2016, %v1784
  %v2045 = vmul.f32 %v2021, %v1784
  %v2046 = vmul.f32 %v2024, %v1784
  %v2047 = vmul.f32 %v2029, %v1784
  %v2048 = vmul.f32 %v2032, %v1784
  %v2049 = vmul.f32 %v2037, %v1784
  %v2050 = vmul.f32 %v2040, %v1784
  %v2051 = vadd.f32 %v1773, %v2043
  %v2052 = vadd.f32 %v1774, %v2044
  %v2053 = vadd.f32 %v1775, %v2045
  %v2054 = vadd.f32 %v1776, %v2046
  %v2055 = vadd.f32 %v1777, %v2047
  %v2056 = vadd.f32 %v1778, %v2048
  %v2057 = vadd.f32 %v1779, %v2049
  %v2058 = vadd.f32 %v1780, %v2050
  %v2059 = vlaneseq
  %v2060 = vshrl.u32 %v2059, 7
  %v2061 = vsub.s32 2, %v2060
  %v2062 = vrot.slane %v45, %v2061
  %v2063 = vmul.f32 %v1400, %v2062
  %v2064 = vmul.f32 %v1403, %v2062
  %v2065 = vmul.f32 %v1408, %v2062
  %v2066 = vmul.f32 %v1411, %v2062
  %v2067 = vmul.f32 %v1416, %v2062
  %v2068 = vmul.f32 %v1419, %v2062
  %v2069 = vmul.f32 %v1424, %v2062
  %v2070 = vmul.f32 %v1427, %v2062
  %v2071 = vpack.c.bf16 %v2064, %v2063
  %v2072 = vpack.c.bf16 %v2066, %v2065
  %v2073 = vpack.c.bf16 %v2068, %v2067
  %v2074 = vpack.c.bf16 %v2070, %v2069
  %v2076 = vsel %vm46, %v2071, 0
  %v2079 = vsel %vm46, %v2072, 0
  %v2082 = vsel %vm46, %v2073, 0
  %v2085 = vsel %vm46, %v2074, 0
  %2087 = vmatprep.subr.bf16.mxu0 0
  %2088 = vmatpush1.bf16.xpose.msra.mxu0 0
  %2089 = vmatprep.subr.bf16.mxu0 0
  %2090 = vmatpush1.bf16.xpose.msra.mxu0 0
  %2091 = vmatprep.subr.bf16.mxu0 0
  %2092 = vmatpush1.bf16.xpose.msra.mxu0 0
  %2093 = vmatprep.subr.bf16.mxu0 0
  %2094 = vmatpush1.bf16.xpose.msra.mxu0 0
  %2095 = vmatprep.subr.bf16.mxu0 0
  %2096 = vmatpush1.bf16.xpose.msra.mxu0 %v1516
  %2097 = vmatprep.subr.bf16.mxu0 0
  %2098 = vmatpush1.bf16.xpose.msra.mxu0 %v1513
  %2099 = vmatprep.subr.bf16.mxu0 0
  %2100 = vmatpush1.bf16.xpose.msra.mxu0 %v1510
  %2101 = vmatprep.subr.bf16.mxu0 0
  %2102 = vmatpush1.bf16.xpose.msra.mxu0 %v1507
  %2103 = vmatprep.subr.bf16.mxu0 0
  %2104 = vmatpush2.bf16.xpose.msra.mxu0 0
  %2105 = vmatprep.subr.bf16.mxu0 0
  %2106 = vmatpush2.bf16.xpose.msra.mxu0 0
  %2107 = vmatprep.subr.bf16.mxu0 0
  %2108 = vmatpush2.bf16.xpose.msra.mxu0 0
  %2109 = vmatprep.subr.bf16.mxu0 0
  %2110 = vmatpush2.bf16.xpose.msra.mxu0 0
  %2111 = vmatprep.subr.bf16.mxu0 0
  %2112 = vmatpush2.bf16.xpose.msra.mxu0 0
  %2113 = vmatprep.subr.bf16.mxu0 0
  %2114 = vmatpush2.bf16.xpose.msra.mxu0 0
  %2115 = vmatprep.subr.bf16.mxu0 0
  %2116 = vmatpush2.bf16.xpose.msra.mxu0 0
  %2117 = vmatprep.subr.bf16.mxu0 0
  %2118 = vmatpush2.bf16.xpose.msra.mxu0 0
  %2119 = vmatprep.mubr.bf16.mxu0 0
  %2120 = vmatmul.mubr.bf16.gmra.mxu0 %v2076
  %v2121 = vpop.f32.mrf.mxu0
  %v2122 = vadd.f32 0.0, %v2121
  %v2123 = vpop.f32.mrf.mxu0
  %v2124 = vpop.f32.mrf.mxu0
  %v2125 = vadd.f32 0.0, %v2124
  %v2126 = vpop.f32.mrf.mxu0
  %2127 = vmatprep.mubr.bf16.mxu0 0
  %2128 = vmatmul.mubr.bf16.gmra.mxu0 %v2079
  %v2129 = vpop.f32.mrf.mxu0
  %v2130 = vadd.f32 0.0, %v2129
  %v2131 = vpop.f32.mrf.mxu0
  %v2132 = vpop.f32.mrf.mxu0
  %v2133 = vadd.f32 0.0, %v2132
  %v2134 = vpop.f32.mrf.mxu0
  %2135 = vmatprep.mubr.bf16.mxu0 0
  %2136 = vmatmul.mubr.bf16.gmra.mxu0 %v2082
  %v2137 = vpop.f32.mrf.mxu0
  %v2138 = vadd.f32 0.0, %v2137
  %v2139 = vpop.f32.mrf.mxu0
  %v2140 = vpop.f32.mrf.mxu0
  %v2141 = vadd.f32 0.0, %v2140
  %v2142 = vpop.f32.mrf.mxu0
  %2143 = vmatprep.mubr.bf16.mxu0 0
  %2144 = vmatmul.mubr.bf16.gmra.mxu0 %v2085
  %v2145 = vpop.f32.mrf.mxu0
  %v2146 = vadd.f32 0.0, %v2145
  %v2147 = vpop.f32.mrf.mxu0
  %v2148 = vpop.f32.mrf.mxu0
  %v2149 = vadd.f32 0.0, %v2148
  %v2150 = vpop.f32.mrf.mxu0
  %2151 = vdwg.mxu0
  %v2152 = vsel %vm1583, %v2122, -inf
  %2153 = vmax.xlane.f32.xlu0 %v2152
  %v2154 = vpop.xlane.xlu0 %2153
  %v2155 = vsel %vm1583, %v2125, -inf
  %2156 = vmax.xlane.f32.xlu0 %v2155
  %v2157 = vpop.xlane.xlu0 %2156
  %v2158 = vsel %vm1583, %v2130, -inf
  %2159 = vmax.xlane.f32.xlu0 %v2158
  %v2160 = vpop.xlane.xlu0 %2159
  %v2161 = vsel %vm1583, %v2133, -inf
  %2162 = vmax.xlane.f32.xlu0 %v2161
  %v2163 = vpop.xlane.xlu0 %2162
  %v2164 = vsel %vm1583, %v2138, -inf
  %2165 = vmax.xlane.f32.xlu0 %v2164
  %v2166 = vpop.xlane.xlu0 %2165
  %v2167 = vsel %vm1583, %v2141, -inf
  %2168 = vmax.xlane.f32.xlu0 %v2167
  %v2169 = vpop.xlane.xlu0 %2168
  %v2170 = vsel %vm1583, %v2146, -inf
  %2171 = vmax.xlane.f32.xlu0 %v2170
  %v2172 = vpop.xlane.xlu0 %2171
  %v2173 = vsel %vm1583, %v2149, -inf
  %2174 = vmax.xlane.f32.xlu0 %v2173
  %v2175 = vpop.xlane.xlu0 %2174
  %v2176 = vsub.f32 %v2122, %v2154
  %v2177 = vsub.f32 %v2125, %v2157
  %v2178 = vsub.f32 %v2130, %v2160
  %v2179 = vsub.f32 %v2133, %v2163
  %v2180 = vsub.f32 %v2138, %v2166
  %v2181 = vsub.f32 %v2141, %v2169
  %v2182 = vsub.f32 %v2146, %v2172
  %v2183 = vsub.f32 %v2149, %v2175
  %v2184 = vmul.f32 %v2176, 1.442695
  %v2185 = vpow.pop %v2184
  %v2186 = vmul.f32 %v2177, 1.442695
  %v2187 = vpow.pop %v2186
  %v2188 = vmul.f32 %v2178, 1.442695
  %v2189 = vpow.pop %v2188
  %v2190 = vmul.f32 %v2179, 1.442695
  %v2191 = vpow.pop %v2190
  %v2192 = vmul.f32 %v2180, 1.442695
  %v2193 = vpow.pop %v2192
  %v2194 = vmul.f32 %v2181, 1.442695
  %v2195 = vpow.pop %v2194
  %v2196 = vmul.f32 %v2182, 1.442695
  %v2197 = vpow.pop %v2196
  %v2198 = vmul.f32 %v2183, 1.442695
  %v2199 = vpow.pop %v2198
  %v2200 = vsel %vm1583, %v2185, 0.0
  %2201 = vadd.xlane.f32.xlu0 %v2200
  %v2202 = vpop.xlane.xlu0 %2201
  %v2203 = vsel %vm1583, %v2187, 0.0
  %2204 = vadd.xlane.f32.xlu0 %v2203
  %v2205 = vpop.xlane.xlu0 %2204
  %v2206 = vsel %vm1583, %v2189, 0.0
  %2207 = vadd.xlane.f32.xlu0 %v2206
  %v2208 = vpop.xlane.xlu0 %2207
  %v2209 = vsel %vm1583, %v2191, 0.0
  %2210 = vadd.xlane.f32.xlu0 %v2209
  %v2211 = vpop.xlane.xlu0 %2210
  %v2212 = vsel %vm1583, %v2193, 0.0
  %2213 = vadd.xlane.f32.xlu0 %v2212
  %v2214 = vpop.xlane.xlu0 %2213
  %v2215 = vsel %vm1583, %v2195, 0.0
  %2216 = vadd.xlane.f32.xlu0 %v2215
  %v2217 = vpop.xlane.xlu0 %2216
  %v2218 = vsel %vm1583, %v2197, 0.0
  %2219 = vadd.xlane.f32.xlu0 %v2218
  %v2220 = vpop.xlane.xlu0 %2219
  %v2221 = vsel %vm1583, %v2199, 0.0
  %2222 = vadd.xlane.f32.xlu0 %v2221
  %v2223 = vpop.xlane.xlu0 %2222
  %v2224 = vrcp.pop %v2202
  %v2225 = vrcp.pop %v2205
  %v2226 = vrcp.pop %v2208
  %v2227 = vrcp.pop %v2211
  %v2228 = vrcp.pop %v2214
  %v2229 = vrcp.pop %v2217
  %v2230 = vrcp.pop %v2220
  %v2231 = vrcp.pop %v2223
  %v2232 = vmul.f32 %v2185, %v2224
  %v2233 = vmul.f32 %v2187, %v2225
  %v2234 = vmul.f32 %v2189, %v2226
  %v2235 = vmul.f32 %v2191, %v2227
  %v2236 = vmul.f32 %v2193, %v2228
  %v2237 = vmul.f32 %v2195, %v2229
  %v2238 = vmul.f32 %v2197, %v2230
  %v2239 = vmul.f32 %v2199, %v2231
  %v2240 = vpack.c.bf16 %v2233, %v2232
  %v2241 = vpack.c.bf16 %v2235, %v2234
  %v2242 = vpack.c.bf16 %v2237, %v2236
  %v2243 = vpack.c.bf16 %v2239, %v2238
  %v2245 = vsel %vm1583, %v2240, 0
  %v2248 = vsel %vm1583, %v2241, 0
  %v2251 = vsel %vm1583, %v2242, 0
  %v2254 = vsel %vm1583, %v2243, 0
  %2256 = vmatprep.subr.bf16.mxu0 0
  %2257 = vmatpush1.bf16.msra.mxu0 0
  %2258 = vmatprep.subr.bf16.mxu0 0
  %2259 = vmatpush1.bf16.msra.mxu0 0
  %2260 = vmatprep.subr.bf16.mxu0 0
  %2261 = vmatpush1.bf16.msra.mxu0 0
  %2262 = vmatprep.subr.bf16.mxu0 0
  %2263 = vmatpush1.bf16.msra.mxu0 0
  %2264 = vmatprep.subr.bf16.mxu0 0
  %2265 = vmatpush1.bf16.msra.mxu0 %v1683
  %2266 = vmatprep.subr.bf16.mxu0 0
  %2267 = vmatpush1.bf16.msra.mxu0 %v1681
  %2268 = vmatprep.subr.bf16.mxu0 0
  %2269 = vmatpush1.bf16.msra.mxu0 %v1679
  %2270 = vmatprep.subr.bf16.mxu0 0
  %2271 = vmatpush1.bf16.msra.mxu0 %v1677
  %2272 = vmatprep.subr.bf16.mxu0 0
  %2273 = vmatpush2.bf16.msra.mxu0 0
  %2274 = vmatprep.subr.bf16.mxu0 0
  %2275 = vmatpush2.bf16.msra.mxu0 0
  %2276 = vmatprep.subr.bf16.mxu0 0
  %2277 = vmatpush2.bf16.msra.mxu0 0
  %2278 = vmatprep.subr.bf16.mxu0 0
  %2279 = vmatpush2.bf16.msra.mxu0 0
  %2280 = vmatprep.subr.bf16.mxu0 0
  %2281 = vmatpush2.bf16.msra.mxu0 0
  %2282 = vmatprep.subr.bf16.mxu0 0
  %2283 = vmatpush2.bf16.msra.mxu0 0
  %2284 = vmatprep.subr.bf16.mxu0 0
  %2285 = vmatpush2.bf16.msra.mxu0 0
  %2286 = vmatprep.subr.bf16.mxu0 0
  %2287 = vmatpush2.bf16.msra.mxu0 0
  %2288 = vmatprep.mubr.bf16.mxu0 0
  %2289 = vmatmul.mubr.bf16.gmra.mxu0 %v2245
  %v2290 = vpop.f32.mrf.mxu0
  %v2291 = vadd.f32 0.0, %v2290
  %v2292 = vpop.f32.mrf.mxu0
  %v2293 = vpop.f32.mrf.mxu0
  %v2294 = vadd.f32 0.0, %v2293
  %v2295 = vpop.f32.mrf.mxu0
  %2296 = vmatprep.mubr.bf16.mxu0 0
  %2297 = vmatmul.mubr.bf16.gmra.mxu0 %v2248
  %v2298 = vpop.f32.mrf.mxu0
  %v2299 = vadd.f32 0.0, %v2298
  %v2300 = vpop.f32.mrf.mxu0
  %v2301 = vpop.f32.mrf.mxu0
  %v2302 = vadd.f32 0.0, %v2301
  %v2303 = vpop.f32.mrf.mxu0
  %2304 = vmatprep.mubr.bf16.mxu0 0
  %2305 = vmatmul.mubr.bf16.gmra.mxu0 %v2251
  %v2306 = vpop.f32.mrf.mxu0
  %v2307 = vadd.f32 0.0, %v2306
  %v2308 = vpop.f32.mrf.mxu0
  %v2309 = vpop.f32.mrf.mxu0
  %v2310 = vadd.f32 0.0, %v2309
  %v2311 = vpop.f32.mrf.mxu0
  %2312 = vmatprep.mubr.bf16.mxu0 0
  %2313 = vmatmul.mubr.bf16.gmra.mxu0 %v2254
  %v2314 = vpop.f32.mrf.mxu0
  %v2315 = vadd.f32 0.0, %v2314
  %v2316 = vpop.f32.mrf.mxu0
  %v2317 = vpop.f32.mrf.mxu0
  %v2318 = vadd.f32 0.0, %v2317
  %v2319 = vpop.f32.mrf.mxu0
  %2320 = vdwg.mxu0
  %v2321 = vmul.f32 %v2291, %v2062
  %v2322 = vmul.f32 %v2294, %v2062
  %v2323 = vmul.f32 %v2299, %v2062
  %v2324 = vmul.f32 %v2302, %v2062
  %v2325 = vmul.f32 %v2307, %v2062
  %v2326 = vmul.f32 %v2310, %v2062
  %v2327 = vmul.f32 %v2315, %v2062
  %v2328 = vmul.f32 %v2318, %v2062
  %v2329 = vadd.f32 %v2051, %v2321
  %v2330 = vadd.f32 %v2052, %v2322
  %v2331 = vadd.f32 %v2053, %v2323
  %v2332 = vadd.f32 %v2054, %v2324
  %v2333 = vadd.f32 %v2055, %v2325
  %v2334 = vadd.f32 %v2056, %v2326
  %v2335 = vadd.f32 %v2057, %v2327
  %v2336 = vadd.f32 %v2058, %v2328
  %v2337 = vlaneseq
  %v2338 = vshrl.u32 %v2337, 7
  %v2339 = vsub.s32 3, %v2338
  %v2340 = vrot.slane %v45, %v2339
  %v2341 = vmul.f32 %v1400, %v2340
  %v2342 = vmul.f32 %v1403, %v2340
  %v2343 = vmul.f32 %v1408, %v2340
  %v2344 = vmul.f32 %v1411, %v2340
  %v2345 = vmul.f32 %v1416, %v2340
  %v2346 = vmul.f32 %v1419, %v2340
  %v2347 = vmul.f32 %v1424, %v2340
  %v2348 = vmul.f32 %v1427, %v2340
  %v2349 = vpack.c.bf16 %v2342, %v2341
  %v2350 = vpack.c.bf16 %v2344, %v2343
  %v2351 = vpack.c.bf16 %v2346, %v2345
  %v2352 = vpack.c.bf16 %v2348, %v2347
  %v2354 = vsel %vm46, %v2349, 0
  %v2357 = vsel %vm46, %v2350, 0
  %v2360 = vsel %vm46, %v2351, 0
  %v2363 = vsel %vm46, %v2352, 0
  %2365 = vmatprep.subr.bf16.mxu0 0
  %2366 = vmatpush1.bf16.xpose.msra.mxu0 0
  %2367 = vmatprep.subr.bf16.mxu0 0
  %2368 = vmatpush1.bf16.xpose.msra.mxu0 0
  %2369 = vmatprep.subr.bf16.mxu0 0
  %2370 = vmatpush1.bf16.xpose.msra.mxu0 0
  %2371 = vmatprep.subr.bf16.mxu0 0
  %2372 = vmatpush1.bf16.xpose.msra.mxu0 0
  %2373 = vmatprep.subr.bf16.mxu0 0
  %2374 = vmatpush1.bf16.xpose.msra.mxu0 %v1516
  %2375 = vmatprep.subr.bf16.mxu0 0
  %2376 = vmatpush1.bf16.xpose.msra.mxu0 %v1513
  %2377 = vmatprep.subr.bf16.mxu0 0
  %2378 = vmatpush1.bf16.xpose.msra.mxu0 %v1510
  %2379 = vmatprep.subr.bf16.mxu0 0
  %2380 = vmatpush1.bf16.xpose.msra.mxu0 %v1507
  %2381 = vmatprep.subr.bf16.mxu0 0
  %2382 = vmatpush2.bf16.xpose.msra.mxu0 0
  %2383 = vmatprep.subr.bf16.mxu0 0
  %2384 = vmatpush2.bf16.xpose.msra.mxu0 0
  %2385 = vmatprep.subr.bf16.mxu0 0
  %2386 = vmatpush2.bf16.xpose.msra.mxu0 0
  %2387 = vmatprep.subr.bf16.mxu0 0
  %2388 = vmatpush2.bf16.xpose.msra.mxu0 0
  %2389 = vmatprep.subr.bf16.mxu0 0
  %2390 = vmatpush2.bf16.xpose.msra.mxu0 0
  %2391 = vmatprep.subr.bf16.mxu0 0
  %2392 = vmatpush2.bf16.xpose.msra.mxu0 0
  %2393 = vmatprep.subr.bf16.mxu0 0
  %2394 = vmatpush2.bf16.xpose.msra.mxu0 0
  %2395 = vmatprep.subr.bf16.mxu0 0
  %2396 = vmatpush2.bf16.xpose.msra.mxu0 0
  %2397 = vmatprep.mubr.bf16.mxu0 0
  %2398 = vmatmul.mubr.bf16.gmra.mxu0 %v2354
  %v2399 = vpop.f32.mrf.mxu0
  %v2400 = vadd.f32 0.0, %v2399
  %v2401 = vpop.f32.mrf.mxu0
  %v2402 = vpop.f32.mrf.mxu0
  %v2403 = vadd.f32 0.0, %v2402
  %v2404 = vpop.f32.mrf.mxu0
  %2405 = vmatprep.mubr.bf16.mxu0 0
  %2406 = vmatmul.mubr.bf16.gmra.mxu0 %v2357
  %v2407 = vpop.f32.mrf.mxu0
  %v2408 = vadd.f32 0.0, %v2407
  %v2409 = vpop.f32.mrf.mxu0
  %v2410 = vpop.f32.mrf.mxu0
  %v2411 = vadd.f32 0.0, %v2410
  %v2412 = vpop.f32.mrf.mxu0
  %2413 = vmatprep.mubr.bf16.mxu0 0
  %2414 = vmatmul.mubr.bf16.gmra.mxu0 %v2360
  %v2415 = vpop.f32.mrf.mxu0
  %v2416 = vadd.f32 0.0, %v2415
  %v2417 = vpop.f32.mrf.mxu0
  %v2418 = vpop.f32.mrf.mxu0
  %v2419 = vadd.f32 0.0, %v2418
  %v2420 = vpop.f32.mrf.mxu0
  %2421 = vmatprep.mubr.bf16.mxu0 0
  %2422 = vmatmul.mubr.bf16.gmra.mxu0 %v2363
  %v2423 = vpop.f32.mrf.mxu0
  %v2424 = vadd.f32 0.0, %v2423
  %v2425 = vpop.f32.mrf.mxu0
  %v2426 = vpop.f32.mrf.mxu0
  %v2427 = vadd.f32 0.0, %v2426
  %v2428 = vpop.f32.mrf.mxu0
  %2429 = vdwg.mxu0
  %v2430 = vsel %vm1583, %v2400, -inf
  %2431 = vmax.xlane.f32.xlu0 %v2430
  %v2432 = vpop.xlane.xlu0 %2431
  %v2433 = vsel %vm1583, %v2403, -inf
  %2434 = vmax.xlane.f32.xlu0 %v2433
  %v2435 = vpop.xlane.xlu0 %2434
  %v2436 = vsel %vm1583, %v2408, -inf
  %2437 = vmax.xlane.f32.xlu0 %v2436
  %v2438 = vpop.xlane.xlu0 %2437
  %v2439 = vsel %vm1583, %v2411, -inf
  %2440 = vmax.xlane.f32.xlu0 %v2439
  %v2441 = vpop.xlane.xlu0 %2440
  %v2442 = vsel %vm1583, %v2416, -inf
  %2443 = vmax.xlane.f32.xlu0 %v2442
  %v2444 = vpop.xlane.xlu0 %2443
  %v2445 = vsel %vm1583, %v2419, -inf
  %2446 = vmax.xlane.f32.xlu0 %v2445
  %v2447 = vpop.xlane.xlu0 %2446
  %v2448 = vsel %vm1583, %v2424, -inf
  %2449 = vmax.xlane.f32.xlu0 %v2448
  %v2450 = vpop.xlane.xlu0 %2449
  %v2451 = vsel %vm1583, %v2427, -inf
  %2452 = vmax.xlane.f32.xlu0 %v2451
  %v2453 = vpop.xlane.xlu0 %2452
  %v2454 = vsub.f32 %v2400, %v2432
  %v2455 = vsub.f32 %v2403, %v2435
  %v2456 = vsub.f32 %v2408, %v2438
  %v2457 = vsub.f32 %v2411, %v2441
  %v2458 = vsub.f32 %v2416, %v2444
  %v2459 = vsub.f32 %v2419, %v2447
  %v2460 = vsub.f32 %v2424, %v2450
  %v2461 = vsub.f32 %v2427, %v2453
  %v2462 = vmul.f32 %v2454, 1.442695
  %v2463 = vpow.pop %v2462
  %v2464 = vmul.f32 %v2455, 1.442695
  %v2465 = vpow.pop %v2464
  %v2466 = vmul.f32 %v2456, 1.442695
  %v2467 = vpow.pop %v2466
  %v2468 = vmul.f32 %v2457, 1.442695
  %v2469 = vpow.pop %v2468
  %v2470 = vmul.f32 %v2458, 1.442695
  %v2471 = vpow.pop %v2470
  %v2472 = vmul.f32 %v2459, 1.442695
  %v2473 = vpow.pop %v2472
  %v2474 = vmul.f32 %v2460, 1.442695
  %v2475 = vpow.pop %v2474
  %v2476 = vmul.f32 %v2461, 1.442695
  %v2477 = vpow.pop %v2476
  %v2478 = vsel %vm1583, %v2463, 0.0
  %2479 = vadd.xlane.f32.xlu0 %v2478
  %v2480 = vpop.xlane.xlu0 %2479
  %v2481 = vsel %vm1583, %v2465, 0.0
  %2482 = vadd.xlane.f32.xlu0 %v2481
  %v2483 = vpop.xlane.xlu0 %2482
  %v2484 = vsel %vm1583, %v2467, 0.0
  %2485 = vadd.xlane.f32.xlu0 %v2484
  %v2486 = vpop.xlane.xlu0 %2485
  %v2487 = vsel %vm1583, %v2469, 0.0
  %2488 = vadd.xlane.f32.xlu0 %v2487
  %v2489 = vpop.xlane.xlu0 %2488
  %v2490 = vsel %vm1583, %v2471, 0.0
  %2491 = vadd.xlane.f32.xlu0 %v2490
  %v2492 = vpop.xlane.xlu0 %2491
  %v2493 = vsel %vm1583, %v2473, 0.0
  %2494 = vadd.xlane.f32.xlu0 %v2493
  %v2495 = vpop.xlane.xlu0 %2494
  %v2496 = vsel %vm1583, %v2475, 0.0
  %2497 = vadd.xlane.f32.xlu0 %v2496
  %v2498 = vpop.xlane.xlu0 %2497
  %v2499 = vsel %vm1583, %v2477, 0.0
  %2500 = vadd.xlane.f32.xlu0 %v2499
  %v2501 = vpop.xlane.xlu0 %2500
  %v2502 = vrcp.pop %v2480
  %v2503 = vrcp.pop %v2483
  %v2504 = vrcp.pop %v2486
  %v2505 = vrcp.pop %v2489
  %v2506 = vrcp.pop %v2492
  %v2507 = vrcp.pop %v2495
  %v2508 = vrcp.pop %v2498
  %v2509 = vrcp.pop %v2501
  %v2510 = vmul.f32 %v2463, %v2502
  %v2511 = vmul.f32 %v2465, %v2503
  %v2512 = vmul.f32 %v2467, %v2504
  %v2513 = vmul.f32 %v2469, %v2505
  %v2514 = vmul.f32 %v2471, %v2506
  %v2515 = vmul.f32 %v2473, %v2507
  %v2516 = vmul.f32 %v2475, %v2508
  %v2517 = vmul.f32 %v2477, %v2509
  %v2518 = vpack.c.bf16 %v2511, %v2510
  %v2519 = vpack.c.bf16 %v2513, %v2512
  %v2520 = vpack.c.bf16 %v2515, %v2514
  %v2521 = vpack.c.bf16 %v2517, %v2516
  %v2523 = vsel %vm1583, %v2518, 0
  %v2526 = vsel %vm1583, %v2519, 0
  %v2529 = vsel %vm1583, %v2520, 0
  %v2532 = vsel %vm1583, %v2521, 0
  %2534 = vmatprep.subr.bf16.mxu0 0
  %2535 = vmatpush1.bf16.msra.mxu0 0
  %2536 = vmatprep.subr.bf16.mxu0 0
  %2537 = vmatpush1.bf16.msra.mxu0 0
  %2538 = vmatprep.subr.bf16.mxu0 0
  %2539 = vmatpush1.bf16.msra.mxu0 0
  %2540 = vmatprep.subr.bf16.mxu0 0
  %2541 = vmatpush1.bf16.msra.mxu0 0
  %2542 = vmatprep.subr.bf16.mxu0 0
  %2543 = vmatpush1.bf16.msra.mxu0 %v1683
  %2544 = vmatprep.subr.bf16.mxu0 0
  %2545 = vmatpush1.bf16.msra.mxu0 %v1681
  %2546 = vmatprep.subr.bf16.mxu0 0
  %2547 = vmatpush1.bf16.msra.mxu0 %v1679
  %2548 = vmatprep.subr.bf16.mxu0 0
  %2549 = vmatpush1.bf16.msra.mxu0 %v1677
  %2550 = vmatprep.subr.bf16.mxu0 0
  %2551 = vmatpush2.bf16.msra.mxu0 0
  %2552 = vmatprep.subr.bf16.mxu0 0
  %2553 = vmatpush2.bf16.msra.mxu0 0
  %2554 = vmatprep.subr.bf16.mxu0 0
  %2555 = vmatpush2.bf16.msra.mxu0 0
  %2556 = vmatprep.subr.bf16.mxu0 0
  %2557 = vmatpush2.bf16.msra.mxu0 0
  %2558 = vmatprep.subr.bf16.mxu0 0
  %2559 = vmatpush2.bf16.msra.mxu0 0
  %2560 = vmatprep.subr.bf16.mxu0 0
  %2561 = vmatpush2.bf16.msra.mxu0 0
  %2562 = vmatprep.subr.bf16.mxu0 0
  %2563 = vmatpush2.bf16.msra.mxu0 0
  %2564 = vmatprep.subr.bf16.mxu0 0
  %2565 = vmatpush2.bf16.msra.mxu0 0
  %2566 = vmatprep.mubr.bf16.mxu0 0
  %2567 = vmatmul.mubr.bf16.gmra.mxu0 %v2523
  %v2568 = vpop.f32.mrf.mxu0
  %v2569 = vadd.f32 0.0, %v2568
  %v2570 = vpop.f32.mrf.mxu0
  %v2571 = vpop.f32.mrf.mxu0
  %v2572 = vadd.f32 0.0, %v2571
  %v2573 = vpop.f32.mrf.mxu0
  %2574 = vmatprep.mubr.bf16.mxu0 0
  %2575 = vmatmul.mubr.bf16.gmra.mxu0 %v2526
  %v2576 = vpop.f32.mrf.mxu0
  %v2577 = vadd.f32 0.0, %v2576
  %v2578 = vpop.f32.mrf.mxu0
  %v2579 = vpop.f32.mrf.mxu0
  %v2580 = vadd.f32 0.0, %v2579
  %v2581 = vpop.f32.mrf.mxu0
  %2582 = vmatprep.mubr.bf16.mxu0 0
  %2583 = vmatmul.mubr.bf16.gmra.mxu0 %v2529
  %v2584 = vpop.f32.mrf.mxu0
  %v2585 = vadd.f32 0.0, %v2584
  %v2586 = vpop.f32.mrf.mxu0
  %v2587 = vpop.f32.mrf.mxu0
  %v2588 = vadd.f32 0.0, %v2587
  %v2589 = vpop.f32.mrf.mxu0
  %2590 = vmatprep.mubr.bf16.mxu0 0
  %2591 = vmatmul.mubr.bf16.gmra.mxu0 %v2532
  %v2592 = vpop.f32.mrf.mxu0
  %v2593 = vadd.f32 0.0, %v2592
  %v2594 = vpop.f32.mrf.mxu0
  %v2595 = vpop.f32.mrf.mxu0
  %v2596 = vadd.f32 0.0, %v2595
  %v2597 = vpop.f32.mrf.mxu0
  %2598 = vdwg.mxu0
  %v2599 = vmul.f32 %v2569, %v2340
  %v2600 = vmul.f32 %v2572, %v2340
  %v2601 = vmul.f32 %v2577, %v2340
  %v2602 = vmul.f32 %v2580, %v2340
  %v2603 = vmul.f32 %v2585, %v2340
  %v2604 = vmul.f32 %v2588, %v2340
  %v2605 = vmul.f32 %v2593, %v2340
  %v2606 = vmul.f32 %v2596, %v2340
  %v2607 = vadd.f32 %v2329, %v2599
  %v2608 = vadd.f32 %v2330, %v2600
  %v2609 = vadd.f32 %v2331, %v2601
  %v2610 = vadd.f32 %v2332, %v2602
  %v2611 = vadd.f32 %v2333, %v2603
  %v2612 = vadd.f32 %v2334, %v2604
  %v2613 = vadd.f32 %v2335, %v2605
  %v2614 = vadd.f32 %v2336, %v2606
  %v2615 = vpack.c.bf16 %v1435, %v1432
  %v2616 = vpack.c.bf16 %v1443, %v1440
  %v2617 = vpack.c.bf16 %v1451, %v1448
  %v2618 = vpack.c.bf16 %v1459, %v1456
  %v2619 = vmul.f32 %v1432, %v1469
  %v2620 = vmul.f32 %v1435, %v1469
  %v2621 = vmul.f32 %v1440, %v1469
  %v2622 = vmul.f32 %v1443, %v1469
  %v2623 = vmul.f32 %v1448, %v1469
  %v2624 = vmul.f32 %v1451, %v1469
  %v2625 = vmul.f32 %v1456, %v1469
  %v2626 = vmul.f32 %v1459, %v1469
  %v2627 = vpack.c.bf16 %v2620, %v2619
  %v2628 = vpack.c.bf16 %v2622, %v2621
  %v2629 = vpack.c.bf16 %v2624, %v2623
  %v2630 = vpack.c.bf16 %v2626, %v2625
  %2635 = vrot.lane.b32.xlu0 %v2615, 96
  %v2636 = vpop.permute.xlu0 %2635
  %2637 = vrot.lane.b32.xlu0 %v2616, 96
  %v2638 = vpop.permute.xlu0 %2637
  %2639 = vrot.lane.b32.xlu0 %v2617, 96
  %v2640 = vpop.permute.xlu0 %2639
  %2641 = vrot.lane.b32.xlu0 %v2618, 96
  %v2642 = vpop.permute.xlu0 %2641
  %v2644 = vsel %vm46, %v2627, 0
  %v2647 = vsel %vm46, %v2628, 0
  %v2650 = vsel %vm46, %v2629, 0
  %v2653 = vsel %vm46, %v2630, 0
  %v2656 = vsel %vm46, %v2636, 0
  %v2659 = vsel %vm46, %v2638, 0
  %v2662 = vsel %vm46, %v2640, 0
  %v2665 = vsel %vm46, %v2642, 0
  %2667 = vmatprep.subr.bf16.mxu0 0
  %2668 = vmatpush1.bf16.xpose.msra.mxu0 0
  %2669 = vmatprep.subr.bf16.mxu0 0
  %2670 = vmatpush1.bf16.xpose.msra.mxu0 0
  %2671 = vmatprep.subr.bf16.mxu0 0
  %2672 = vmatpush1.bf16.xpose.msra.mxu0 0
  %2673 = vmatprep.subr.bf16.mxu0 0
  %2674 = vmatpush1.bf16.xpose.msra.mxu0 0
  %2675 = vmatprep.subr.bf16.mxu0 0
  %2676 = vmatpush1.bf16.xpose.msra.mxu0 %v2665
  %2677 = vmatprep.subr.bf16.mxu0 0
  %2678 = vmatpush1.bf16.xpose.msra.mxu0 %v2662
  %2679 = vmatprep.subr.bf16.mxu0 0
  %2680 = vmatpush1.bf16.xpose.msra.mxu0 %v2659
  %2681 = vmatprep.subr.bf16.mxu0 0
  %2682 = vmatpush1.bf16.xpose.msra.mxu0 %v2656
  %2683 = vmatprep.subr.bf16.mxu0 0
  %2684 = vmatpush2.bf16.xpose.msra.mxu0 0
  %2685 = vmatprep.subr.bf16.mxu0 0
  %2686 = vmatpush2.bf16.xpose.msra.mxu0 0
  %2687 = vmatprep.subr.bf16.mxu0 0
  %2688 = vmatpush2.bf16.xpose.msra.mxu0 0
  %2689 = vmatprep.subr.bf16.mxu0 0
  %2690 = vmatpush2.bf16.xpose.msra.mxu0 0
  %2691 = vmatprep.subr.bf16.mxu0 0
  %2692 = vmatpush2.bf16.xpose.msra.mxu0 0
  %2693 = vmatprep.subr.bf16.mxu0 0
  %2694 = vmatpush2.bf16.xpose.msra.mxu0 0
  %2695 = vmatprep.subr.bf16.mxu0 0
  %2696 = vmatpush2.bf16.xpose.msra.mxu0 0
  %2697 = vmatprep.subr.bf16.mxu0 0
  %2698 = vmatpush2.bf16.xpose.msra.mxu0 0
  %2699 = vmatprep.mubr.bf16.mxu0 0
  %2700 = vmatmul.mubr.bf16.gmra.mxu0 %v2644
  %v2701 = vpop.f32.mrf.mxu0
  %v2702 = vadd.f32 0.0, %v2701
  %v2703 = vpop.f32.mrf.mxu0
  %v2704 = vpop.f32.mrf.mxu0
  %v2705 = vadd.f32 0.0, %v2704
  %v2706 = vpop.f32.mrf.mxu0
  %2707 = vmatprep.mubr.bf16.mxu0 0
  %2708 = vmatmul.mubr.bf16.gmra.mxu0 %v2647
  %v2709 = vpop.f32.mrf.mxu0
  %v2710 = vadd.f32 0.0, %v2709
  %v2711 = vpop.f32.mrf.mxu0
  %v2712 = vpop.f32.mrf.mxu0
  %v2713 = vadd.f32 0.0, %v2712
  %v2714 = vpop.f32.mrf.mxu0
  %2715 = vmatprep.mubr.bf16.mxu0 0
  %2716 = vmatmul.mubr.bf16.gmra.mxu0 %v2650
  %v2717 = vpop.f32.mrf.mxu0
  %v2718 = vadd.f32 0.0, %v2717
  %v2719 = vpop.f32.mrf.mxu0
  %v2720 = vpop.f32.mrf.mxu0
  %v2721 = vadd.f32 0.0, %v2720
  %v2722 = vpop.f32.mrf.mxu0
  %2723 = vmatprep.mubr.bf16.mxu0 0
  %2724 = vmatmul.mubr.bf16.gmra.mxu0 %v2653
  %v2725 = vpop.f32.mrf.mxu0
  %v2726 = vadd.f32 0.0, %v2725
  %v2727 = vpop.f32.mrf.mxu0
  %v2728 = vpop.f32.mrf.mxu0
  %v2729 = vadd.f32 0.0, %v2728
  %v2730 = vpop.f32.mrf.mxu0
  %2731 = vdwg.mxu0
  %v2732 = vsel %vm1583, %v2702, -inf
  %2733 = vmax.xlane.f32.xlu0 %v2732
  %v2734 = vpop.xlane.xlu0 %2733
  %v2735 = vsel %vm1583, %v2705, -inf
  %2736 = vmax.xlane.f32.xlu0 %v2735
  %v2737 = vpop.xlane.xlu0 %2736
  %v2738 = vsel %vm1583, %v2710, -inf
  %2739 = vmax.xlane.f32.xlu0 %v2738
  %v2740 = vpop.xlane.xlu0 %2739
  %v2741 = vsel %vm1583, %v2713, -inf
  %2742 = vmax.xlane.f32.xlu0 %v2741
  %v2743 = vpop.xlane.xlu0 %2742
  %v2744 = vsel %vm1583, %v2718, -inf
  %2745 = vmax.xlane.f32.xlu0 %v2744
  %v2746 = vpop.xlane.xlu0 %2745
  %v2747 = vsel %vm1583, %v2721, -inf
  %2748 = vmax.xlane.f32.xlu0 %v2747
  %v2749 = vpop.xlane.xlu0 %2748
  %v2750 = vsel %vm1583, %v2726, -inf
  %2751 = vmax.xlane.f32.xlu0 %v2750
  %v2752 = vpop.xlane.xlu0 %2751
  %v2753 = vsel %vm1583, %v2729, -inf
  %2754 = vmax.xlane.f32.xlu0 %v2753
  %v2755 = vpop.xlane.xlu0 %2754
  %v2756 = vsub.f32 %v2702, %v2734
  %v2757 = vsub.f32 %v2705, %v2737
  %v2758 = vsub.f32 %v2710, %v2740
  %v2759 = vsub.f32 %v2713, %v2743
  %v2760 = vsub.f32 %v2718, %v2746
  %v2761 = vsub.f32 %v2721, %v2749
  %v2762 = vsub.f32 %v2726, %v2752
  %v2763 = vsub.f32 %v2729, %v2755
  %v2764 = vmul.f32 %v2756, 1.442695
  %v2765 = vpow.pop %v2764
  %v2766 = vmul.f32 %v2757, 1.442695
  %v2767 = vpow.pop %v2766
  %v2768 = vmul.f32 %v2758, 1.442695
  %v2769 = vpow.pop %v2768
  %v2770 = vmul.f32 %v2759, 1.442695
  %v2771 = vpow.pop %v2770
  %v2772 = vmul.f32 %v2760, 1.442695
  %v2773 = vpow.pop %v2772
  %v2774 = vmul.f32 %v2761, 1.442695
  %v2775 = vpow.pop %v2774
  %v2776 = vmul.f32 %v2762, 1.442695
  %v2777 = vpow.pop %v2776
  %v2778 = vmul.f32 %v2763, 1.442695
  %v2779 = vpow.pop %v2778
  %v2780 = vsel %vm1583, %v2765, 0.0
  %2781 = vadd.xlane.f32.xlu0 %v2780
  %v2782 = vpop.xlane.xlu0 %2781
  %v2783 = vsel %vm1583, %v2767, 0.0
  %2784 = vadd.xlane.f32.xlu0 %v2783
  %v2785 = vpop.xlane.xlu0 %2784
  %v2786 = vsel %vm1583, %v2769, 0.0
  %2787 = vadd.xlane.f32.xlu0 %v2786
  %v2788 = vpop.xlane.xlu0 %2787
  %v2789 = vsel %vm1583, %v2771, 0.0
  %2790 = vadd.xlane.f32.xlu0 %v2789
  %v2791 = vpop.xlane.xlu0 %2790
  %v2792 = vsel %vm1583, %v2773, 0.0
  %2793 = vadd.xlane.f32.xlu0 %v2792
  %v2794 = vpop.xlane.xlu0 %2793
  %v2795 = vsel %vm1583, %v2775, 0.0
  %2796 = vadd.xlane.f32.xlu0 %v2795
  %v2797 = vpop.xlane.xlu0 %2796
  %v2798 = vsel %vm1583, %v2777, 0.0
  %2799 = vadd.xlane.f32.xlu0 %v2798
  %v2800 = vpop.xlane.xlu0 %2799
  %v2801 = vsel %vm1583, %v2779, 0.0
  %2802 = vadd.xlane.f32.xlu0 %v2801
  %v2803 = vpop.xlane.xlu0 %2802
  %v2804 = vrcp.pop %v2782
  %v2805 = vrcp.pop %v2785
  %v2806 = vrcp.pop %v2788
  %v2807 = vrcp.pop %v2791
  %v2808 = vrcp.pop %v2794
  %v2809 = vrcp.pop %v2797
  %v2810 = vrcp.pop %v2800
  %v2811 = vrcp.pop %v2803
  %v2812 = vmul.f32 %v2765, %v2804
  %v2813 = vmul.f32 %v2767, %v2805
  %v2814 = vmul.f32 %v2769, %v2806
  %v2815 = vmul.f32 %v2771, %v2807
  %v2816 = vmul.f32 %v2773, %v2808
  %v2817 = vmul.f32 %v2775, %v2809
  %v2818 = vmul.f32 %v2777, %v2810
  %v2819 = vmul.f32 %v2779, %v2811
  %v2820 = vpack.c.bf16 %v2813, %v2812
  %v2821 = vpack.c.bf16 %v2815, %v2814
  %v2822 = vpack.c.bf16 %v2817, %v2816
  %v2823 = vpack.c.bf16 %v2819, %v2818
  %2824 = vrot.lane.b32.xlu0 %v2615, 64
  %v2825 = vpop.permute.xlu0 %2824
  %2826 = vrot.lane.b32.xlu0 %v2616, 64
  %v2827 = vpop.permute.xlu0 %2826
  %2828 = vrot.lane.b32.xlu0 %v2617, 64
  %v2829 = vpop.permute.xlu0 %2828
  %2830 = vrot.lane.b32.xlu0 %v2618, 64
  %v2831 = vpop.permute.xlu0 %2830
  %v2837 = vsel %vm1583, %v2820, 0
  %v2840 = vsel %vm1583, %v2821, 0
  %v2843 = vsel %vm1583, %v2822, 0
  %v2846 = vsel %vm1583, %v2823, 0
  %2848 = vmatprep.subr.bf16.mxu0 0
  %2849 = vmatpush1.bf16.msra.mxu0 0
  %2850 = vmatprep.subr.bf16.mxu0 0
  %2851 = vmatpush1.bf16.msra.mxu0 0
  %2852 = vmatprep.subr.bf16.mxu0 0
  %2853 = vmatpush1.bf16.msra.mxu0 0
  %2854 = vmatprep.subr.bf16.mxu0 0
  %2855 = vmatpush1.bf16.msra.mxu0 0
  %2856 = vmatprep.subr.bf16.mxu0 0
  %2857 = vmatpush1.bf16.msra.mxu0 %v2831
  %2858 = vmatprep.subr.bf16.mxu0 0
  %2859 = vmatpush1.bf16.msra.mxu0 %v2829
  %2860 = vmatprep.subr.bf16.mxu0 0
  %2861 = vmatpush1.bf16.msra.mxu0 %v2827
  %2862 = vmatprep.subr.bf16.mxu0 0
  %2863 = vmatpush1.bf16.msra.mxu0 %v2825
  %2864 = vmatprep.subr.bf16.mxu0 0
  %2865 = vmatpush2.bf16.msra.mxu0 0
  %2866 = vmatprep.subr.bf16.mxu0 0
  %2867 = vmatpush2.bf16.msra.mxu0 0
  %2868 = vmatprep.subr.bf16.mxu0 0
  %2869 = vmatpush2.bf16.msra.mxu0 0
  %2870 = vmatprep.subr.bf16.mxu0 0
  %2871 = vmatpush2.bf16.msra.mxu0 0
  %2872 = vmatprep.subr.bf16.mxu0 0
  %2873 = vmatpush2.bf16.msra.mxu0 0
  %2874 = vmatprep.subr.bf16.mxu0 0
  %2875 = vmatpush2.bf16.msra.mxu0 0
  %2876 = vmatprep.subr.bf16.mxu0 0
  %2877 = vmatpush2.bf16.msra.mxu0 0
  %2878 = vmatprep.subr.bf16.mxu0 0
  %2879 = vmatpush2.bf16.msra.mxu0 0
  %2880 = vmatprep.mubr.bf16.mxu0 0
  %2881 = vmatmul.mubr.bf16.gmra.mxu0 %v2837
  %v2882 = vpop.f32.mrf.mxu0
  %v2883 = vadd.f32 0.0, %v2882
  %v2884 = vpop.f32.mrf.mxu0
  %v2885 = vpop.f32.mrf.mxu0
  %v2886 = vadd.f32 0.0, %v2885
  %v2887 = vpop.f32.mrf.mxu0
  %2888 = vmatprep.mubr.bf16.mxu0 0
  %2889 = vmatmul.mubr.bf16.gmra.mxu0 %v2840
  %v2890 = vpop.f32.mrf.mxu0
  %v2891 = vadd.f32 0.0, %v2890
  %v2892 = vpop.f32.mrf.mxu0
  %v2893 = vpop.f32.mrf.mxu0
  %v2894 = vadd.f32 0.0, %v2893
  %v2895 = vpop.f32.mrf.mxu0
  %2896 = vmatprep.mubr.bf16.mxu0 0
  %2897 = vmatmul.mubr.bf16.gmra.mxu0 %v2843
  %v2898 = vpop.f32.mrf.mxu0
  %v2899 = vadd.f32 0.0, %v2898
  %v2900 = vpop.f32.mrf.mxu0
  %v2901 = vpop.f32.mrf.mxu0
  %v2902 = vadd.f32 0.0, %v2901
  %v2903 = vpop.f32.mrf.mxu0
  %2904 = vmatprep.mubr.bf16.mxu0 0
  %2905 = vmatmul.mubr.bf16.gmra.mxu0 %v2846
  %v2906 = vpop.f32.mrf.mxu0
  %v2907 = vadd.f32 0.0, %v2906
  %v2908 = vpop.f32.mrf.mxu0
  %v2909 = vpop.f32.mrf.mxu0
  %v2910 = vadd.f32 0.0, %v2909
  %v2911 = vpop.f32.mrf.mxu0
  %2912 = vdwg.mxu0
  %v2913 = vmul.f32 %v2883, %v1469
  %v2914 = vmul.f32 %v2886, %v1469
  %v2915 = vmul.f32 %v2891, %v1469
  %v2916 = vmul.f32 %v2894, %v1469
  %v2917 = vmul.f32 %v2899, %v1469
  %v2918 = vmul.f32 %v2902, %v1469
  %v2919 = vmul.f32 %v2907, %v1469
  %v2920 = vmul.f32 %v2910, %v1469
  %v2921 = vadd.f32 %v2913, 0.0
  %v2922 = vadd.f32 %v2914, 0.0
  %v2923 = vadd.f32 %v2915, 0.0
  %v2924 = vadd.f32 %v2916, 0.0
  %v2925 = vadd.f32 %v2917, 0.0
  %v2926 = vadd.f32 %v2918, 0.0
  %v2927 = vadd.f32 %v2919, 0.0
  %v2928 = vadd.f32 %v2920, 0.0
  %v2929 = vmul.f32 %v1432, %v1784
  %v2930 = vmul.f32 %v1435, %v1784
  %v2931 = vmul.f32 %v1440, %v1784
  %v2932 = vmul.f32 %v1443, %v1784
  %v2933 = vmul.f32 %v1448, %v1784
  %v2934 = vmul.f32 %v1451, %v1784
  %v2935 = vmul.f32 %v1456, %v1784
  %v2936 = vmul.f32 %v1459, %v1784
  %v2937 = vpack.c.bf16 %v2930, %v2929
  %v2938 = vpack.c.bf16 %v2932, %v2931
  %v2939 = vpack.c.bf16 %v2934, %v2933
  %v2940 = vpack.c.bf16 %v2936, %v2935
  %v2942 = vsel %vm46, %v2937, 0
  %v2945 = vsel %vm46, %v2938, 0
  %v2948 = vsel %vm46, %v2939, 0
  %v2951 = vsel %vm46, %v2940, 0
  %2953 = vmatprep.subr.bf16.mxu0 0
  %2954 = vmatpush1.bf16.xpose.msra.mxu0 0
  %2955 = vmatprep.subr.bf16.mxu0 0
  %2956 = vmatpush1.bf16.xpose.msra.mxu0 0
  %2957 = vmatprep.subr.bf16.mxu0 0
  %2958 = vmatpush1.bf16.xpose.msra.mxu0 0
  %2959 = vmatprep.subr.bf16.mxu0 0
  %2960 = vmatpush1.bf16.xpose.msra.mxu0 0
  %2961 = vmatprep.subr.bf16.mxu0 0
  %2962 = vmatpush1.bf16.xpose.msra.mxu0 %v2665
  %2963 = vmatprep.subr.bf16.mxu0 0
  %2964 = vmatpush1.bf16.xpose.msra.mxu0 %v2662
  %2965 = vmatprep.subr.bf16.mxu0 0
  %2966 = vmatpush1.bf16.xpose.msra.mxu0 %v2659
  %2967 = vmatprep.subr.bf16.mxu0 0
  %2968 = vmatpush1.bf16.xpose.msra.mxu0 %v2656
  %2969 = vmatprep.subr.bf16.mxu0 0
  %2970 = vmatpush2.bf16.xpose.msra.mxu0 0
  %2971 = vmatprep.subr.bf16.mxu0 0
  %2972 = vmatpush2.bf16.xpose.msra.mxu0 0
  %2973 = vmatprep.subr.bf16.mxu0 0
  %2974 = vmatpush2.bf16.xpose.msra.mxu0 0
  %2975 = vmatprep.subr.bf16.mxu0 0
  %2976 = vmatpush2.bf16.xpose.msra.mxu0 0
  %2977 = vmatprep.subr.bf16.mxu0 0
  %2978 = vmatpush2.bf16.xpose.msra.mxu0 0
  %2979 = vmatprep.subr.bf16.mxu0 0
  %2980 = vmatpush2.bf16.xpose.msra.mxu0 0
  %2981 = vmatprep.subr.bf16.mxu0 0
  %2982 = vmatpush2.bf16.xpose.msra.mxu0 0
  %2983 = vmatprep.subr.bf16.mxu0 0
  %2984 = vmatpush2.bf16.xpose.msra.mxu0 0
  %2985 = vmatprep.mubr.bf16.mxu0 0
  %2986 = vmatmul.mubr.bf16.gmra.mxu0 %v2942
  %v2987 = vpop.f32.mrf.mxu0
  %v2988 = vadd.f32 0.0, %v2987
  %v2989 = vpop.f32.mrf.mxu0
  %v2990 = vpop.f32.mrf.mxu0
  %v2991 = vadd.f32 0.0, %v2990
  %v2992 = vpop.f32.mrf.mxu0
  %2993 = vmatprep.mubr.bf16.mxu0 0
  %2994 = vmatmul.mubr.bf16.gmra.mxu0 %v2945
  %v2995 = vpop.f32.mrf.mxu0
  %v2996 = vadd.f32 0.0, %v2995
  %v2997 = vpop.f32.mrf.mxu0
  %v2998 = vpop.f32.mrf.mxu0
  %v2999 = vadd.f32 0.0, %v2998
  %v3000 = vpop.f32.mrf.mxu0
  %3001 = vmatprep.mubr.bf16.mxu0 0
  %3002 = vmatmul.mubr.bf16.gmra.mxu0 %v2948
  %v3003 = vpop.f32.mrf.mxu0
  %v3004 = vadd.f32 0.0, %v3003
  %v3005 = vpop.f32.mrf.mxu0
  %v3006 = vpop.f32.mrf.mxu0
  %v3007 = vadd.f32 0.0, %v3006
  %v3008 = vpop.f32.mrf.mxu0
  %3009 = vmatprep.mubr.bf16.mxu0 0
  %3010 = vmatmul.mubr.bf16.gmra.mxu0 %v2951
  %v3011 = vpop.f32.mrf.mxu0
  %v3012 = vadd.f32 0.0, %v3011
  %v3013 = vpop.f32.mrf.mxu0
  %v3014 = vpop.f32.mrf.mxu0
  %v3015 = vadd.f32 0.0, %v3014
  %v3016 = vpop.f32.mrf.mxu0
  %3017 = vdwg.mxu0
  %v3018 = vsel %vm1583, %v2988, -inf
  %3019 = vmax.xlane.f32.xlu0 %v3018
  %v3020 = vpop.xlane.xlu0 %3019
  %v3021 = vsel %vm1583, %v2991, -inf
  %3022 = vmax.xlane.f32.xlu0 %v3021
  %v3023 = vpop.xlane.xlu0 %3022
  %v3024 = vsel %vm1583, %v2996, -inf
  %3025 = vmax.xlane.f32.xlu0 %v3024
  %v3026 = vpop.xlane.xlu0 %3025
  %v3027 = vsel %vm1583, %v2999, -inf
  %3028 = vmax.xlane.f32.xlu0 %v3027
  %v3029 = vpop.xlane.xlu0 %3028
  %v3030 = vsel %vm1583, %v3004, -inf
  %3031 = vmax.xlane.f32.xlu0 %v3030
  %v3032 = vpop.xlane.xlu0 %3031
  %v3033 = vsel %vm1583, %v3007, -inf
  %3034 = vmax.xlane.f32.xlu0 %v3033
  %v3035 = vpop.xlane.xlu0 %3034
  %v3036 = vsel %vm1583, %v3012, -inf
  %3037 = vmax.xlane.f32.xlu0 %v3036
  %v3038 = vpop.xlane.xlu0 %3037
  %v3039 = vsel %vm1583, %v3015, -inf
  %3040 = vmax.xlane.f32.xlu0 %v3039
  %v3041 = vpop.xlane.xlu0 %3040
  %v3042 = vsub.f32 %v2988, %v3020
  %v3043 = vsub.f32 %v2991, %v3023
  %v3044 = vsub.f32 %v2996, %v3026
  %v3045 = vsub.f32 %v2999, %v3029
  %v3046 = vsub.f32 %v3004, %v3032
  %v3047 = vsub.f32 %v3007, %v3035
  %v3048 = vsub.f32 %v3012, %v3038
  %v3049 = vsub.f32 %v3015, %v3041
  %v3050 = vmul.f32 %v3042, 1.442695
  %v3051 = vpow.pop %v3050
  %v3052 = vmul.f32 %v3043, 1.442695
  %v3053 = vpow.pop %v3052
  %v3054 = vmul.f32 %v3044, 1.442695
  %v3055 = vpow.pop %v3054
  %v3056 = vmul.f32 %v3045, 1.442695
  %v3057 = vpow.pop %v3056
  %v3058 = vmul.f32 %v3046, 1.442695
  %v3059 = vpow.pop %v3058
  %v3060 = vmul.f32 %v3047, 1.442695
  %v3061 = vpow.pop %v3060
  %v3062 = vmul.f32 %v3048, 1.442695
  %v3063 = vpow.pop %v3062
  %v3064 = vmul.f32 %v3049, 1.442695
  %v3065 = vpow.pop %v3064
  %v3066 = vsel %vm1583, %v3051, 0.0
  %3067 = vadd.xlane.f32.xlu0 %v3066
  %v3068 = vpop.xlane.xlu0 %3067
  %v3069 = vsel %vm1583, %v3053, 0.0
  %3070 = vadd.xlane.f32.xlu0 %v3069
  %v3071 = vpop.xlane.xlu0 %3070
  %v3072 = vsel %vm1583, %v3055, 0.0
  %3073 = vadd.xlane.f32.xlu0 %v3072
  %v3074 = vpop.xlane.xlu0 %3073
  %v3075 = vsel %vm1583, %v3057, 0.0
  %3076 = vadd.xlane.f32.xlu0 %v3075
  %v3077 = vpop.xlane.xlu0 %3076
  %v3078 = vsel %vm1583, %v3059, 0.0
  %3079 = vadd.xlane.f32.xlu0 %v3078
  %v3080 = vpop.xlane.xlu0 %3079
  %v3081 = vsel %vm1583, %v3061, 0.0
  %3082 = vadd.xlane.f32.xlu0 %v3081
  %v3083 = vpop.xlane.xlu0 %3082
  %v3084 = vsel %vm1583, %v3063, 0.0
  %3085 = vadd.xlane.f32.xlu0 %v3084
  %v3086 = vpop.xlane.xlu0 %3085
  %v3087 = vsel %vm1583, %v3065, 0.0
  %3088 = vadd.xlane.f32.xlu0 %v3087
  %v3089 = vpop.xlane.xlu0 %3088
  %v3090 = vrcp.pop %v3068
  %v3091 = vrcp.pop %v3071
  %v3092 = vrcp.pop %v3074
  %v3093 = vrcp.pop %v3077
  %v3094 = vrcp.pop %v3080
  %v3095 = vrcp.pop %v3083
  %v3096 = vrcp.pop %v3086
  %v3097 = vrcp.pop %v3089
  %v3098 = vmul.f32 %v3051, %v3090
  %v3099 = vmul.f32 %v3053, %v3091
  %v3100 = vmul.f32 %v3055, %v3092
  %v3101 = vmul.f32 %v3057, %v3093
  %v3102 = vmul.f32 %v3059, %v3094
  %v3103 = vmul.f32 %v3061, %v3095
  %v3104 = vmul.f32 %v3063, %v3096
  %v3105 = vmul.f32 %v3065, %v3097
  %v3106 = vpack.c.bf16 %v3099, %v3098
  %v3107 = vpack.c.bf16 %v3101, %v3100
  %v3108 = vpack.c.bf16 %v3103, %v3102
  %v3109 = vpack.c.bf16 %v3105, %v3104
  %v3111 = vsel %vm1583, %v3106, 0
  %v3114 = vsel %vm1583, %v3107, 0
  %v3117 = vsel %vm1583, %v3108, 0
  %v3120 = vsel %vm1583, %v3109, 0
  %3122 = vmatprep.subr.bf16.mxu0 0
  %3123 = vmatpush1.bf16.msra.mxu0 0
  %3124 = vmatprep.subr.bf16.mxu0 0
  %3125 = vmatpush1.bf16.msra.mxu0 0
  %3126 = vmatprep.subr.bf16.mxu0 0
  %3127 = vmatpush1.bf16.msra.mxu0 0
  %3128 = vmatprep.subr.bf16.mxu0 0
  %3129 = vmatpush1.bf16.msra.mxu0 0
  %3130 = vmatprep.subr.bf16.mxu0 0
  %3131 = vmatpush1.bf16.msra.mxu0 %v2831
  %3132 = vmatprep.subr.bf16.mxu0 0
  %3133 = vmatpush1.bf16.msra.mxu0 %v2829
  %3134 = vmatprep.subr.bf16.mxu0 0
  %3135 = vmatpush1.bf16.msra.mxu0 %v2827
  %3136 = vmatprep.subr.bf16.mxu0 0
  %3137 = vmatpush1.bf16.msra.mxu0 %v2825
  %3138 = vmatprep.subr.bf16.mxu0 0
  %3139 = vmatpush2.bf16.msra.mxu0 0
  %3140 = vmatprep.subr.bf16.mxu0 0
  %3141 = vmatpush2.bf16.msra.mxu0 0
  %3142 = vmatprep.subr.bf16.mxu0 0
  %3143 = vmatpush2.bf16.msra.mxu0 0
  %3144 = vmatprep.subr.bf16.mxu0 0
  %3145 = vmatpush2.bf16.msra.mxu0 0
  %3146 = vmatprep.subr.bf16.mxu0 0
  %3147 = vmatpush2.bf16.msra.mxu0 0
  %3148 = vmatprep.subr.bf16.mxu0 0
  %3149 = vmatpush2.bf16.msra.mxu0 0
  %3150 = vmatprep.subr.bf16.mxu0 0
  %3151 = vmatpush2.bf16.msra.mxu0 0
  %3152 = vmatprep.subr.bf16.mxu0 0
  %3153 = vmatpush2.bf16.msra.mxu0 0
  %3154 = vmatprep.mubr.bf16.mxu0 0
  %3155 = vmatmul.mubr.bf16.gmra.mxu0 %v3111
  %v3156 = vpop.f32.mrf.mxu0
  %v3157 = vadd.f32 0.0, %v3156
  %v3158 = vpop.f32.mrf.mxu0
  %v3159 = vpop.f32.mrf.mxu0
  %v3160 = vadd.f32 0.0, %v3159
  %v3161 = vpop.f32.mrf.mxu0
  %3162 = vmatprep.mubr.bf16.mxu0 0
  %3163 = vmatmul.mubr.bf16.gmra.mxu0 %v3114
  %v3164 = vpop.f32.mrf.mxu0
  %v3165 = vadd.f32 0.0, %v3164
  %v3166 = vpop.f32.mrf.mxu0
  %v3167 = vpop.f32.mrf.mxu0
  %v3168 = vadd.f32 0.0, %v3167
  %v3169 = vpop.f32.mrf.mxu0
  %3170 = vmatprep.mubr.bf16.mxu0 0
  %3171 = vmatmul.mubr.bf16.gmra.mxu0 %v3117
  %v3172 = vpop.f32.mrf.mxu0
  %v3173 = vadd.f32 0.0, %v3172
  %v3174 = vpop.f32.mrf.mxu0
  %v3175 = vpop.f32.mrf.mxu0
  %v3176 = vadd.f32 0.0, %v3175
  %v3177 = vpop.f32.mrf.mxu0
  %3178 = vmatprep.mubr.bf16.mxu0 0
  %3179 = vmatmul.mubr.bf16.gmra.mxu0 %v3120
  %v3180 = vpop.f32.mrf.mxu0
  %v3181 = vadd.f32 0.0, %v3180
  %v3182 = vpop.f32.mrf.mxu0
  %v3183 = vpop.f32.mrf.mxu0
  %v3184 = vadd.f32 0.0, %v3183
  %v3185 = vpop.f32.mrf.mxu0
  %3186 = vdwg.mxu0
  %v3187 = vmul.f32 %v3157, %v1784
  %v3188 = vmul.f32 %v3160, %v1784
  %v3189 = vmul.f32 %v3165, %v1784
  %v3190 = vmul.f32 %v3168, %v1784
  %v3191 = vmul.f32 %v3173, %v1784
  %v3192 = vmul.f32 %v3176, %v1784
  %v3193 = vmul.f32 %v3181, %v1784
  %v3194 = vmul.f32 %v3184, %v1784
  %v3195 = vadd.f32 %v2921, %v3187
  %v3196 = vadd.f32 %v2922, %v3188
  %v3197 = vadd.f32 %v2923, %v3189
  %v3198 = vadd.f32 %v2924, %v3190
  %v3199 = vadd.f32 %v2925, %v3191
  %v3200 = vadd.f32 %v2926, %v3192
  %v3201 = vadd.f32 %v2927, %v3193
  %v3202 = vadd.f32 %v2928, %v3194
  %v3203 = vmul.f32 %v1432, %v2062
  %v3204 = vmul.f32 %v1435, %v2062
  %v3205 = vmul.f32 %v1440, %v2062
  %v3206 = vmul.f32 %v1443, %v2062
  %v3207 = vmul.f32 %v1448, %v2062
  %v3208 = vmul.f32 %v1451, %v2062
  %v3209 = vmul.f32 %v1456, %v2062
  %v3210 = vmul.f32 %v1459, %v2062
  %v3211 = vpack.c.bf16 %v3204, %v3203
  %v3212 = vpack.c.bf16 %v3206, %v3205
  %v3213 = vpack.c.bf16 %v3208, %v3207
  %v3214 = vpack.c.bf16 %v3210, %v3209
  %v3216 = vsel %vm46, %v3211, 0
  %v3219 = vsel %vm46, %v3212, 0
  %v3222 = vsel %vm46, %v3213, 0
  %v3225 = vsel %vm46, %v3214, 0
  %3227 = vmatprep.subr.bf16.mxu0 0
  %3228 = vmatpush1.bf16.xpose.msra.mxu0 0
  %3229 = vmatprep.subr.bf16.mxu0 0
  %3230 = vmatpush1.bf16.xpose.msra.mxu0 0
  %3231 = vmatprep.subr.bf16.mxu0 0
  %3232 = vmatpush1.bf16.xpose.msra.mxu0 0
  %3233 = vmatprep.subr.bf16.mxu0 0
  %3234 = vmatpush1.bf16.xpose.msra.mxu0 0
  %3235 = vmatprep.subr.bf16.mxu0 0
  %3236 = vmatpush1.bf16.xpose.msra.mxu0 %v2665
  %3237 = vmatprep.subr.bf16.mxu0 0
  %3238 = vmatpush1.bf16.xpose.msra.mxu0 %v2662
  %3239 = vmatprep.subr.bf16.mxu0 0
  %3240 = vmatpush1.bf16.xpose.msra.mxu0 %v2659
  %3241 = vmatprep.subr.bf16.mxu0 0
  %3242 = vmatpush1.bf16.xpose.msra.mxu0 %v2656
  %3243 = vmatprep.subr.bf16.mxu0 0
  %3244 = vmatpush2.bf16.xpose.msra.mxu0 0
  %3245 = vmatprep.subr.bf16.mxu0 0
  %3246 = vmatpush2.bf16.xpose.msra.mxu0 0
  %3247 = vmatprep.subr.bf16.mxu0 0
  %3248 = vmatpush2.bf16.xpose.msra.mxu0 0
  %3249 = vmatprep.subr.bf16.mxu0 0
  %3250 = vmatpush2.bf16.xpose.msra.mxu0 0
  %3251 = vmatprep.subr.bf16.mxu0 0
  %3252 = vmatpush2.bf16.xpose.msra.mxu0 0
  %3253 = vmatprep.subr.bf16.mxu0 0
  %3254 = vmatpush2.bf16.xpose.msra.mxu0 0
  %3255 = vmatprep.subr.bf16.mxu0 0
  %3256 = vmatpush2.bf16.xpose.msra.mxu0 0
  %3257 = vmatprep.subr.bf16.mxu0 0
  %3258 = vmatpush2.bf16.xpose.msra.mxu0 0
  %3259 = vmatprep.mubr.bf16.mxu0 0
  %3260 = vmatmul.mubr.bf16.gmra.mxu0 %v3216
  %v3261 = vpop.f32.mrf.mxu0
  %v3262 = vadd.f32 0.0, %v3261
  %v3263 = vpop.f32.mrf.mxu0
  %v3264 = vpop.f32.mrf.mxu0
  %v3265 = vadd.f32 0.0, %v3264
  %v3266 = vpop.f32.mrf.mxu0
  %3267 = vmatprep.mubr.bf16.mxu0 0
  %3268 = vmatmul.mubr.bf16.gmra.mxu0 %v3219
  %v3269 = vpop.f32.mrf.mxu0
  %v3270 = vadd.f32 0.0, %v3269
  %v3271 = vpop.f32.mrf.mxu0
  %v3272 = vpop.f32.mrf.mxu0
  %v3273 = vadd.f32 0.0, %v3272
  %v3274 = vpop.f32.mrf.mxu0
  %3275 = vmatprep.mubr.bf16.mxu0 0
  %3276 = vmatmul.mubr.bf16.gmra.mxu0 %v3222
  %v3277 = vpop.f32.mrf.mxu0
  %v3278 = vadd.f32 0.0, %v3277
  %v3279 = vpop.f32.mrf.mxu0
  %v3280 = vpop.f32.mrf.mxu0
  %v3281 = vadd.f32 0.0, %v3280
  %v3282 = vpop.f32.mrf.mxu0
  %3283 = vmatprep.mubr.bf16.mxu0 0
  %3284 = vmatmul.mubr.bf16.gmra.mxu0 %v3225
  %v3285 = vpop.f32.mrf.mxu0
  %v3286 = vadd.f32 0.0, %v3285
  %v3287 = vpop.f32.mrf.mxu0
  %v3288 = vpop.f32.mrf.mxu0
  %v3289 = vadd.f32 0.0, %v3288
  %v3290 = vpop.f32.mrf.mxu0
  %3291 = vdwg.mxu0
  %v3292 = vsel %vm1583, %v3262, -inf
  %3293 = vmax.xlane.f32.xlu0 %v3292
  %v3294 = vpop.xlane.xlu0 %3293
  %v3295 = vsel %vm1583, %v3265, -inf
  %3296 = vmax.xlane.f32.xlu0 %v3295
  %v3297 = vpop.xlane.xlu0 %3296
  %v3298 = vsel %vm1583, %v3270, -inf
  %3299 = vmax.xlane.f32.xlu0 %v3298
  %v3300 = vpop.xlane.xlu0 %3299
  %v3301 = vsel %vm1583, %v3273, -inf
  %3302 = vmax.xlane.f32.xlu0 %v3301
  %v3303 = vpop.xlane.xlu0 %3302
  %v3304 = vsel %vm1583, %v3278, -inf
  %3305 = vmax.xlane.f32.xlu0 %v3304
  %v3306 = vpop.xlane.xlu0 %3305
  %v3307 = vsel %vm1583, %v3281, -inf
  %3308 = vmax.xlane.f32.xlu0 %v3307
  %v3309 = vpop.xlane.xlu0 %3308
  %v3310 = vsel %vm1583, %v3286, -inf
  %3311 = vmax.xlane.f32.xlu0 %v3310
  %v3312 = vpop.xlane.xlu0 %3311
  %v3313 = vsel %vm1583, %v3289, -inf
  %3314 = vmax.xlane.f32.xlu0 %v3313
  %v3315 = vpop.xlane.xlu0 %3314
  %v3316 = vsub.f32 %v3262, %v3294
  %v3317 = vsub.f32 %v3265, %v3297
  %v3318 = vsub.f32 %v3270, %v3300
  %v3319 = vsub.f32 %v3273, %v3303
  %v3320 = vsub.f32 %v3278, %v3306
  %v3321 = vsub.f32 %v3281, %v3309
  %v3322 = vsub.f32 %v3286, %v3312
  %v3323 = vsub.f32 %v3289, %v3315
  %v3324 = vmul.f32 %v3316, 1.442695
  %v3325 = vpow.pop %v3324
  %v3326 = vmul.f32 %v3317, 1.442695
  %v3327 = vpow.pop %v3326
  %v3328 = vmul.f32 %v3318, 1.442695
  %v3329 = vpow.pop %v3328
  %v3330 = vmul.f32 %v3319, 1.442695
  %v3331 = vpow.pop %v3330
  %v3332 = vmul.f32 %v3320, 1.442695
  %v3333 = vpow.pop %v3332
  %v3334 = vmul.f32 %v3321, 1.442695
  %v3335 = vpow.pop %v3334
  %v3336 = vmul.f32 %v3322, 1.442695
  %v3337 = vpow.pop %v3336
  %v3338 = vmul.f32 %v3323, 1.442695
  %v3339 = vpow.pop %v3338
  %v3340 = vsel %vm1583, %v3325, 0.0
  %3341 = vadd.xlane.f32.xlu0 %v3340
  %v3342 = vpop.xlane.xlu0 %3341
  %v3343 = vsel %vm1583, %v3327, 0.0
  %3344 = vadd.xlane.f32.xlu0 %v3343
  %v3345 = vpop.xlane.xlu0 %3344
  %v3346 = vsel %vm1583, %v3329, 0.0
  %3347 = vadd.xlane.f32.xlu0 %v3346
  %v3348 = vpop.xlane.xlu0 %3347
  %v3349 = vsel %vm1583, %v3331, 0.0
  %3350 = vadd.xlane.f32.xlu0 %v3349
  %v3351 = vpop.xlane.xlu0 %3350
  %v3352 = vsel %vm1583, %v3333, 0.0
  %3353 = vadd.xlane.f32.xlu0 %v3352
  %v3354 = vpop.xlane.xlu0 %3353
  %v3355 = vsel %vm1583, %v3335, 0.0
  %3356 = vadd.xlane.f32.xlu0 %v3355
  %v3357 = vpop.xlane.xlu0 %3356
  %v3358 = vsel %vm1583, %v3337, 0.0
  %3359 = vadd.xlane.f32.xlu0 %v3358
  %v3360 = vpop.xlane.xlu0 %3359
  %v3361 = vsel %vm1583, %v3339, 0.0
  %3362 = vadd.xlane.f32.xlu0 %v3361
  %v3363 = vpop.xlane.xlu0 %3362
  %v3364 = vrcp.pop %v3342
  %v3365 = vrcp.pop %v3345
  %v3366 = vrcp.pop %v3348
  %v3367 = vrcp.pop %v3351
  %v3368 = vrcp.pop %v3354
  %v3369 = vrcp.pop %v3357
  %v3370 = vrcp.pop %v3360
  %v3371 = vrcp.pop %v3363
  %v3372 = vmul.f32 %v3325, %v3364
  %v3373 = vmul.f32 %v3327, %v3365
  %v3374 = vmul.f32 %v3329, %v3366
  %v3375 = vmul.f32 %v3331, %v3367
  %v3376 = vmul.f32 %v3333, %v3368
  %v3377 = vmul.f32 %v3335, %v3369
  %v3378 = vmul.f32 %v3337, %v3370
  %v3379 = vmul.f32 %v3339, %v3371
  %v3380 = vpack.c.bf16 %v3373, %v3372
  %v3381 = vpack.c.bf16 %v3375, %v3374
  %v3382 = vpack.c.bf16 %v3377, %v3376
  %v3383 = vpack.c.bf16 %v3379, %v3378
  %v3385 = vsel %vm1583, %v3380, 0
  %v3388 = vsel %vm1583, %v3381, 0
  %v3391 = vsel %vm1583, %v3382, 0
  %v3394 = vsel %vm1583, %v3383, 0
  %3396 = vmatprep.subr.bf16.mxu0 0
  %3397 = vmatpush1.bf16.msra.mxu0 0
  %3398 = vmatprep.subr.bf16.mxu0 0
  %3399 = vmatpush1.bf16.msra.mxu0 0
  %3400 = vmatprep.subr.bf16.mxu0 0
  %3401 = vmatpush1.bf16.msra.mxu0 0
  %3402 = vmatprep.subr.bf16.mxu0 0
  %3403 = vmatpush1.bf16.msra.mxu0 0
  %3404 = vmatprep.subr.bf16.mxu0 0
  %3405 = vmatpush1.bf16.msra.mxu0 %v2831
  %3406 = vmatprep.subr.bf16.mxu0 0
  %3407 = vmatpush1.bf16.msra.mxu0 %v2829
  %3408 = vmatprep.subr.bf16.mxu0 0
  %3409 = vmatpush1.bf16.msra.mxu0 %v2827
  %3410 = vmatprep.subr.bf16.mxu0 0
  %3411 = vmatpush1.bf16.msra.mxu0 %v2825
  %3412 = vmatprep.subr.bf16.mxu0 0
  %3413 = vmatpush2.bf16.msra.mxu0 0
  %3414 = vmatprep.subr.bf16.mxu0 0
  %3415 = vmatpush2.bf16.msra.mxu0 0
  %3416 = vmatprep.subr.bf16.mxu0 0
  %3417 = vmatpush2.bf16.msra.mxu0 0
  %3418 = vmatprep.subr.bf16.mxu0 0
  %3419 = vmatpush2.bf16.msra.mxu0 0
  %3420 = vmatprep.subr.bf16.mxu0 0
  %3421 = vmatpush2.bf16.msra.mxu0 0
  %3422 = vmatprep.subr.bf16.mxu0 0
  %3423 = vmatpush2.bf16.msra.mxu0 0
  %3424 = vmatprep.subr.bf16.mxu0 0
  %3425 = vmatpush2.bf16.msra.mxu0 0
  %3426 = vmatprep.subr.bf16.mxu0 0
  %3427 = vmatpush2.bf16.msra.mxu0 0
  %3428 = vmatprep.mubr.bf16.mxu0 0
  %3429 = vmatmul.mubr.bf16.gmra.mxu0 %v3385
  %v3430 = vpop.f32.mrf.mxu0
  %v3431 = vadd.f32 0.0, %v3430
  %v3432 = vpop.f32.mrf.mxu0
  %v3433 = vpop.f32.mrf.mxu0
  %v3434 = vadd.f32 0.0, %v3433
  %v3435 = vpop.f32.mrf.mxu0
  %3436 = vmatprep.mubr.bf16.mxu0 0
  %3437 = vmatmul.mubr.bf16.gmra.mxu0 %v3388
  %v3438 = vpop.f32.mrf.mxu0
  %v3439 = vadd.f32 0.0, %v3438
  %v3440 = vpop.f32.mrf.mxu0
  %v3441 = vpop.f32.mrf.mxu0
  %v3442 = vadd.f32 0.0, %v3441
  %v3443 = vpop.f32.mrf.mxu0
  %3444 = vmatprep.mubr.bf16.mxu0 0
  %3445 = vmatmul.mubr.bf16.gmra.mxu0 %v3391
  %v3446 = vpop.f32.mrf.mxu0
  %v3447 = vadd.f32 0.0, %v3446
  %v3448 = vpop.f32.mrf.mxu0
  %v3449 = vpop.f32.mrf.mxu0
  %v3450 = vadd.f32 0.0, %v3449
  %v3451 = vpop.f32.mrf.mxu0
  %3452 = vmatprep.mubr.bf16.mxu0 0
  %3453 = vmatmul.mubr.bf16.gmra.mxu0 %v3394
  %v3454 = vpop.f32.mrf.mxu0
  %v3455 = vadd.f32 0.0, %v3454
  %v3456 = vpop.f32.mrf.mxu0
  %v3457 = vpop.f32.mrf.mxu0
  %v3458 = vadd.f32 0.0, %v3457
  %v3459 = vpop.f32.mrf.mxu0
  %3460 = vdwg.mxu0
  %v3461 = vmul.f32 %v3431, %v2062
  %v3462 = vmul.f32 %v3434, %v2062
  %v3463 = vmul.f32 %v3439, %v2062
  %v3464 = vmul.f32 %v3442, %v2062
  %v3465 = vmul.f32 %v3447, %v2062
  %v3466 = vmul.f32 %v3450, %v2062
  %v3467 = vmul.f32 %v3455, %v2062
  %v3468 = vmul.f32 %v3458, %v2062
  %v3469 = vadd.f32 %v3195, %v3461
  %v3470 = vadd.f32 %v3196, %v3462
  %v3471 = vadd.f32 %v3197, %v3463
  %v3472 = vadd.f32 %v3198, %v3464
  %v3473 = vadd.f32 %v3199, %v3465
  %v3474 = vadd.f32 %v3200, %v3466
  %v3475 = vadd.f32 %v3201, %v3467
  %v3476 = vadd.f32 %v3202, %v3468
  %v3477 = vmul.f32 %v1432, %v2340
  %v3478 = vmul.f32 %v1435, %v2340
  %v3479 = vmul.f32 %v1440, %v2340
  %v3480 = vmul.f32 %v1443, %v2340
  %v3481 = vmul.f32 %v1448, %v2340
  %v3482 = vmul.f32 %v1451, %v2340
  %v3483 = vmul.f32 %v1456, %v2340
  %v3484 = vmul.f32 %v1459, %v2340
  %v3485 = vpack.c.bf16 %v3478, %v3477
  %v3486 = vpack.c.bf16 %v3480, %v3479
  %v3487 = vpack.c.bf16 %v3482, %v3481
  %v3488 = vpack.c.bf16 %v3484, %v3483
  %v3490 = vsel %vm46, %v3485, 0
  %v3493 = vsel %vm46, %v3486, 0
  %v3496 = vsel %vm46, %v3487, 0
  %v3499 = vsel %vm46, %v3488, 0
  %3501 = vmatprep.subr.bf16.mxu0 0
  %3502 = vmatpush1.bf16.xpose.msra.mxu0 0
  %3503 = vmatprep.subr.bf16.mxu0 0
  %3504 = vmatpush1.bf16.xpose.msra.mxu0 0
  %3505 = vmatprep.subr.bf16.mxu0 0
  %3506 = vmatpush1.bf16.xpose.msra.mxu0 0
  %3507 = vmatprep.subr.bf16.mxu0 0
  %3508 = vmatpush1.bf16.xpose.msra.mxu0 0
  %3509 = vmatprep.subr.bf16.mxu0 0
  %3510 = vmatpush1.bf16.xpose.msra.mxu0 %v2665
  %3511 = vmatprep.subr.bf16.mxu0 0
  %3512 = vmatpush1.bf16.xpose.msra.mxu0 %v2662
  %3513 = vmatprep.subr.bf16.mxu0 0
  %3514 = vmatpush1.bf16.xpose.msra.mxu0 %v2659
  %3515 = vmatprep.subr.bf16.mxu0 0
  %3516 = vmatpush1.bf16.xpose.msra.mxu0 %v2656
  %3517 = vmatprep.subr.bf16.mxu0 0
  %3518 = vmatpush2.bf16.xpose.msra.mxu0 0
  %3519 = vmatprep.subr.bf16.mxu0 0
  %3520 = vmatpush2.bf16.xpose.msra.mxu0 0
  %3521 = vmatprep.subr.bf16.mxu0 0
  %3522 = vmatpush2.bf16.xpose.msra.mxu0 0
  %3523 = vmatprep.subr.bf16.mxu0 0
  %3524 = vmatpush2.bf16.xpose.msra.mxu0 0
  %3525 = vmatprep.subr.bf16.mxu0 0
  %3526 = vmatpush2.bf16.xpose.msra.mxu0 0
  %3527 = vmatprep.subr.bf16.mxu0 0
  %3528 = vmatpush2.bf16.xpose.msra.mxu0 0
  %3529 = vmatprep.subr.bf16.mxu0 0
  %3530 = vmatpush2.bf16.xpose.msra.mxu0 0
  %3531 = vmatprep.subr.bf16.mxu0 0
  %3532 = vmatpush2.bf16.xpose.msra.mxu0 0
  %3533 = vmatprep.mubr.bf16.mxu0 0
  %3534 = vmatmul.mubr.bf16.gmra.mxu0 %v3490
  %v3535 = vpop.f32.mrf.mxu0
  %v3536 = vadd.f32 0.0, %v3535
  %v3537 = vpop.f32.mrf.mxu0
  %v3538 = vpop.f32.mrf.mxu0
  %v3539 = vadd.f32 0.0, %v3538
  %v3540 = vpop.f32.mrf.mxu0
  %3541 = vmatprep.mubr.bf16.mxu0 0
  %3542 = vmatmul.mubr.bf16.gmra.mxu0 %v3493
  %v3543 = vpop.f32.mrf.mxu0
  %v3544 = vadd.f32 0.0, %v3543
  %v3545 = vpop.f32.mrf.mxu0
  %v3546 = vpop.f32.mrf.mxu0
  %v3547 = vadd.f32 0.0, %v3546
  %v3548 = vpop.f32.mrf.mxu0
  %3549 = vmatprep.mubr.bf16.mxu0 0
  %3550 = vmatmul.mubr.bf16.gmra.mxu0 %v3496
  %v3551 = vpop.f32.mrf.mxu0
  %v3552 = vadd.f32 0.0, %v3551
  %v3553 = vpop.f32.mrf.mxu0
  %v3554 = vpop.f32.mrf.mxu0
  %v3555 = vadd.f32 0.0, %v3554
  %v3556 = vpop.f32.mrf.mxu0
  %3557 = vmatprep.mubr.bf16.mxu0 0
  %3558 = vmatmul.mubr.bf16.gmra.mxu0 %v3499
  %v3559 = vpop.f32.mrf.mxu0
  %v3560 = vadd.f32 0.0, %v3559
  %v3561 = vpop.f32.mrf.mxu0
  %v3562 = vpop.f32.mrf.mxu0
  %v3563 = vadd.f32 0.0, %v3562
  %v3564 = vpop.f32.mrf.mxu0
  %3565 = vdwg.mxu0
  %v3566 = vsel %vm1583, %v3536, -inf
  %3567 = vmax.xlane.f32.xlu0 %v3566
  %v3568 = vpop.xlane.xlu0 %3567
  %v3569 = vsel %vm1583, %v3539, -inf
  %3570 = vmax.xlane.f32.xlu0 %v3569
  %v3571 = vpop.xlane.xlu0 %3570
  %v3572 = vsel %vm1583, %v3544, -inf
  %3573 = vmax.xlane.f32.xlu0 %v3572
  %v3574 = vpop.xlane.xlu0 %3573
  %v3575 = vsel %vm1583, %v3547, -inf
  %3576 = vmax.xlane.f32.xlu0 %v3575
  %v3577 = vpop.xlane.xlu0 %3576
  %v3578 = vsel %vm1583, %v3552, -inf
  %3579 = vmax.xlane.f32.xlu0 %v3578
  %v3580 = vpop.xlane.xlu0 %3579
  %v3581 = vsel %vm1583, %v3555, -inf
  %3582 = vmax.xlane.f32.xlu0 %v3581
  %v3583 = vpop.xlane.xlu0 %3582
  %v3584 = vsel %vm1583, %v3560, -inf
  %3585 = vmax.xlane.f32.xlu0 %v3584
  %v3586 = vpop.xlane.xlu0 %3585
  %v3587 = vsel %vm1583, %v3563, -inf
  %3588 = vmax.xlane.f32.xlu0 %v3587
  %v3589 = vpop.xlane.xlu0 %3588
  %v3590 = vsub.f32 %v3536, %v3568
  %v3591 = vsub.f32 %v3539, %v3571
  %v3592 = vsub.f32 %v3544, %v3574
  %v3593 = vsub.f32 %v3547, %v3577
  %v3594 = vsub.f32 %v3552, %v3580
  %v3595 = vsub.f32 %v3555, %v3583
  %v3596 = vsub.f32 %v3560, %v3586
  %v3597 = vsub.f32 %v3563, %v3589
  %v3598 = vmul.f32 %v3590, 1.442695
  %v3599 = vpow.pop %v3598
  %v3600 = vmul.f32 %v3591, 1.442695
  %v3601 = vpow.pop %v3600
  %v3602 = vmul.f32 %v3592, 1.442695
  %v3603 = vpow.pop %v3602
  %v3604 = vmul.f32 %v3593, 1.442695
  %v3605 = vpow.pop %v3604
  %v3606 = vmul.f32 %v3594, 1.442695
  %v3607 = vpow.pop %v3606
  %v3608 = vmul.f32 %v3595, 1.442695
  %v3609 = vpow.pop %v3608
  %v3610 = vmul.f32 %v3596, 1.442695
  %v3611 = vpow.pop %v3610
  %v3612 = vmul.f32 %v3597, 1.442695
  %v3613 = vpow.pop %v3612
  %v3614 = vsel %vm1583, %v3599, 0.0
  %3615 = vadd.xlane.f32.xlu0 %v3614
  %v3616 = vpop.xlane.xlu0 %3615
  %v3617 = vsel %vm1583, %v3601, 0.0
  %3618 = vadd.xlane.f32.xlu0 %v3617
  %v3619 = vpop.xlane.xlu0 %3618
  %v3620 = vsel %vm1583, %v3603, 0.0
  %3621 = vadd.xlane.f32.xlu0 %v3620
  %v3622 = vpop.xlane.xlu0 %3621
  %v3623 = vsel %vm1583, %v3605, 0.0
  %3624 = vadd.xlane.f32.xlu0 %v3623
  %v3625 = vpop.xlane.xlu0 %3624
  %v3626 = vsel %vm1583, %v3607, 0.0
  %3627 = vadd.xlane.f32.xlu0 %v3626
  %v3628 = vpop.xlane.xlu0 %3627
  %v3629 = vsel %vm1583, %v3609, 0.0
  %3630 = vadd.xlane.f32.xlu0 %v3629
  %v3631 = vpop.xlane.xlu0 %3630
  %v3632 = vsel %vm1583, %v3611, 0.0
  %3633 = vadd.xlane.f32.xlu0 %v3632
  %v3634 = vpop.xlane.xlu0 %3633
  %v3635 = vsel %vm1583, %v3613, 0.0
  %3636 = vadd.xlane.f32.xlu0 %v3635
  %v3637 = vpop.xlane.xlu0 %3636
  %v3638 = vrcp.pop %v3616
  %v3639 = vrcp.pop %v3619
  %v3640 = vrcp.pop %v3622
  %v3641 = vrcp.pop %v3625
  %v3642 = vrcp.pop %v3628
  %v3643 = vrcp.pop %v3631
  %v3644 = vrcp.pop %v3634
  %v3645 = vrcp.pop %v3637
  %v3646 = vmul.f32 %v3599, %v3638
  %v3647 = vmul.f32 %v3601, %v3639
  %v3648 = vmul.f32 %v3603, %v3640
  %v3649 = vmul.f32 %v3605, %v3641
  %v3650 = vmul.f32 %v3607, %v3642
  %v3651 = vmul.f32 %v3609, %v3643
  %v3652 = vmul.f32 %v3611, %v3644
  %v3653 = vmul.f32 %v3613, %v3645
  %v3654 = vpack.c.bf16 %v3647, %v3646
  %v3655 = vpack.c.bf16 %v3649, %v3648
  %v3656 = vpack.c.bf16 %v3651, %v3650
  %v3657 = vpack.c.bf16 %v3653, %v3652
  %v3659 = vsel %vm1583, %v3654, 0
  %v3662 = vsel %vm1583, %v3655, 0
  %v3665 = vsel %vm1583, %v3656, 0
  %v3668 = vsel %vm1583, %v3657, 0
  %3670 = vmatprep.subr.bf16.mxu0 0
  %3671 = vmatpush1.bf16.msra.mxu0 0
  %3672 = vmatprep.subr.bf16.mxu0 0
  %3673 = vmatpush1.bf16.msra.mxu0 0
  %3674 = vmatprep.subr.bf16.mxu0 0
  %3675 = vmatpush1.bf16.msra.mxu0 0
  %3676 = vmatprep.subr.bf16.mxu0 0
  %3677 = vmatpush1.bf16.msra.mxu0 0
  %3678 = vmatprep.subr.bf16.mxu0 0
  %3679 = vmatpush1.bf16.msra.mxu0 %v2831
  %3680 = vmatprep.subr.bf16.mxu0 0
  %3681 = vmatpush1.bf16.msra.mxu0 %v2829
  %3682 = vmatprep.subr.bf16.mxu0 0
  %3683 = vmatpush1.bf16.msra.mxu0 %v2827
  %3684 = vmatprep.subr.bf16.mxu0 0
  %3685 = vmatpush1.bf16.msra.mxu0 %v2825
  %3686 = vmatprep.subr.bf16.mxu0 0
  %3687 = vmatpush2.bf16.msra.mxu0 0
  %3688 = vmatprep.subr.bf16.mxu0 0
  %3689 = vmatpush2.bf16.msra.mxu0 0
  %3690 = vmatprep.subr.bf16.mxu0 0
  %3691 = vmatpush2.bf16.msra.mxu0 0
  %3692 = vmatprep.subr.bf16.mxu0 0
  %3693 = vmatpush2.bf16.msra.mxu0 0
  %3694 = vmatprep.subr.bf16.mxu0 0
  %3695 = vmatpush2.bf16.msra.mxu0 0
  %3696 = vmatprep.subr.bf16.mxu0 0
  %3697 = vmatpush2.bf16.msra.mxu0 0
  %3698 = vmatprep.subr.bf16.mxu0 0
  %3699 = vmatpush2.bf16.msra.mxu0 0
  %3700 = vmatprep.subr.bf16.mxu0 0
  %3701 = vmatpush2.bf16.msra.mxu0 0
  %3702 = vmatprep.mubr.bf16.mxu0 0
  %3703 = vmatmul.mubr.bf16.gmra.mxu0 %v3659
  %v3704 = vpop.f32.mrf.mxu0
  %v3705 = vadd.f32 0.0, %v3704
  %v3706 = vpop.f32.mrf.mxu0
  %v3707 = vpop.f32.mrf.mxu0
  %v3708 = vadd.f32 0.0, %v3707
  %v3709 = vpop.f32.mrf.mxu0
  %3710 = vmatprep.mubr.bf16.mxu0 0
  %3711 = vmatmul.mubr.bf16.gmra.mxu0 %v3662
  %v3712 = vpop.f32.mrf.mxu0
  %v3713 = vadd.f32 0.0, %v3712
  %v3714 = vpop.f32.mrf.mxu0
  %v3715 = vpop.f32.mrf.mxu0
  %v3716 = vadd.f32 0.0, %v3715
  %v3717 = vpop.f32.mrf.mxu0
  %3718 = vmatprep.mubr.bf16.mxu0 0
  %3719 = vmatmul.mubr.bf16.gmra.mxu0 %v3665
  %v3720 = vpop.f32.mrf.mxu0
  %v3721 = vadd.f32 0.0, %v3720
  %v3722 = vpop.f32.mrf.mxu0
  %v3723 = vpop.f32.mrf.mxu0
  %v3724 = vadd.f32 0.0, %v3723
  %v3725 = vpop.f32.mrf.mxu0
  %3726 = vmatprep.mubr.bf16.mxu0 0
  %3727 = vmatmul.mubr.bf16.gmra.mxu0 %v3668
  %v3728 = vpop.f32.mrf.mxu0
  %v3729 = vadd.f32 0.0, %v3728
  %v3730 = vpop.f32.mrf.mxu0
  %v3731 = vpop.f32.mrf.mxu0
  %v3732 = vadd.f32 0.0, %v3731
  %v3733 = vpop.f32.mrf.mxu0
  %3734 = vdwg.mxu0
  %v3735 = vmul.f32 %v3705, %v2340
  %v3736 = vmul.f32 %v3708, %v2340
  %v3737 = vmul.f32 %v3713, %v2340
  %v3738 = vmul.f32 %v3716, %v2340
  %v3739 = vmul.f32 %v3721, %v2340
  %v3740 = vmul.f32 %v3724, %v2340
  %v3741 = vmul.f32 %v3729, %v2340
  %v3742 = vmul.f32 %v3732, %v2340
  %v3743 = vadd.f32 %v3469, %v3735
  %v3744 = vadd.f32 %v3470, %v3736
  %v3745 = vadd.f32 %v3471, %v3737
  %v3746 = vadd.f32 %v3472, %v3738
  %v3747 = vadd.f32 %v3473, %v3739
  %v3748 = vadd.f32 %v3474, %v3740
  %v3749 = vadd.f32 %v3475, %v3741
  %v3750 = vadd.f32 %v3476, %v3742
  %v3751 = vpack.c.bf16 %v2608, %v2607
  %v3752 = vpack.c.bf16 %v2610, %v2609
  %v3753 = vpack.c.bf16 %v2612, %v2611
  %v3754 = vpack.c.bf16 %v2614, %v2613
  %v3755 = vpack.c.bf16 %v3744, %v3743
  %v3756 = vpack.c.bf16 %v3746, %v3745
  %v3757 = vpack.c.bf16 %v3748, %v3747
  %v3758 = vpack.c.bf16 %v3750, %v3749
  %v3759 = vld [vmem:[%s4] sm:$0xf]
  %v3760 = vld [vmem:[%s4 + $0x4] sm:$0xf]
  %v3761 = vld [vmem:[%s4 + $0x8] sm:$0xf]
  %v3762 = vld [vmem:[%s4 + $0xc] sm:$0xf]
  %v3763 = vlaneseq
  %v3764 = vshrl.u32 %v3763, 7
  %v3765 = vsub.s32 6, %v3764
  %v3766 = vrot.slane %v44, %v3765
  %v3771 = vunpack.c.l.b16 %v3759
  %v3772 = vunpack.c.l.b16 %v3760
  %v3773 = vunpack.c.l.b16 %v3761
  %v3774 = vunpack.c.l.b16 %v3762
  %v3775 = vpack.c.b16 %v3772, %v3771
  %v3776 = vpack.c.b16 %v3774, %v3773
  %v3780 = vsel %vm46, %v3751, 0
  %v3783 = vsel %vm46, %v3752, 0
  %v3786 = vsel %vm46, %v3753, 0
  %v3789 = vsel %vm46, %v3754, 0
  %v3792 = vsel %vm46, %v3755, 0
  %v3795 = vsel %vm46, %v3756, 0
  %v3798 = vsel %vm46, %v3757, 0
  %v3801 = vsel %vm46, %v3758, 0
  %3803 = vmatprep.subr.bf16.mxu0 0
  %3804 = vmatpush1.bf16.msra.mxu0 0
  %3805 = vmatprep.subr.bf16.mxu0 0
  %3806 = vmatpush1.bf16.msra.mxu0 0
  %3807 = vmatprep.subr.bf16.mxu0 0
  %3808 = vmatpush1.bf16.msra.mxu0 0
  %3809 = vmatprep.subr.bf16.mxu0 0
  %3810 = vmatpush1.bf16.msra.mxu0 0
  %3811 = vmatprep.subr.bf16.mxu0 0
  %3812 = vmatpush1.bf16.msra.mxu0 0
  %3813 = vmatprep.subr.bf16.mxu0 0
  %3814 = vmatpush1.bf16.msra.mxu0 0
  %3815 = vmatprep.subr.bf16.mxu0 0
  %3816 = vmatpush1.bf16.msra.mxu0 %v3776
  %3817 = vmatprep.subr.bf16.mxu0 0
  %3818 = vmatpush1.bf16.msra.mxu0 %v3775
  %3819 = vmatprep.subr.bf16.mxu0 0
  %3820 = vmatpush2.bf16.msra.mxu0 0
  %3821 = vmatprep.subr.bf16.mxu0 0
  %3822 = vmatpush2.bf16.msra.mxu0 0
  %3823 = vmatprep.subr.bf16.mxu0 0
  %3824 = vmatpush2.bf16.msra.mxu0 0
  %3825 = vmatprep.subr.bf16.mxu0 0
  %3826 = vmatpush2.bf16.msra.mxu0 0
  %3827 = vmatprep.subr.bf16.mxu0 0
  %3828 = vmatpush2.bf16.msra.mxu0 0
  %3829 = vmatprep.subr.bf16.mxu0 0
  %3830 = vmatpush2.bf16.msra.mxu0 0
  %3831 = vmatprep.subr.bf16.mxu0 0
  %3832 = vmatpush2.bf16.msra.mxu0 0
  %3833 = vmatprep.subr.bf16.mxu0 0
  %3834 = vmatpush2.bf16.msra.mxu0 0
  %3835 = vmatprep.mubr.bf16.mxu0 0
  %3836 = vmatmul.mubr.bf16.gmra.mxu0 %v3780
  %v3837 = vpop.f32.mrf.mxu0
  %v3838 = vadd.f32 %v3766, %v3837
  %v3839 = vpop.f32.mrf.mxu0
  %v3840 = vpop.f32.mrf.mxu0
  %v3841 = vadd.f32 %v3766, %v3840
  %v3842 = vpop.f32.mrf.mxu0
  %3843 = vmatprep.mubr.bf16.mxu0 0
  %3844 = vmatmul.mubr.bf16.gmra.mxu0 %v3783
  %v3845 = vpop.f32.mrf.mxu0
  %v3846 = vadd.f32 %v3766, %v3845
  %v3847 = vpop.f32.mrf.mxu0
  %v3848 = vpop.f32.mrf.mxu0
  %v3849 = vadd.f32 %v3766, %v3848
  %v3850 = vpop.f32.mrf.mxu0
  %3851 = vmatprep.mubr.bf16.mxu0 0
  %3852 = vmatmul.mubr.bf16.gmra.mxu0 %v3786
  %v3853 = vpop.f32.mrf.mxu0
  %v3854 = vadd.f32 %v3766, %v3853
  %v3855 = vpop.f32.mrf.mxu0
  %v3856 = vpop.f32.mrf.mxu0
  %v3857 = vadd.f32 %v3766, %v3856
  %v3858 = vpop.f32.mrf.mxu0
  %3859 = vmatprep.mubr.bf16.mxu0 0
  %3860 = vmatmul.mubr.bf16.gmra.mxu0 %v3789
  %v3861 = vpop.f32.mrf.mxu0
  %v3862 = vadd.f32 %v3766, %v3861
  %v3863 = vpop.f32.mrf.mxu0
  %v3864 = vpop.f32.mrf.mxu0
  %v3865 = vadd.f32 %v3766, %v3864
  %v3866 = vpop.f32.mrf.mxu0
  %3867 = vmatprep.mubr.bf16.mxu0 0
  %3868 = vmatmul.mubr.bf16.gmra.mxu0 %v3792
  %v3869 = vpop.f32.mrf.mxu0
  %v3870 = vadd.f32 %v3766, %v3869
  %v3871 = vpop.f32.mrf.mxu0
  %v3872 = vpop.f32.mrf.mxu0
  %v3873 = vadd.f32 %v3766, %v3872
  %v3874 = vpop.f32.mrf.mxu0
  %3875 = vmatprep.mubr.bf16.mxu0 0
  %3876 = vmatmul.mubr.bf16.gmra.mxu0 %v3795
  %v3877 = vpop.f32.mrf.mxu0
  %v3878 = vadd.f32 %v3766, %v3877
  %v3879 = vpop.f32.mrf.mxu0
  %v3880 = vpop.f32.mrf.mxu0
  %v3881 = vadd.f32 %v3766, %v3880
  %v3882 = vpop.f32.mrf.mxu0
  %3883 = vmatprep.mubr.bf16.mxu0 0
  %3884 = vmatmul.mubr.bf16.gmra.mxu0 %v3798
  %v3885 = vpop.f32.mrf.mxu0
  %v3886 = vadd.f32 %v3766, %v3885
  %v3887 = vpop.f32.mrf.mxu0
  %v3888 = vpop.f32.mrf.mxu0
  %v3889 = vadd.f32 %v3766, %v3888
  %v3890 = vpop.f32.mrf.mxu0
  %3891 = vmatprep.mubr.bf16.mxu0 0
  %3892 = vmatmul.mubr.bf16.gmra.mxu0 %v3801
  %v3893 = vpop.f32.mrf.mxu0
  %v3894 = vadd.f32 %v3766, %v3893
  %v3895 = vpop.f32.mrf.mxu0
  %v3896 = vpop.f32.mrf.mxu0
  %v3897 = vadd.f32 %v3766, %v3896
  %v3898 = vpop.f32.mrf.mxu0
  %3899 = vdwg.mxu0
  %v3900 = vadd.f32 %v27, %v3838
  %v3901 = vadd.f32 %v28, %v3841
  %v3902 = vadd.f32 %v29, %v3846
  %v3903 = vadd.f32 %v30, %v3849
  %v3904 = vadd.f32 %v31, %v3854
  %v3905 = vadd.f32 %v32, %v3857
  %v3906 = vadd.f32 %v33, %v3862
  %v3907 = vadd.f32 %v34, %v3865
  %v3908 = vadd.f32 %v35, %v3870
  %v3909 = vadd.f32 %v36, %v3873
  %v3910 = vadd.f32 %v37, %v3878
  %v3911 = vadd.f32 %v38, %v3881
  %v3912 = vadd.f32 %v39, %v3886
  %v3913 = vadd.f32 %v40, %v3889
  %v3914 = vadd.f32 %v41, %v3894
  %v3915 = vadd.f32 %v42, %v3897
  %v3916 = vsel %vm46, %v3900, 0.0
  %3917 = vadd.xlane.f32.xlu0 %v3916
  %v3918 = vpop.xlane.xlu0 %3917
  %v3919 = vsel %vm46, %v3901, 0.0
  %3920 = vadd.xlane.f32.xlu0 %v3919
  %v3921 = vpop.xlane.xlu0 %3920
  %v3922 = vsel %vm46, %v3902, 0.0
  %3923 = vadd.xlane.f32.xlu0 %v3922
  %v3924 = vpop.xlane.xlu0 %3923
  %v3925 = vsel %vm46, %v3903, 0.0
  %3926 = vadd.xlane.f32.xlu0 %v3925
  %v3927 = vpop.xlane.xlu0 %3926
  %v3928 = vsel %vm46, %v3904, 0.0
  %3929 = vadd.xlane.f32.xlu0 %v3928
  %v3930 = vpop.xlane.xlu0 %3929
  %v3931 = vsel %vm46, %v3905, 0.0
  %3932 = vadd.xlane.f32.xlu0 %v3931
  %v3933 = vpop.xlane.xlu0 %3932
  %v3934 = vsel %vm46, %v3906, 0.0
  %3935 = vadd.xlane.f32.xlu0 %v3934
  %v3936 = vpop.xlane.xlu0 %3935
  %v3937 = vsel %vm46, %v3907, 0.0
  %3938 = vadd.xlane.f32.xlu0 %v3937
  %v3939 = vpop.xlane.xlu0 %3938
  %v3940 = vsel %vm46, %v3908, 0.0
  %3941 = vadd.xlane.f32.xlu0 %v3940
  %v3942 = vpop.xlane.xlu0 %3941
  %v3943 = vsel %vm46, %v3909, 0.0
  %3944 = vadd.xlane.f32.xlu0 %v3943
  %v3945 = vpop.xlane.xlu0 %3944
  %v3946 = vsel %vm46, %v3910, 0.0
  %3947 = vadd.xlane.f32.xlu0 %v3946
  %v3948 = vpop.xlane.xlu0 %3947
  %v3949 = vsel %vm46, %v3911, 0.0
  %3950 = vadd.xlane.f32.xlu0 %v3949
  %v3951 = vpop.xlane.xlu0 %3950
  %v3952 = vsel %vm46, %v3912, 0.0
  %3953 = vadd.xlane.f32.xlu0 %v3952
  %v3954 = vpop.xlane.xlu0 %3953
  %v3955 = vsel %vm46, %v3913, 0.0
  %3956 = vadd.xlane.f32.xlu0 %v3955
  %v3957 = vpop.xlane.xlu0 %3956
  %v3958 = vsel %vm46, %v3914, 0.0
  %3959 = vadd.xlane.f32.xlu0 %v3958
  %v3960 = vpop.xlane.xlu0 %3959
  %v3961 = vsel %vm46, %v3915, 0.0
  %3962 = vadd.xlane.f32.xlu0 %v3961
  %v3963 = vpop.xlane.xlu0 %3962
  %v3964 = vmul.f32 %v3918, %v95
  %v3965 = vmul.f32 %v3921, %v95
  %v3966 = vmul.f32 %v3924, %v95
  %v3967 = vmul.f32 %v3927, %v95
  %v3968 = vmul.f32 %v3930, %v95
  %v3969 = vmul.f32 %v3933, %v95
  %v3970 = vmul.f32 %v3936, %v95
  %v3971 = vmul.f32 %v3939, %v95
  %v3972 = vmul.f32 %v3942, %v95
  %v3973 = vmul.f32 %v3945, %v95
  %v3974 = vmul.f32 %v3948, %v95
  %v3975 = vmul.f32 %v3951, %v95
  %v3976 = vmul.f32 %v3954, %v95
  %v3977 = vmul.f32 %v3957, %v95
  %v3978 = vmul.f32 %v3960, %v95
  %v3979 = vmul.f32 %v3963, %v95
  %v3980 = vsub.f32 %v3900, %v3964
  %v3981 = vsub.f32 %v3901, %v3965
  %v3982 = vsub.f32 %v3902, %v3966
  %v3983 = vsub.f32 %v3903, %v3967
  %v3984 = vsub.f32 %v3904, %v3968
  %v3985 = vsub.f32 %v3905, %v3969
  %v3986 = vsub.f32 %v3906, %v3970
  %v3987 = vsub.f32 %v3907, %v3971
  %v3988 = vsub.f32 %v3908, %v3972
  %v3989 = vsub.f32 %v3909, %v3973
  %v3990 = vsub.f32 %v3910, %v3974
  %v3991 = vsub.f32 %v3911, %v3975
  %v3992 = vsub.f32 %v3912, %v3976
  %v3993 = vsub.f32 %v3913, %v3977
  %v3994 = vsub.f32 %v3914, %v3978
  %v3995 = vsub.f32 %v3915, %v3979
  %v3996 = vmul.f32 %v3980, %v3980
  %v3997 = vmul.f32 %v3981, %v3981
  %v3998 = vmul.f32 %v3982, %v3982
  %v3999 = vmul.f32 %v3983, %v3983
  %v4000 = vmul.f32 %v3984, %v3984
  %v4001 = vmul.f32 %v3985, %v3985
  %v4002 = vmul.f32 %v3986, %v3986
  %v4003 = vmul.f32 %v3987, %v3987
  %v4004 = vmul.f32 %v3988, %v3988
  %v4005 = vmul.f32 %v3989, %v3989
  %v4006 = vmul.f32 %v3990, %v3990
  %v4007 = vmul.f32 %v3991, %v3991
  %v4008 = vmul.f32 %v3992, %v3992
  %v4009 = vmul.f32 %v3993, %v3993
  %v4010 = vmul.f32 %v3994, %v3994
  %v4011 = vmul.f32 %v3995, %v3995
  %v4012 = vsel %vm46, %v3996, 0.0
  %4013 = vadd.xlane.f32.xlu0 %v4012
  %v4014 = vpop.xlane.xlu0 %4013
  %v4015 = vsel %vm46, %v3997, 0.0
  %4016 = vadd.xlane.f32.xlu0 %v4015
  %v4017 = vpop.xlane.xlu0 %4016
  %v4018 = vsel %vm46, %v3998, 0.0
  %4019 = vadd.xlane.f32.xlu0 %v4018
  %v4020 = vpop.xlane.xlu0 %4019
  %v4021 = vsel %vm46, %v3999, 0.0
  %4022 = vadd.xlane.f32.xlu0 %v4021
  %v4023 = vpop.xlane.xlu0 %4022
  %v4024 = vsel %vm46, %v4000, 0.0
  %4025 = vadd.xlane.f32.xlu0 %v4024
  %v4026 = vpop.xlane.xlu0 %4025
  %v4027 = vsel %vm46, %v4001, 0.0
  %4028 = vadd.xlane.f32.xlu0 %v4027
  %v4029 = vpop.xlane.xlu0 %4028
  %v4030 = vsel %vm46, %v4002, 0.0
  %4031 = vadd.xlane.f32.xlu0 %v4030
  %v4032 = vpop.xlane.xlu0 %4031
  %v4033 = vsel %vm46, %v4003, 0.0
  %4034 = vadd.xlane.f32.xlu0 %v4033
  %v4035 = vpop.xlane.xlu0 %4034
  %v4036 = vsel %vm46, %v4004, 0.0
  %4037 = vadd.xlane.f32.xlu0 %v4036
  %v4038 = vpop.xlane.xlu0 %4037
  %v4039 = vsel %vm46, %v4005, 0.0
  %4040 = vadd.xlane.f32.xlu0 %v4039
  %v4041 = vpop.xlane.xlu0 %4040
  %v4042 = vsel %vm46, %v4006, 0.0
  %4043 = vadd.xlane.f32.xlu0 %v4042
  %v4044 = vpop.xlane.xlu0 %4043
  %v4045 = vsel %vm46, %v4007, 0.0
  %4046 = vadd.xlane.f32.xlu0 %v4045
  %v4047 = vpop.xlane.xlu0 %4046
  %v4048 = vsel %vm46, %v4008, 0.0
  %4049 = vadd.xlane.f32.xlu0 %v4048
  %v4050 = vpop.xlane.xlu0 %4049
  %v4051 = vsel %vm46, %v4009, 0.0
  %4052 = vadd.xlane.f32.xlu0 %v4051
  %v4053 = vpop.xlane.xlu0 %4052
  %v4054 = vsel %vm46, %v4010, 0.0
  %4055 = vadd.xlane.f32.xlu0 %v4054
  %v4056 = vpop.xlane.xlu0 %4055
  %v4057 = vsel %vm46, %v4011, 0.0
  %4058 = vadd.xlane.f32.xlu0 %v4057
  %v4059 = vpop.xlane.xlu0 %4058
  %v4060 = vmul.f32 %v4014, %v95
  %v4061 = vmul.f32 %v4017, %v95
  %v4062 = vmul.f32 %v4020, %v95
  %v4063 = vmul.f32 %v4023, %v95
  %v4064 = vmul.f32 %v4026, %v95
  %v4065 = vmul.f32 %v4029, %v95
  %v4066 = vmul.f32 %v4032, %v95
  %v4067 = vmul.f32 %v4035, %v95
  %v4068 = vmul.f32 %v4038, %v95
  %v4069 = vmul.f32 %v4041, %v95
  %v4070 = vmul.f32 %v4044, %v95
  %v4071 = vmul.f32 %v4047, %v95
  %v4072 = vmul.f32 %v4050, %v95
  %v4073 = vmul.f32 %v4053, %v95
  %v4074 = vmul.f32 %v4056, %v95
  %v4075 = vmul.f32 %v4059, %v95
  %v4076 = vadd.f32 %v4060, 1e-05
  %v4077 = vadd.f32 %v4061, 1e-05
  %v4078 = vadd.f32 %v4062, 1e-05
  %v4079 = vadd.f32 %v4063, 1e-05
  %v4080 = vadd.f32 %v4064, 1e-05
  %v4081 = vadd.f32 %v4065, 1e-05
  %v4082 = vadd.f32 %v4066, 1e-05
  %v4083 = vadd.f32 %v4067, 1e-05
  %v4084 = vadd.f32 %v4068, 1e-05
  %v4085 = vadd.f32 %v4069, 1e-05
  %v4086 = vadd.f32 %v4070, 1e-05
  %v4087 = vadd.f32 %v4071, 1e-05
  %v4088 = vadd.f32 %v4072, 1e-05
  %v4089 = vadd.f32 %v4073, 1e-05
  %v4090 = vadd.f32 %v4074, 1e-05
  %v4091 = vadd.f32 %v4075, 1e-05
  %v4092 = vrsqrt.pop %v4076
  %v4093 = vrsqrt.pop %v4077
  %v4094 = vrsqrt.pop %v4078
  %v4095 = vrsqrt.pop %v4079
  %v4096 = vrsqrt.pop %v4080
  %v4097 = vrsqrt.pop %v4081
  %v4098 = vrsqrt.pop %v4082
  %v4099 = vrsqrt.pop %v4083
  %v4100 = vrsqrt.pop %v4084
  %v4101 = vrsqrt.pop %v4085
  %v4102 = vrsqrt.pop %v4086
  %v4103 = vrsqrt.pop %v4087
  %v4104 = vrsqrt.pop %v4088
  %v4105 = vrsqrt.pop %v4089
  %v4106 = vrsqrt.pop %v4090
  %v4107 = vrsqrt.pop %v4091
  %v4108 = vmul.f32 %v3980, %v4092
  %v4109 = vmul.f32 %v3981, %v4093
  %v4110 = vmul.f32 %v3982, %v4094
  %v4111 = vmul.f32 %v3983, %v4095
  %v4112 = vmul.f32 %v3984, %v4096
  %v4113 = vmul.f32 %v3985, %v4097
  %v4114 = vmul.f32 %v3986, %v4098
  %v4115 = vmul.f32 %v3987, %v4099
  %v4116 = vmul.f32 %v3988, %v4100
  %v4117 = vmul.f32 %v3989, %v4101
  %v4118 = vmul.f32 %v3990, %v4102
  %v4119 = vmul.f32 %v3991, %v4103
  %v4120 = vmul.f32 %v3992, %v4104
  %v4121 = vmul.f32 %v3993, %v4105
  %v4122 = vmul.f32 %v3994, %v4106
  %v4123 = vmul.f32 %v3995, %v4107
  %v4124 = vlaneseq
  %v4125 = vshrl.u32 %v4124, 7
  %v4126 = vsub.s32 4, %v4125
  %v4127 = vrot.slane %v44, %v4126
  %v4128 = vmul.f32 %v4108, %v4127
  %v4129 = vmul.f32 %v4109, %v4127
  %v4130 = vmul.f32 %v4110, %v4127
  %v4131 = vmul.f32 %v4111, %v4127
  %v4132 = vmul.f32 %v4112, %v4127
  %v4133 = vmul.f32 %v4113, %v4127
  %v4134 = vmul.f32 %v4114, %v4127
  %v4135 = vmul.f32 %v4115, %v4127
  %v4136 = vmul.f32 %v4116, %v4127
  %v4137 = vmul.f32 %v4117, %v4127
  %v4138 = vmul.f32 %v4118, %v4127
  %v4139 = vmul.f32 %v4119, %v4127
  %v4140 = vmul.f32 %v4120, %v4127
  %v4141 = vmul.f32 %v4121, %v4127
  %v4142 = vmul.f32 %v4122, %v4127
  %v4143 = vmul.f32 %v4123, %v4127
  %v4144 = vlaneseq
  %v4145 = vshrl.u32 %v4144, 7
  %v4146 = vsub.s32 5, %v4145
  %v4147 = vrot.slane %v44, %v4146
  %v4148 = vadd.f32 %v4128, %v4147
  %v4149 = vadd.f32 %v4129, %v4147
  %v4150 = vadd.f32 %v4130, %v4147
  %v4151 = vadd.f32 %v4131, %v4147
  %v4152 = vadd.f32 %v4132, %v4147
  %v4153 = vadd.f32 %v4133, %v4147
  %v4154 = vadd.f32 %v4134, %v4147
  %v4155 = vadd.f32 %v4135, %v4147
  %v4156 = vadd.f32 %v4136, %v4147
  %v4157 = vadd.f32 %v4137, %v4147
  %v4158 = vadd.f32 %v4138, %v4147
  %v4159 = vadd.f32 %v4139, %v4147
  %v4160 = vadd.f32 %v4140, %v4147
  %v4161 = vadd.f32 %v4141, %v4147
  %v4162 = vadd.f32 %v4142, %v4147
  %v4163 = vadd.f32 %v4143, %v4147
  %v4164 = vpack.c.bf16 %v4149, %v4148
  %v4165 = vpack.c.bf16 %v4151, %v4150
  %v4166 = vpack.c.bf16 %v4153, %v4152
  %v4167 = vpack.c.bf16 %v4155, %v4154
  %v4168 = vpack.c.bf16 %v4157, %v4156
  %v4169 = vpack.c.bf16 %v4159, %v4158
  %v4170 = vpack.c.bf16 %v4161, %v4160
  %v4171 = vpack.c.bf16 %v4163, %v4162
  %v4172 = vld [vmem:[%s5] sm:$0xf]
  %v4173 = vld [vmem:[%s5 + $0x4] sm:$0xf]
  %v4174 = vld [vmem:[%s5 + $0x8] sm:$0xf]
  %v4175 = vld [vmem:[%s5 + $0xc] sm:$0xf]
  %v4176 = vld [vmem:[%s2] sm:$0x1]
  %v4178 = vlaneseq
  %v4179 = vshrl.u32 %v4178, 7
  %v4180 = vsub.s32 0, %v4179
  %v4181 = vrot.slane %v4176, %v4180
  %v4187 = vunpack.c.l.b16 %v4172
  %v4188 = vunpack.c.l.b16 %v4173
  %v4189 = vunpack.c.l.b16 %v4174
  %v4190 = vunpack.c.l.b16 %v4175
  %v4191 = vpack.c.b16 %v4188, %v4187
  %v4192 = vpack.c.b16 %v4190, %v4189
  %v4196 = vsel %vm46, %v4164, 0
  %v4199 = vsel %vm46, %v4165, 0
  %v4202 = vsel %vm46, %v4166, 0
  %v4205 = vsel %vm46, %v4167, 0
  %v4208 = vsel %vm46, %v4168, 0
  %v4211 = vsel %vm46, %v4169, 0
  %v4214 = vsel %vm46, %v4170, 0
  %v4217 = vsel %vm46, %v4171, 0
  %4219 = vmatprep.subr.bf16.mxu0 0
  %4220 = vmatpush1.bf16.msra.mxu0 0
  %4221 = vmatprep.subr.bf16.mxu0 0
  %4222 = vmatpush1.bf16.msra.mxu0 0
  %4223 = vmatprep.subr.bf16.mxu0 0
  %4224 = vmatpush1.bf16.msra.mxu0 0
  %4225 = vmatprep.subr.bf16.mxu0 0
  %4226 = vmatpush1.bf16.msra.mxu0 0
  %4227 = vmatprep.subr.bf16.mxu0 0
  %4228 = vmatpush1.bf16.msra.mxu0 0
  %4229 = vmatprep.subr.bf16.mxu0 0
  %4230 = vmatpush1.bf16.msra.mxu0 0
  %4231 = vmatprep.subr.bf16.mxu0 0
  %4232 = vmatpush1.bf16.msra.mxu0 %v4192
  %4233 = vmatprep.subr.bf16.mxu0 0
  %4234 = vmatpush1.bf16.msra.mxu0 %v4191
  %4235 = vmatprep.subr.bf16.mxu0 0
  %4236 = vmatpush2.bf16.msra.mxu0 0
  %4237 = vmatprep.subr.bf16.mxu0 0
  %4238 = vmatpush2.bf16.msra.mxu0 0
  %4239 = vmatprep.subr.bf16.mxu0 0
  %4240 = vmatpush2.bf16.msra.mxu0 0
  %4241 = vmatprep.subr.bf16.mxu0 0
  %4242 = vmatpush2.bf16.msra.mxu0 0
  %4243 = vmatprep.subr.bf16.mxu0 0
  %4244 = vmatpush2.bf16.msra.mxu0 0
  %4245 = vmatprep.subr.bf16.mxu0 0
  %4246 = vmatpush2.bf16.msra.mxu0 0
  %4247 = vmatprep.subr.bf16.mxu0 0
  %4248 = vmatpush2.bf16.msra.mxu0 0
  %4249 = vmatprep.subr.bf16.mxu0 0
  %4250 = vmatpush2.bf16.msra.mxu0 0
  %4251 = vmatprep.mubr.bf16.mxu0 0
  %4252 = vmatmul.mubr.bf16.gmra.mxu0 %v4196
  %v4253 = vpop.f32.mrf.mxu0
  %v4254 = vadd.f32 %v4181, %v4253
  %v4255 = vpop.f32.mrf.mxu0
  %v4256 = vpop.f32.mrf.mxu0
  %v4257 = vadd.f32 %v4181, %v4256
  %v4258 = vpop.f32.mrf.mxu0
  %4259 = vmatprep.mubr.bf16.mxu0 0
  %4260 = vmatmul.mubr.bf16.gmra.mxu0 %v4199
  %v4261 = vpop.f32.mrf.mxu0
  %v4262 = vadd.f32 %v4181, %v4261
  %v4263 = vpop.f32.mrf.mxu0
  %v4264 = vpop.f32.mrf.mxu0
  %v4265 = vadd.f32 %v4181, %v4264
  %v4266 = vpop.f32.mrf.mxu0
  %4267 = vmatprep.mubr.bf16.mxu0 0
  %4268 = vmatmul.mubr.bf16.gmra.mxu0 %v4202
  %v4269 = vpop.f32.mrf.mxu0
  %v4270 = vadd.f32 %v4181, %v4269
  %v4271 = vpop.f32.mrf.mxu0
  %v4272 = vpop.f32.mrf.mxu0
  %v4273 = vadd.f32 %v4181, %v4272
  %v4274 = vpop.f32.mrf.mxu0
  %4275 = vmatprep.mubr.bf16.mxu0 0
  %4276 = vmatmul.mubr.bf16.gmra.mxu0 %v4205
  %v4277 = vpop.f32.mrf.mxu0
  %v4278 = vadd.f32 %v4181, %v4277
  %v4279 = vpop.f32.mrf.mxu0
  %v4280 = vpop.f32.mrf.mxu0
  %v4281 = vadd.f32 %v4181, %v4280
  %v4282 = vpop.f32.mrf.mxu0
  %4283 = vmatprep.mubr.bf16.mxu0 0
  %4284 = vmatmul.mubr.bf16.gmra.mxu0 %v4208
  %v4285 = vpop.f32.mrf.mxu0
  %v4286 = vadd.f32 %v4181, %v4285
  %v4287 = vpop.f32.mrf.mxu0
  %v4288 = vpop.f32.mrf.mxu0
  %v4289 = vadd.f32 %v4181, %v4288
  %v4290 = vpop.f32.mrf.mxu0
  %4291 = vmatprep.mubr.bf16.mxu0 0
  %4292 = vmatmul.mubr.bf16.gmra.mxu0 %v4211
  %v4293 = vpop.f32.mrf.mxu0
  %v4294 = vadd.f32 %v4181, %v4293
  %v4295 = vpop.f32.mrf.mxu0
  %v4296 = vpop.f32.mrf.mxu0
  %v4297 = vadd.f32 %v4181, %v4296
  %v4298 = vpop.f32.mrf.mxu0
  %4299 = vmatprep.mubr.bf16.mxu0 0
  %4300 = vmatmul.mubr.bf16.gmra.mxu0 %v4214
  %v4301 = vpop.f32.mrf.mxu0
  %v4302 = vadd.f32 %v4181, %v4301
  %v4303 = vpop.f32.mrf.mxu0
  %v4304 = vpop.f32.mrf.mxu0
  %v4305 = vadd.f32 %v4181, %v4304
  %v4306 = vpop.f32.mrf.mxu0
  %4307 = vmatprep.mubr.bf16.mxu0 0
  %4308 = vmatmul.mubr.bf16.gmra.mxu0 %v4217
  %v4309 = vpop.f32.mrf.mxu0
  %v4310 = vadd.f32 %v4181, %v4309
  %v4311 = vpop.f32.mrf.mxu0
  %v4312 = vpop.f32.mrf.mxu0
  %v4313 = vadd.f32 %v4181, %v4312
  %v4314 = vpop.f32.mrf.mxu0
  %4315 = vdwg.mxu0
  %v4316 = vmul.f32 %v4254, %v4254
  %v4317 = vmul.f32 %v4257, %v4257
  %v4318 = vmul.f32 %v4262, %v4262
  %v4319 = vmul.f32 %v4265, %v4265
  %v4320 = vmul.f32 %v4270, %v4270
  %v4321 = vmul.f32 %v4273, %v4273
  %v4322 = vmul.f32 %v4278, %v4278
  %v4323 = vmul.f32 %v4281, %v4281
  %v4324 = vmul.f32 %v4286, %v4286
  %v4325 = vmul.f32 %v4289, %v4289
  %v4326 = vmul.f32 %v4294, %v4294
  %v4327 = vmul.f32 %v4297, %v4297
  %v4328 = vmul.f32 %v4302, %v4302
  %v4329 = vmul.f32 %v4305, %v4305
  %v4330 = vmul.f32 %v4310, %v4310
  %v4331 = vmul.f32 %v4313, %v4313
  %v4332 = vmul.f32 %v4254, %v4316
  %v4333 = vmul.f32 %v4257, %v4317
  %v4334 = vmul.f32 %v4262, %v4318
  %v4335 = vmul.f32 %v4265, %v4319
  %v4336 = vmul.f32 %v4270, %v4320
  %v4337 = vmul.f32 %v4273, %v4321
  %v4338 = vmul.f32 %v4278, %v4322
  %v4339 = vmul.f32 %v4281, %v4323
  %v4340 = vmul.f32 %v4286, %v4324
  %v4341 = vmul.f32 %v4289, %v4325
  %v4342 = vmul.f32 %v4294, %v4326
  %v4343 = vmul.f32 %v4297, %v4327
  %v4344 = vmul.f32 %v4302, %v4328
  %v4345 = vmul.f32 %v4305, %v4329
  %v4346 = vmul.f32 %v4310, %v4330
  %v4347 = vmul.f32 %v4313, %v4331
  %v4348 = vmul.f32 %v4332, 0.044715
  %v4349 = vmul.f32 %v4333, 0.044715
  %v4350 = vmul.f32 %v4334, 0.044715
  %v4351 = vmul.f32 %v4335, 0.044715
  %v4352 = vmul.f32 %v4336, 0.044715
  %v4353 = vmul.f32 %v4337, 0.044715
  %v4354 = vmul.f32 %v4338, 0.044715
  %v4355 = vmul.f32 %v4339, 0.044715
  %v4356 = vmul.f32 %v4340, 0.044715
  %v4357 = vmul.f32 %v4341, 0.044715
  %v4358 = vmul.f32 %v4342, 0.044715
  %v4359 = vmul.f32 %v4343, 0.044715
  %v4360 = vmul.f32 %v4344, 0.044715
  %v4361 = vmul.f32 %v4345, 0.044715
  %v4362 = vmul.f32 %v4346, 0.044715
  %v4363 = vmul.f32 %v4347, 0.044715
  %v4364 = vadd.f32 %v4254, %v4348
  %v4365 = vadd.f32 %v4257, %v4349
  %v4366 = vadd.f32 %v4262, %v4350
  %v4367 = vadd.f32 %v4265, %v4351
  %v4368 = vadd.f32 %v4270, %v4352
  %v4369 = vadd.f32 %v4273, %v4353
  %v4370 = vadd.f32 %v4278, %v4354
  %v4371 = vadd.f32 %v4281, %v4355
  %v4372 = vadd.f32 %v4286, %v4356
  %v4373 = vadd.f32 %v4289, %v4357
  %v4374 = vadd.f32 %v4294, %v4358
  %v4375 = vadd.f32 %v4297, %v4359
  %v4376 = vadd.f32 %v4302, %v4360
  %v4377 = vadd.f32 %v4305, %v4361
  %v4378 = vadd.f32 %v4310, %v4362
  %v4379 = vadd.f32 %v4313, %v4363
  %v4380 = vmul.f32 %v4364, 0.7978846
  %v4381 = vmul.f32 %v4365, 0.7978846
  %v4382 = vmul.f32 %v4366, 0.7978846
  %v4383 = vmul.f32 %v4367, 0.7978846
  %v4384 = vmul.f32 %v4368, 0.7978846
  %v4385 = vmul.f32 %v4369, 0.7978846
  %v4386 = vmul.f32 %v4370, 0.7978846
  %v4387 = vmul.f32 %v4371, 0.7978846
  %v4388 = vmul.f32 %v4372, 0.7978846
  %v4389 = vmul.f32 %v4373, 0.7978846
  %v4390 = vmul.f32 %v4374, 0.7978846
  %v4391 = vmul.f32 %v4375, 0.7978846
  %v4392 = vmul.f32 %v4376, 0.7978846
  %v4393 = vmul.f32 %v4377, 0.7978846
  %v4394 = vmul.f32 %v4378, 0.7978846
  %v4395 = vmul.f32 %v4379, 0.7978846
  %v4396 = vtanh.pop %v4380
  %v4397 = vtanh.pop %v4381
  %v4398 = vtanh.pop %v4382
  %v4399 = vtanh.pop %v4383
  %v4400 = vtanh.pop %v4384
  %v4401 = vtanh.pop %v4385
  %v4402 = vtanh.pop %v4386
  %v4403 = vtanh.pop %v4387
  %v4404 = vtanh.pop %v4388
  %v4405 = vtanh.pop %v4389
  %v4406 = vtanh.pop %v4390
  %v4407 = vtanh.pop %v4391
  %v4408 = vtanh.pop %v4392
  %v4409 = vtanh.pop %v4393
  %v4410 = vtanh.pop %v4394
  %v4411 = vtanh.pop %v4395
  %v4412 = vadd.f32 %v4396, 1.0
  %v4413 = vadd.f32 %v4397, 1.0
  %v4414 = vadd.f32 %v4398, 1.0
  %v4415 = vadd.f32 %v4399, 1.0
  %v4416 = vadd.f32 %v4400, 1.0
  %v4417 = vadd.f32 %v4401, 1.0
  %v4418 = vadd.f32 %v4402, 1.0
  %v4419 = vadd.f32 %v4403, 1.0
  %v4420 = vadd.f32 %v4404, 1.0
  %v4421 = vadd.f32 %v4405, 1.0
  %v4422 = vadd.f32 %v4406, 1.0
  %v4423 = vadd.f32 %v4407, 1.0
  %v4424 = vadd.f32 %v4408, 1.0
  %v4425 = vadd.f32 %v4409, 1.0
  %v4426 = vadd.f32 %v4410, 1.0
  %v4427 = vadd.f32 %v4411, 1.0
  %v4428 = vmul.f32 %v4412, 0.5
  %v4429 = vmul.f32 %v4413, 0.5
  %v4430 = vmul.f32 %v4414, 0.5
  %v4431 = vmul.f32 %v4415, 0.5
  %v4432 = vmul.f32 %v4416, 0.5
  %v4433 = vmul.f32 %v4417, 0.5
  %v4434 = vmul.f32 %v4418, 0.5
  %v4435 = vmul.f32 %v4419, 0.5
  %v4436 = vmul.f32 %v4420, 0.5
  %v4437 = vmul.f32 %v4421, 0.5
  %v4438 = vmul.f32 %v4422, 0.5
  %v4439 = vmul.f32 %v4423, 0.5
  %v4440 = vmul.f32 %v4424, 0.5
  %v4441 = vmul.f32 %v4425, 0.5
  %v4442 = vmul.f32 %v4426, 0.5
  %v4443 = vmul.f32 %v4427, 0.5
  %v4444 = vmul.f32 %v4254, %v4428
  %v4445 = vmul.f32 %v4257, %v4429
  %v4446 = vmul.f32 %v4262, %v4430
  %v4447 = vmul.f32 %v4265, %v4431
  %v4448 = vmul.f32 %v4270, %v4432
  %v4449 = vmul.f32 %v4273, %v4433
  %v4450 = vmul.f32 %v4278, %v4434
  %v4451 = vmul.f32 %v4281, %v4435
  %v4452 = vmul.f32 %v4286, %v4436
  %v4453 = vmul.f32 %v4289, %v4437
  %v4454 = vmul.f32 %v4294, %v4438
  %v4455 = vmul.f32 %v4297, %v4439
  %v4456 = vmul.f32 %v4302, %v4440
  %v4457 = vmul.f32 %v4305, %v4441
  %v4458 = vmul.f32 %v4310, %v4442
  %v4459 = vmul.f32 %v4313, %v4443
  %v4460 = vpack.c.bf16 %v4445, %v4444
  %v4461 = vpack.c.bf16 %v4447, %v4446
  %v4462 = vpack.c.bf16 %v4449, %v4448
  %v4463 = vpack.c.bf16 %v4451, %v4450
  %v4464 = vpack.c.bf16 %v4453, %v4452
  %v4465 = vpack.c.bf16 %v4455, %v4454
  %v4466 = vpack.c.bf16 %v4457, %v4456
  %v4467 = vpack.c.bf16 %v4459, %v4458
  %v4468 = vld [vmem:[%s6] sm:$0xf]
  %v4469 = vld [vmem:[%s6 + $0x4] sm:$0xf]
  %v4470 = vld [vmem:[%s6 + $0x8] sm:$0xf]
  %v4471 = vld [vmem:[%s6 + $0xc] sm:$0xf]
  %v4472 = vld [vmem:[%s6 + $0x10] sm:$0xf]
  %v4473 = vld [vmem:[%s6 + $0x14] sm:$0xf]
  %v4474 = vld [vmem:[%s6 + $0x18] sm:$0xf]
  %v4475 = vld [vmem:[%s6 + $0x1c] sm:$0xf]
  %v4476 = vld [vmem:[%s6 + $0x20] sm:$0xf]
  %v4477 = vld [vmem:[%s6 + $0x24] sm:$0xf]
  %v4478 = vld [vmem:[%s6 + $0x28] sm:$0xf]
  %v4479 = vld [vmem:[%s6 + $0x2c] sm:$0xf]
  %v4480 = vld [vmem:[%s6 + $0x30] sm:$0xf]
  %v4481 = vld [vmem:[%s6 + $0x34] sm:$0xf]
  %v4482 = vld [vmem:[%s6 + $0x38] sm:$0xf]
  %v4483 = vld [vmem:[%s6 + $0x3c] sm:$0xf]
  %v4484 = vlaneseq
  %v4485 = vshrl.u32 %v4484, 7
  %v4486 = vsub.s32 7, %v4485
  %v4487 = vrot.slane %v44, %v4486
  %v4504 = vunpack.c.l.b16 %v4468
  %v4505 = vunpack.c.l.b16 %v4469
  %v4506 = vunpack.c.l.b16 %v4470
  %v4507 = vunpack.c.l.b16 %v4471
  %v4508 = vunpack.c.l.b16 %v4472
  %v4509 = vunpack.c.l.b16 %v4473
  %v4510 = vunpack.c.l.b16 %v4474
  %v4511 = vunpack.c.l.b16 %v4475
  %v4512 = vunpack.c.l.b16 %v4476
  %v4513 = vunpack.c.l.b16 %v4477
  %v4514 = vunpack.c.l.b16 %v4478
  %v4515 = vunpack.c.l.b16 %v4479
  %v4516 = vunpack.c.l.b16 %v4480
  %v4517 = vunpack.c.l.b16 %v4481
  %v4518 = vunpack.c.l.b16 %v4482
  %v4519 = vunpack.c.l.b16 %v4483
  %v4520 = vpack.c.b16 %v4505, %v4504
  %v4521 = vpack.c.b16 %v4507, %v4506
  %v4522 = vpack.c.b16 %v4509, %v4508
  %v4523 = vpack.c.b16 %v4511, %v4510
  %v4524 = vpack.c.b16 %v4513, %v4512
  %v4525 = vpack.c.b16 %v4515, %v4514
  %v4526 = vpack.c.b16 %v4517, %v4516
  %v4527 = vpack.c.b16 %v4519, %v4518
  %4536 = vmatprep.subr.bf16.mxu0 0
  %4537 = vmatpush1.bf16.msra.mxu0 %v4527
  %4538 = vmatprep.subr.bf16.mxu0 0
  %4539 = vmatpush1.bf16.msra.mxu0 %v4526
  %4540 = vmatprep.subr.bf16.mxu0 0
  %4541 = vmatpush1.bf16.msra.mxu0 %v4525
  %4542 = vmatprep.subr.bf16.mxu0 0
  %4543 = vmatpush1.bf16.msra.mxu0 %v4524
  %4544 = vmatprep.subr.bf16.mxu0 0
  %4545 = vmatpush1.bf16.msra.mxu0 %v4523
  %4546 = vmatprep.subr.bf16.mxu0 0
  %4547 = vmatpush1.bf16.msra.mxu0 %v4522
  %4548 = vmatprep.subr.bf16.mxu0 0
  %4549 = vmatpush1.bf16.msra.mxu0 %v4521
  %4550 = vmatprep.subr.bf16.mxu0 0
  %4551 = vmatpush1.bf16.msra.mxu0 %v4520
  %4552 = vmatprep.subr.bf16.mxu0 0
  %4553 = vmatpush2.bf16.msra.mxu0 0
  %4554 = vmatprep.subr.bf16.mxu0 0
  %4555 = vmatpush2.bf16.msra.mxu0 0
  %4556 = vmatprep.subr.bf16.mxu0 0
  %4557 = vmatpush2.bf16.msra.mxu0 0
  %4558 = vmatprep.subr.bf16.mxu0 0
  %4559 = vmatpush2.bf16.msra.mxu0 0
  %4560 = vmatprep.subr.bf16.mxu0 0
  %4561 = vmatpush2.bf16.msra.mxu0 0
  %4562 = vmatprep.subr.bf16.mxu0 0
  %4563 = vmatpush2.bf16.msra.mxu0 0
  %4564 = vmatprep.subr.bf16.mxu0 0
  %4565 = vmatpush2.bf16.msra.mxu0 0
  %4566 = vmatprep.subr.bf16.mxu0 0
  %4567 = vmatpush2.bf16.msra.mxu0 0
  %4568 = vmatprep.mubr.bf16.mxu0 0
  %4569 = vmatmul.mubr.bf16.gmra.mxu0 %v4460
  %v4570 = vpop.f32.mrf.mxu0
  %v4571 = vadd.f32 %v4487, %v4570
  %v4572 = vpop.f32.mrf.mxu0
  %v4573 = vpop.f32.mrf.mxu0
  %v4574 = vadd.f32 %v4487, %v4573
  %v4575 = vpop.f32.mrf.mxu0
  %4576 = vmatprep.mubr.bf16.mxu0 0
  %4577 = vmatmul.mubr.bf16.gmra.mxu0 %v4461
  %v4578 = vpop.f32.mrf.mxu0
  %v4579 = vadd.f32 %v4487, %v4578
  %v4580 = vpop.f32.mrf.mxu0
  %v4581 = vpop.f32.mrf.mxu0
  %v4582 = vadd.f32 %v4487, %v4581
  %v4583 = vpop.f32.mrf.mxu0
  %4584 = vmatprep.mubr.bf16.mxu0 0
  %4585 = vmatmul.mubr.bf16.gmra.mxu0 %v4462
  %v4586 = vpop.f32.mrf.mxu0
  %v4587 = vadd.f32 %v4487, %v4586
  %v4588 = vpop.f32.mrf.mxu0
  %v4589 = vpop.f32.mrf.mxu0
  %v4590 = vadd.f32 %v4487, %v4589
  %v4591 = vpop.f32.mrf.mxu0
  %4592 = vmatprep.mubr.bf16.mxu0 0
  %4593 = vmatmul.mubr.bf16.gmra.mxu0 %v4463
  %v4594 = vpop.f32.mrf.mxu0
  %v4595 = vadd.f32 %v4487, %v4594
  %v4596 = vpop.f32.mrf.mxu0
  %v4597 = vpop.f32.mrf.mxu0
  %v4598 = vadd.f32 %v4487, %v4597
  %v4599 = vpop.f32.mrf.mxu0
  %4600 = vmatprep.mubr.bf16.mxu0 0
  %4601 = vmatmul.mubr.bf16.gmra.mxu0 %v4464
  %v4602 = vpop.f32.mrf.mxu0
  %v4603 = vadd.f32 %v4487, %v4602
  %v4604 = vpop.f32.mrf.mxu0
  %v4605 = vpop.f32.mrf.mxu0
  %v4606 = vadd.f32 %v4487, %v4605
  %v4607 = vpop.f32.mrf.mxu0
  %4608 = vmatprep.mubr.bf16.mxu0 0
  %4609 = vmatmul.mubr.bf16.gmra.mxu0 %v4465
  %v4610 = vpop.f32.mrf.mxu0
  %v4611 = vadd.f32 %v4487, %v4610
  %v4612 = vpop.f32.mrf.mxu0
  %v4613 = vpop.f32.mrf.mxu0
  %v4614 = vadd.f32 %v4487, %v4613
  %v4615 = vpop.f32.mrf.mxu0
  %4616 = vmatprep.mubr.bf16.mxu0 0
  %4617 = vmatmul.mubr.bf16.gmra.mxu0 %v4466
  %v4618 = vpop.f32.mrf.mxu0
  %v4619 = vadd.f32 %v4487, %v4618
  %v4620 = vpop.f32.mrf.mxu0
  %v4621 = vpop.f32.mrf.mxu0
  %v4622 = vadd.f32 %v4487, %v4621
  %v4623 = vpop.f32.mrf.mxu0
  %4624 = vmatprep.mubr.bf16.mxu0 0
  %4625 = vmatmul.mubr.bf16.gmra.mxu0 %v4467
  %v4626 = vpop.f32.mrf.mxu0
  %v4627 = vadd.f32 %v4487, %v4626
  %v4628 = vpop.f32.mrf.mxu0
  %v4629 = vpop.f32.mrf.mxu0
  %v4630 = vadd.f32 %v4487, %v4629
  %v4631 = vpop.f32.mrf.mxu0
  %4632 = vdwg.mxu0
  %v4633 = vadd.f32 %v3900, %v4571
  %v4634 = vadd.f32 %v3901, %v4574
  %v4635 = vadd.f32 %v3902, %v4579
  %v4636 = vadd.f32 %v3903, %v4582
  %v4637 = vadd.f32 %v3904, %v4587
  %v4638 = vadd.f32 %v3905, %v4590
  %v4639 = vadd.f32 %v3906, %v4595
  %v4640 = vadd.f32 %v3907, %v4598
  %v4641 = vadd.f32 %v3908, %v4603
  %v4642 = vadd.f32 %v3909, %v4606
  %v4643 = vadd.f32 %v3910, %v4611
  %v4644 = vadd.f32 %v3911, %v4614
  %v4645 = vadd.f32 %v3912, %v4619
  %v4646 = vadd.f32 %v3913, %v4622
  %v4647 = vadd.f32 %v3914, %v4627
  %v4648 = vadd.f32 %v3915, %v4630
  %4649 = vst.msk [vmem:[%s7] sm:$0xff] %vm46, %v4633
  %4650 = vst.msk [vmem:[%s7 + $0x8] sm:$0xff] %vm46, %v4634
  %4651 = vst.msk [vmem:[%s7 + $0x10] sm:$0xff] %vm46, %v4635
  %4652 = vst.msk [vmem:[%s7 + $0x18] sm:$0xff] %vm46, %v4636
  %4653 = vst.msk [vmem:[%s7 + $0x20] sm:$0xff] %vm46, %v4637
  %4654 = vst.msk [vmem:[%s7 + $0x28] sm:$0xff] %vm46, %v4638
  %4655 = vst.msk [vmem:[%s7 + $0x30] sm:$0xff] %vm46, %v4639
  %4656 = vst.msk [vmem:[%s7 + $0x38] sm:$0xff] %vm46, %v4640
  %4657 = vst.msk [vmem:[%s7 + $0x40] sm:$0xff] %vm46, %v4641
  %4658 = vst.msk [vmem:[%s7 + $0x48] sm:$0xff] %vm46, %v4642
  %4659 = vst.msk [vmem:[%s7 + $0x50] sm:$0xff] %vm46, %v4643
  %4660 = vst.msk [vmem:[%s7 + $0x58] sm:$0xff] %vm46, %v4644
  %4661 = vst.msk [vmem:[%s7 + $0x60] sm:$0xff] %vm46, %v4645
  %4662 = vst.msk [vmem:[%s7 + $0x68] sm:$0xff] %vm46, %v4646
  %4663 = vst.msk [vmem:[%s7 + $0x70] sm:$0xff] %vm46, %v4647
  %4664 = vst.msk [vmem:[%s7 + $0x78] sm:$0xff] %vm46, %v4648
  // Predicated region
  $region30: #{cvt_block_forward.1} parent=0 // pred_check
    _
  $region31: #{cvt_block_forward.1} parent=0 // pred_check_branch
    %4666 = sbr.rel (0) target = $region33
  $region32: #{cvt_block_forward.1} parent=0 // pred_region
    _
  $region33: #{cvt_block_forward.1} parent=0 // pred_fallthru
    _
  // Predicated region
  $region34: #{cvt_block_forward.1} parent=0 // pred_check
    _
  $region35: #{cvt_block_forward.1} parent=0 // pred_check_branch
    %4668 = sbr.rel (0) target = $region37
  $region36: #{cvt_block_forward.1} parent=0 // pred_region
    _
  $region37: #{cvt_block_forward.1} parent=0 // pred_fallthru
    _

</llo_original>
